<compile_context>
chip_gen: v6e
topology: v6e:2x2x1
jax: 0.10.0
libtpu: 0.0.40
codegen_flags: <defaults>
</compile_context>

<pallas_src>
import functools
import math

import jax
import jax.numpy as jnp
from jax import lax
from jax.experimental import pallas as pl
from jax.experimental.pallas import tpu as pltpu


# -----------------------------------------------------------------------------
# In-kernel building blocks (operate on 2-D slabs resident in VMEM)
# -----------------------------------------------------------------------------
def _layer_norm(x, gamma, beta, eps=1e-6):
    mu = jnp.mean(x, axis=-1, keepdims=True)
    xc = x - mu
    var = jnp.mean(xc * xc, axis=-1, keepdims=True)
    return xc * lax.rsqrt(var + eps) * gamma + beta


def _mha_from_qkv(q, k, v, wo, bias, n_heads, d_head):
    """Multi-head attention given already-projected q/k/v (token-major 2-D slabs).

    q:    (Nq, D)  scaled queries (1/sqrt(d_head) already folded into Wq/bq)
    k, v: (Nk, D)
    wo:   (D, D)   output projection weight (its bias is added by the caller)
    bias: (Nq, Nk) additive mask bias: 0 = attend, -1e9 = masked.  Also encodes the
                   block-diagonal structure of the folded batch dimension.
    Returns (Nq, D) = concat_h(softmax(q_h k_h^T + bias) v_h) @ wo
    """
    nq, d = q.shape
    out = jnp.zeros((nq, d), dtype=jnp.float32)
    for h in range(n_heads):                       # static unroll; n_heads is small
        lo = h * d_head
        hi = lo + d_head
        qh = q[:, lo:hi]
        kh = k[:, lo:hi]
        vh = v[:, lo:hi]
        # q @ k^T without materializing a transpose: contract the last dims.
        s = lax.dot_general(qh, kh, (((1,), (1,)), ((), ())),
                            preferred_element_type=jnp.float32)      # (Nq, Nk)
        s = s + bias
        p = jnp.exp(s - jnp.max(s, axis=-1, keepdims=True))
        a = p * pl.reciprocal(jnp.sum(p, axis=-1, keepdims=True), approx=True)
        oh = jnp.dot(a, vh, preferred_element_type=jnp.float32)      # (Nq, dh)
        # concat(o_0..o_{H-1}) @ Wo == sum_h o_h @ Wo[h*dh:(h+1)*dh, :]
        out = out + jnp.dot(oh, wo[lo:hi, :],
                            preferred_element_type=jnp.float32)
    return out


# -----------------------------------------------------------------------------
# Kernel: the whole (small) batch is processed in a single invocation
# -----------------------------------------------------------------------------
def decoder_layer_kernel(
    x_ref, src_ref, tbias_ref, sbias_ref,
    sa_wqkv_ref, sa_bqkv_ref, sa_wo_ref, sa_bo_ref,
    ca_wq_ref, ca_bq_ref, ca_wkv_ref, ca_bkv_ref, ca_wo_ref, ca_bo_ref,
    ln1_ref, w1_ref, b1_ref, w2_ref, b2_ref, ln2_ref,
    out_ref,
    *, n_heads,
):
    d = x_ref.shape[-1]
    dh = d // n_heads

    x = x_ref[...].astype(jnp.float32)           # (B*T, D)
    src = src_ref[...].astype(jnp.float32)       # (B*S, D)
    tbias = tbias_ref[...]                       # (B*T, B*T) additive bias
    sbias = sbias_ref[...]                       # (B*T, B*S) additive bias

    ln1_g, ln1_b = ln1_ref[0:1, :], ln1_ref[1:2, :]
    ln2_g, ln2_b = ln2_ref[0:1, :], ln2_ref[1:2, :]

    # ---- self attention (fused QKV) + residual + LayerNorm1 (dropout == id) ----
    qkv = jnp.dot(x, sa_wqkv_ref[...],
                  preferred_element_type=jnp.float32) + sa_bqkv_ref[...]
    attn = _mha_from_qkv(qkv[:, 0:d], qkv[:, d:2 * d], qkv[:, 2 * d:3 * d],
                         sa_wo_ref[...], tbias, n_heads, dh)
    x = _layer_norm(x + attn + sa_bo_ref[...], ln1_g, ln1_b)

    # ---- encoder-decoder attention (fused KV) + residual + LayerNorm1 ----
    res = x
    q = jnp.dot(x, ca_wq_ref[...],
                preferred_element_type=jnp.float32) + ca_bq_ref[...]
    kv = jnp.dot(src, ca_wkv_ref[...],
                 preferred_element_type=jnp.float32) + ca_bkv_ref[...]
    attn = _mha_from_qkv(q, kv[:, 0:d], kv[:, d:2 * d],
                         ca_wo_ref[...], sbias, n_heads, dh)
    x = _layer_norm(res + attn + ca_bo_ref[...], ln1_g, ln1_b)

    # ---- position-wise FFN + residual + LayerNorm2 ----
    res = x
    h = jnp.dot(x, w1_ref[...], preferred_element_type=jnp.float32) + b1_ref[...]
    h = jnp.maximum(h, 0.0)
    y = jnp.dot(h, w2_ref[...], preferred_element_type=jnp.float32) + b2_ref[...]
    x = _layer_norm(res + y, ln2_g, ln2_b)

    out_ref[...] = x.astype(out_ref.dtype)


# -----------------------------------------------------------------------------
# Wrapper: layout plumbing (plain XLA ops) + pallas_call
# -----------------------------------------------------------------------------
def _block_diag(blocks):
    """Block-diagonal assembly of per-batch mask blocks (zeros elsewhere)."""
    n = len(blocks)
    r, c = blocks[0].shape
    out = jnp.zeros((n * r, n * c), blocks[0].dtype)
    for i, blk in enumerate(blocks):
        out = out.at[i * r:(i + 1) * r, i * c:(i + 1) * c].set(blk)
    return out


def decoder_layer(target, source, target_mask, source_mask, params, *, n_heads):
    B, T, D = target.shape
    S = source.shape[1]
    dh = D // n_heads
    scale = 1.0 / math.sqrt(dh)

    # Fold batch into the row (sublane) dim: denser matmuls + one kernel invocation
    # (no per-batch grid-step overhead on single-TensorCore chips).
    x2d = target.reshape(B * T, D)
    src2d = source.reshape(B * S, D)

    # Additive attention bias: 0 = attend, -1e9 = masked.  Block-diagonal over the
    # folded batch dim so cross-batch scores are masked by the same add.
    tmask = target_mask.astype(jnp.float32)
    smask = source_mask.astype(jnp.float32)
    tmask_flat = _block_diag([tmask[b, 0] for b in range(B)])                    # (B*T, B*T)
    smask_flat = _block_diag(
        [jnp.broadcast_to(smask[b, 0], (T, S)) for b in range(B)])               # (B*T, B*S)
    tbias = (tmask_flat - 1.0) * 1e9
    sbias = (smask_flat - 1.0) * 1e9

    # Fused projection weights; fold 1/sqrt(d_head) into Wq / bq.
    sa_w, sa_b = params["sa_w"], params["sa_b"]
    ca_w, ca_b = params["ca_w"], params["ca_b"]
    sa_wqkv = jnp.concatenate([sa_w[0] * scale, sa_w[1], sa_w[2]], axis=1)   # (D, 3D)
    sa_bqkv = jnp.concatenate([sa_b[0] * scale, sa_b[1], sa_b[2]])[None]     # (1, 3D)
    sa_wo, sa_bo = sa_w[3], sa_b[3][None]
    ca_wq, ca_bq = ca_w[0] * scale, (ca_b[0] * scale)[None]
    ca_wkv = jnp.concatenate([ca_w[1], ca_w[2]], axis=1)                     # (D, 2D)
    ca_bkv = jnp.concatenate([ca_b[1], ca_b[2]])[None]                       # (1, 2D)
    ca_wo, ca_bo = ca_w[3], ca_b[3][None]

    args = (x2d, src2d, tbias, sbias,
            sa_wqkv, sa_bqkv, sa_wo, sa_bo,
            ca_wq, ca_bq, ca_wkv, ca_bkv, ca_wo, ca_bo,
            params["ln1"], params["ffn_w1"], params["ffn_b1"],
            params["ffn_w2"], params["ffn_b2"], params["ln2"])

    def full_spec(a):
        nd = a.ndim
        return pl.BlockSpec(a.shape, lambda i, _nd=nd: (0,) * _nd)

    kernel = functools.partial(decoder_layer_kernel, n_heads=n_heads)

    out2d = pl.pallas_call(
        kernel,
        out_shape=jax.ShapeDtypeStruct((B * T, D), target.dtype),
        grid=(1,),   # whole problem in one step (best for 1-TC v5e/v6e).
        # TODO(synk): at production sizes, grid over batch / T-tiles with "parallel"
        # semantics for v7x's 2 TensorCores, cast matmul operands to bf16, and tile
        # the FFN hidden dim so weights fit v7x's 64 MiB VMEM.
        in_specs=[full_spec(a) for a in args],
        out_specs=pl.BlockSpec((B * T, D), lambda i: (0, 0)),
        compiler_params=pltpu.CompilerParams(
            dimension_semantics=("arbitrary",),
            vmem_limit_bytes=32 * 1024 * 1024),
    )(*args)
    return out2d.reshape(B, T, D)


# -----------------------------------------------------------------------------
# Pure-JAX reference (mirrors the PyTorch forward) for a correctness check
# -----------------------------------------------------------------------------
def _ref_mha(xq, xkv, w, b, mask, n_heads):
    B, T, D = xq.shape
    S = xkv.shape[1]
    dh = D // n_heads
    q = xq @ w[0] + b[0]
    k = xkv @ w[1] + b[1]
    v = xkv @ w[2] + b[2]
    q = q.reshape(B, T, n_heads, dh).transpose(0, 2, 1, 3)
    k = k.reshape(B, S, n_heads, dh).transpose(0, 2, 1, 3)
    v = v.reshape(B, S, n_heads, dh).transpose(0, 2, 1, 3)
    s = jnp.einsum("bhtd,bhsd->bhts", q, k) / math.sqrt(dh)
    s = jnp.where(mask == 0, -1e9, s)
    a = jax.nn.softmax(s, axis=-1)
    o = jnp.einsum("bhts,bhsd->bhtd", a, v)
    o = o.transpose(0, 2, 1, 3).reshape(B, T, D)
    return o @ w[3] + b[3]


def _ref_ln(x, g, bta, eps=1e-6):
    mu = x.mean(-1, keepdims=True)
    var = ((x - mu) ** 2).mean(-1, keepdims=True)
    return (x - mu) / jnp.sqrt(var + eps) * g + bta


def decoder_layer_ref(target, source, tmask, smask, p, *, n_heads):
    x = _ref_mha(target, target, p["sa_w"], p["sa_b"], tmask, n_heads)
    x = _ref_ln(x + target, p["ln1"][0], p["ln1"][1])
    res = x
    x = _ref_mha(x, source, p["ca_w"], p["ca_b"], smask, n_heads)
    x = _ref_ln(x + res, p["ln1"][0], p["ln1"][1])
    res = x
    h = jnp.maximum(x @ p["ffn_w1"] + p["ffn_b1"][0], 0.0)
    x = h @ p["ffn_w2"] + p["ffn_b2"][0]
    return _ref_ln(x + res, p["ln2"][0], p["ln2"][1])


# -----------------------------------------------------------------------------
if __name__ == "__main__":
    d_model, d_hidden, n_heads = 32, 64, 4
    B, T, S = 2, 8, 8

    key = jax.random.PRNGKey(0)
    keys = jax.random.split(key, 12)
    sc = 0.05

    params = {
        "sa_w": jax.random.normal(keys[0], (4, d_model, d_model), jnp.float32) * sc,
        "sa_b": jax.random.normal(keys[1], (4, d_model), jnp.float32) * sc,
        "ca_w": jax.random.normal(keys[2], (4, d_model, d_model), jnp.float32) * sc,
        "ca_b": jax.random.normal(keys[3], (4, d_model), jnp.float32) * sc,
        "ln1": jnp.stack([jnp.ones((d_model,), jnp.float32),
                          jnp.zeros((d_model,), jnp.float32)]),
        "ffn_w1": jax.random.normal(keys[4], (d_model, d_hidden), jnp.float32) * sc,
        "ffn_b1": jax.random.normal(keys[5], (1, d_hidden), jnp.float32) * sc,
        "ffn_w2": jax.random.normal(keys[6], (d_hidden, d_model), jnp.float32) * sc,
        "ffn_b2": jax.random.normal(keys[7], (1, d_model), jnp.float32) * sc,
        "ln2": jnp.stack([jnp.ones((d_model,), jnp.float32),
                          jnp.zeros((d_model,), jnp.float32)]),
    }

    target = jax.random.normal(keys[8], (B, T, d_model), jnp.float32)
    source = jax.random.normal(keys[9], (B, S, d_model), jnp.float32)
    # causal target mask [B,1,T,T], full source mask [B,1,1,S] (0 => masked)
    causal = jnp.tril(jnp.ones((T, T), jnp.float32))
    target_mask = jnp.broadcast_to(causal, (B, 1, T, T))
    source_mask = jnp.ones((B, 1, 1, S), jnp.float32)

    out = decoder_layer(target, source, target_mask, source_mask, params,
                        n_heads=n_heads)
    out = jax.block_until_ready(out)

    ref = decoder_layer_ref(target, source, target_mask, source_mask, params,
                            n_heads=n_heads)
    err = float(jnp.max(jnp.abs(out - ref)))
    assert out.shape == (B, T, d_model)
    # tolerance loosened for pl.reciprocal(approx=True) in the softmax denominator
    assert jnp.allclose(out, ref, atol=5e-3, rtol=5e-3), f"max abs err {err}"

    print("KERNEL_OK")
</pallas_src>

<mosaic_0001>
module attributes {stable_mosaic.version = 11 : i64} {
  func.func @decoder_layer_kernel(%arg0: i32, %arg1: memref<16x32xf32, #tpu.memory_space<vmem>>, %arg2: memref<16x32xf32, #tpu.memory_space<vmem>>, %arg3: memref<16x16xf32, #tpu.memory_space<vmem>>, %arg4: memref<16x16xf32, #tpu.memory_space<vmem>>, %arg5: memref<32x96xf32, #tpu.memory_space<vmem>>, %arg6: memref<1x96xf32, #tpu.memory_space<vmem>>, %arg7: memref<32x32xf32, #tpu.memory_space<vmem>>, %arg8: memref<1x32xf32, #tpu.memory_space<vmem>>, %arg9: memref<32x32xf32, #tpu.memory_space<vmem>>, %arg10: memref<1x32xf32, #tpu.memory_space<vmem>>, %arg11: memref<32x64xf32, #tpu.memory_space<vmem>>, %arg12: memref<1x64xf32, #tpu.memory_space<vmem>>, %arg13: memref<32x32xf32, #tpu.memory_space<vmem>>, %arg14: memref<1x32xf32, #tpu.memory_space<vmem>>, %arg15: memref<2x32xf32, #tpu.memory_space<vmem>>, %arg16: memref<32x64xf32, #tpu.memory_space<vmem>>, %arg17: memref<1x64xf32, #tpu.memory_space<vmem>>, %arg18: memref<64x32xf32, #tpu.memory_space<vmem>>, %arg19: memref<1x32xf32, #tpu.memory_space<vmem>>, %arg20: memref<2x32xf32, #tpu.memory_space<vmem>>, %arg21: memref<16x32xf32, #tpu.memory_space<vmem>>) attributes {dimension_semantics = [#tpu.dimension_semantics<arbitrary>], iteration_bounds = array<i64: 1>, scalar_prefetch = 0 : i64, scratch_operands = 0 : i64, tpu.core_type = #tpu.core_type<tc>, window_params = [{pipeline_mode = #tpu.pipeline_mode<synchronous>, transform_indices = @transform_0, window_bounds = array<i64: 16, 32>}, {pipeline_mode = #tpu.pipeline_mode<synchronous>, transform_indices = @transform_1, window_bounds = array<i64: 16, 32>}, {pipeline_mode = #tpu.pipeline_mode<synchronous>, transform_indices = @transform_2, window_bounds = array<i64: 16, 16>}, {pipeline_mode = #tpu.pipeline_mode<synchronous>, transform_indices = @transform_3, window_bounds = array<i64: 16, 16>}, {pipeline_mode = #tpu.pipeline_mode<synchronous>, transform_indices = @transform_4, window_bounds = array<i64: 32, 96>}, {pipeline_mode = #tpu.pipeline_mode<synchronous>, transform_indices = @transform_5, window_bounds = array<i64: 1, 96>}, {pipeline_mode = #tpu.pipeline_mode<synchronous>, transform_indices = @transform_6, window_bounds = array<i64: 32, 32>}, {pipeline_mode = #tpu.pipeline_mode<synchronous>, transform_indices = @transform_7, window_bounds = array<i64: 1, 32>}, {pipeline_mode = #tpu.pipeline_mode<synchronous>, transform_indices = @transform_8, window_bounds = array<i64: 32, 32>}, {pipeline_mode = #tpu.pipeline_mode<synchronous>, transform_indices = @transform_9, window_bounds = array<i64: 1, 32>}, {pipeline_mode = #tpu.pipeline_mode<synchronous>, transform_indices = @transform_10, window_bounds = array<i64: 32, 64>}, {pipeline_mode = #tpu.pipeline_mode<synchronous>, transform_indices = @transform_11, window_bounds = array<i64: 1, 64>}, {pipeline_mode = #tpu.pipeline_mode<synchronous>, transform_indices = @transform_12, window_bounds = array<i64: 32, 32>}, {pipeline_mode = #tpu.pipeline_mode<synchronous>, transform_indices = @transform_13, window_bounds = array<i64: 1, 32>}, {pipeline_mode = #tpu.pipeline_mode<synchronous>, transform_indices = @transform_14, window_bounds = array<i64: 2, 32>}, {pipeline_mode = #tpu.pipeline_mode<synchronous>, transform_indices = @transform_15, window_bounds = array<i64: 32, 64>}, {pipeline_mode = #tpu.pipeline_mode<synchronous>, transform_indices = @transform_16, window_bounds = array<i64: 1, 64>}, {pipeline_mode = #tpu.pipeline_mode<synchronous>, transform_indices = @transform_17, window_bounds = array<i64: 64, 32>}, {pipeline_mode = #tpu.pipeline_mode<synchronous>, transform_indices = @transform_18, window_bounds = array<i64: 1, 32>}, {pipeline_mode = #tpu.pipeline_mode<synchronous>, transform_indices = @transform_19, window_bounds = array<i64: 2, 32>}, {pipeline_mode = #tpu.pipeline_mode<synchronous>, transform_indices = @transform_20, window_bounds = array<i64: 16, 32>}]} {
    %c0 = arith.constant 0 : index
    %c0_0 = arith.constant 0 : index
    %0 = vector.load %arg1[%c0, %c0_0] : memref<16x32xf32, #tpu.memory_space<vmem>>, vector<16x32xf32>
    %c0_1 = arith.constant 0 : index
    %c0_2 = arith.constant 0 : index
    %1 = vector.load %arg2[%c0_1, %c0_2] : memref<16x32xf32, #tpu.memory_space<vmem>>, vector<16x32xf32>
    %c0_3 = arith.constant 0 : index
    %c0_4 = arith.constant 0 : index
    %2 = vector.load %arg3[%c0_3, %c0_4] : memref<16x16xf32, #tpu.memory_space<vmem>>, vector<16x16xf32>
    %c0_5 = arith.constant 0 : index
    %c0_6 = arith.constant 0 : index
    %3 = vector.load %arg4[%c0_5, %c0_6] : memref<16x16xf32, #tpu.memory_space<vmem>>, vector<16x16xf32>
    %c0_7 = arith.constant 0 : index
    %c0_8 = arith.constant 0 : index
    %4 = vector.load %arg15[%c0_7, %c0_8] : memref<2x32xf32, #tpu.memory_space<vmem>>, vector<1x32xf32>
    %c1 = arith.constant 1 : index
    %c0_9 = arith.constant 0 : index
    %5 = vector.load %arg15[%c1, %c0_9] : memref<2x32xf32, #tpu.memory_space<vmem>>, vector<1x32xf32>
    %c0_10 = arith.constant 0 : index
    %c0_11 = arith.constant 0 : index
    %6 = vector.load %arg20[%c0_10, %c0_11] : memref<2x32xf32, #tpu.memory_space<vmem>>, vector<1x32xf32>
    %c1_12 = arith.constant 1 : index
    %c0_13 = arith.constant 0 : index
    %7 = vector.load %arg20[%c1_12, %c0_13] : memref<2x32xf32, #tpu.memory_space<vmem>>, vector<1x32xf32>
    %c0_14 = arith.constant 0 : index
    %c0_15 = arith.constant 0 : index
    %8 = vector.load %arg5[%c0_14, %c0_15] : memref<32x96xf32, #tpu.memory_space<vmem>>, vector<32x96xf32>
    %cst = arith.constant dense<0.000000e+00> : vector<16x96xf32>
    %9 = tpu.matmul %0, %8, %cst {dimension_numbers = #tpu.dot_dimension_numbers<[1], [0], [0], [1], [0, 0, 1, 1], [], []>} : vector<16x32xf32>, vector<32x96xf32>, vector<16x96xf32> -> vector<16x96xf32>
    %c0_16 = arith.constant 0 : index
    %c0_17 = arith.constant 0 : index
    %10 = vector.load %arg6[%c0_16, %c0_17] : memref<1x96xf32, #tpu.memory_space<vmem>>, vector<1x96xf32>
    %11 = vector.broadcast %10 : vector<1x96xf32> to vector<16x96xf32>
    %12 = arith.addf %9, %11 : vector<16x96xf32>
    %13 = vector.extract_strided_slice %12 {offsets = [0, 0], sizes = [16, 32], strides = [1, 1]} : vector<16x96xf32> to vector<16x32xf32>
    %14 = vector.extract_strided_slice %12 {offsets = [0, 32], sizes = [16, 32], strides = [1, 1]} : vector<16x96xf32> to vector<16x32xf32>
    %15 = vector.extract_strided_slice %12 {offsets = [0, 64], sizes = [16, 32], strides = [1, 1]} : vector<16x96xf32> to vector<16x32xf32>
    %c0_18 = arith.constant 0 : index
    %c0_19 = arith.constant 0 : index
    %16 = vector.load %arg7[%c0_18, %c0_19] : memref<32x32xf32, #tpu.memory_space<vmem>>, vector<32x32xf32>
    %cst_20 = arith.constant 0.000000e+00 : f32
    %17 = vector.broadcast %cst_20 : f32 to vector<16x32xf32>
    %18 = vector.extract_strided_slice %13 {offsets = [0, 0], sizes = [16, 8], strides = [1, 1]} : vector<16x32xf32> to vector<16x8xf32>
    %19 = vector.extract_strided_slice %14 {offsets = [0, 0], sizes = [16, 8], strides = [1, 1]} : vector<16x32xf32> to vector<16x8xf32>
    %20 = vector.extract_strided_slice %15 {offsets = [0, 0], sizes = [16, 8], strides = [1, 1]} : vector<16x32xf32> to vector<16x8xf32>
    %cst_21 = arith.constant dense<0.000000e+00> : vector<16x16xf32>
    %21 = tpu.matmul %18, %19, %cst_21 {dimension_numbers = #tpu.dot_dimension_numbers<[1], [1], [0], [0], [0, 0, 1, 0], [], []>} : vector<16x8xf32>, vector<16x8xf32>, vector<16x16xf32> -> vector<16x16xf32>
    %22 = arith.addf %21, %2 : vector<16x16xf32>
    %cst_22 = arith.constant dense<0xFF800000> : vector<16xf32>
    %23 = vector.multi_reduction <maximumf>, %22, %cst_22 [1] : vector<16x16xf32> to vector<16xf32>
    %24 = vector.shape_cast %23 : vector<16xf32> to vector<16x1xf32>
    %25 = vector.broadcast %24 : vector<16x1xf32> to vector<16x16xf32>
    %26 = arith.subf %22, %25 : vector<16x16xf32>
    %27 = math.exp %26 : vector<16x16xf32>
    %cst_23 = arith.constant dense<0.000000e+00> : vector<16xf32>
    %28 = vector.multi_reduction <add>, %27, %cst_23 [1] : vector<16x16xf32> to vector<16xf32>
    %29 = vector.shape_cast %28 : vector<16xf32> to vector<16x1xf32>
    %30 = tpu.reciprocal %29 {approx = true} : vector<16x1xf32> -> vector<16x1xf32>
    %31 = vector.broadcast %30 : vector<16x1xf32> to vector<16x16xf32>
    %32 = arith.mulf %27, %31 : vector<16x16xf32>
    %cst_24 = arith.constant dense<0.000000e+00> : vector<16x8xf32>
    %33 = tpu.matmul %32, %20, %cst_24 {dimension_numbers = #tpu.dot_dimension_numbers<[1], [0], [0], [1], [0, 0, 1, 1], [], []>} : vector<16x16xf32>, vector<16x8xf32>, vector<16x8xf32> -> vector<16x8xf32>
    %34 = vector.extract_strided_slice %16 {offsets = [0, 0], sizes = [8, 32], strides = [1, 1]} : vector<32x32xf32> to vector<8x32xf32>
    %cst_25 = arith.constant dense<0.000000e+00> : vector<16x32xf32>
    %35 = tpu.matmul %33, %34, %cst_25 {dimension_numbers = #tpu.dot_dimension_numbers<[1], [0], [0], [1], [0, 0, 1, 1], [], []>} : vector<16x8xf32>, vector<8x32xf32>, vector<16x32xf32> -> vector<16x32xf32>
    %36 = arith.addf %17, %35 : vector<16x32xf32>
    %37 = vector.extract_strided_slice %13 {offsets = [0, 8], sizes = [16, 8], strides = [1, 1]} : vector<16x32xf32> to vector<16x8xf32>
    %38 = vector.extract_strided_slice %14 {offsets = [0, 8], sizes = [16, 8], strides = [1, 1]} : vector<16x32xf32> to vector<16x8xf32>
    %39 = vector.extract_strided_slice %15 {offsets = [0, 8], sizes = [16, 8], strides = [1, 1]} : vector<16x32xf32> to vector<16x8xf32>
    %cst_26 = arith.constant dense<0.000000e+00> : vector<16x16xf32>
    %40 = tpu.matmul %37, %38, %cst_26 {dimension_numbers = #tpu.dot_dimension_numbers<[1], [1], [0], [0], [0, 0, 1, 0], [], []>} : vector<16x8xf32>, vector<16x8xf32>, vector<16x16xf32> -> vector<16x16xf32>
    %41 = arith.addf %40, %2 : vector<16x16xf32>
    %cst_27 = arith.constant dense<0xFF800000> : vector<16xf32>
    %42 = vector.multi_reduction <maximumf>, %41, %cst_27 [1] : vector<16x16xf32> to vector<16xf32>
    %43 = vector.shape_cast %42 : vector<16xf32> to vector<16x1xf32>
    %44 = vector.broadcast %43 : vector<16x1xf32> to vector<16x16xf32>
    %45 = arith.subf %41, %44 : vector<16x16xf32>
    %46 = math.exp %45 : vector<16x16xf32>
    %cst_28 = arith.constant dense<0.000000e+00> : vector<16xf32>
    %47 = vector.multi_reduction <add>, %46, %cst_28 [1] : vector<16x16xf32> to vector<16xf32>
    %48 = vector.shape_cast %47 : vector<16xf32> to vector<16x1xf32>
    %49 = tpu.reciprocal %48 {approx = true} : vector<16x1xf32> -> vector<16x1xf32>
    %50 = vector.broadcast %49 : vector<16x1xf32> to vector<16x16xf32>
    %51 = arith.mulf %46, %50 : vector<16x16xf32>
    %cst_29 = arith.constant dense<0.000000e+00> : vector<16x8xf32>
    %52 = tpu.matmul %51, %39, %cst_29 {dimension_numbers = #tpu.dot_dimension_numbers<[1], [0], [0], [1], [0, 0, 1, 1], [], []>} : vector<16x16xf32>, vector<16x8xf32>, vector<16x8xf32> -> vector<16x8xf32>
    %53 = vector.extract_strided_slice %16 {offsets = [8, 0], sizes = [8, 32], strides = [1, 1]} : vector<32x32xf32> to vector<8x32xf32>
    %cst_30 = arith.constant dense<0.000000e+00> : vector<16x32xf32>
    %54 = tpu.matmul %52, %53, %cst_30 {dimension_numbers = #tpu.dot_dimension_numbers<[1], [0], [0], [1], [0, 0, 1, 1], [], []>} : vector<16x8xf32>, vector<8x32xf32>, vector<16x32xf32> -> vector<16x32xf32>
    %55 = arith.addf %36, %54 : vector<16x32xf32>
    %56 = vector.extract_strided_slice %13 {offsets = [0, 16], sizes = [16, 8], strides = [1, 1]} : vector<16x32xf32> to vector<16x8xf32>
    %57 = vector.extract_strided_slice %14 {offsets = [0, 16], sizes = [16, 8], strides = [1, 1]} : vector<16x32xf32> to vector<16x8xf32>
    %58 = vector.extract_strided_slice %15 {offsets = [0, 16], sizes = [16, 8], strides = [1, 1]} : vector<16x32xf32> to vector<16x8xf32>
    %cst_31 = arith.constant dense<0.000000e+00> : vector<16x16xf32>
    %59 = tpu.matmul %56, %57, %cst_31 {dimension_numbers = #tpu.dot_dimension_numbers<[1], [1], [0], [0], [0, 0, 1, 0], [], []>} : vector<16x8xf32>, vector<16x8xf32>, vector<16x16xf32> -> vector<16x16xf32>
    %60 = arith.addf %59, %2 : vector<16x16xf32>
    %cst_32 = arith.constant dense<0xFF800000> : vector<16xf32>
    %61 = vector.multi_reduction <maximumf>, %60, %cst_32 [1] : vector<16x16xf32> to vector<16xf32>
    %62 = vector.shape_cast %61 : vector<16xf32> to vector<16x1xf32>
    %63 = vector.broadcast %62 : vector<16x1xf32> to vector<16x16xf32>
    %64 = arith.subf %60, %63 : vector<16x16xf32>
    %65 = math.exp %64 : vector<16x16xf32>
    %cst_33 = arith.constant dense<0.000000e+00> : vector<16xf32>
    %66 = vector.multi_reduction <add>, %65, %cst_33 [1] : vector<16x16xf32> to vector<16xf32>
    %67 = vector.shape_cast %66 : vector<16xf32> to vector<16x1xf32>
    %68 = tpu.reciprocal %67 {approx = true} : vector<16x1xf32> -> vector<16x1xf32>
    %69 = vector.broadcast %68 : vector<16x1xf32> to vector<16x16xf32>
    %70 = arith.mulf %65, %69 : vector<16x16xf32>
    %cst_34 = arith.constant dense<0.000000e+00> : vector<16x8xf32>
    %71 = tpu.matmul %70, %58, %cst_34 {dimension_numbers = #tpu.dot_dimension_numbers<[1], [0], [0], [1], [0, 0, 1, 1], [], []>} : vector<16x16xf32>, vector<16x8xf32>, vector<16x8xf32> -> vector<16x8xf32>
    %72 = vector.extract_strided_slice %16 {offsets = [16, 0], sizes = [8, 32], strides = [1, 1]} : vector<32x32xf32> to vector<8x32xf32>
    %cst_35 = arith.constant dense<0.000000e+00> : vector<16x32xf32>
    %73 = tpu.matmul %71, %72, %cst_35 {dimension_numbers = #tpu.dot_dimension_numbers<[1], [0], [0], [1], [0, 0, 1, 1], [], []>} : vector<16x8xf32>, vector<8x32xf32>, vector<16x32xf32> -> vector<16x32xf32>
    %74 = arith.addf %55, %73 : vector<16x32xf32>
    %75 = vector.extract_strided_slice %13 {offsets = [0, 24], sizes = [16, 8], strides = [1, 1]} : vector<16x32xf32> to vector<16x8xf32>
    %76 = vector.extract_strided_slice %14 {offsets = [0, 24], sizes = [16, 8], strides = [1, 1]} : vector<16x32xf32> to vector<16x8xf32>
    %77 = vector.extract_strided_slice %15 {offsets = [0, 24], sizes = [16, 8], strides = [1, 1]} : vector<16x32xf32> to vector<16x8xf32>
    %cst_36 = arith.constant dense<0.000000e+00> : vector<16x16xf32>
    %78 = tpu.matmul %75, %76, %cst_36 {dimension_numbers = #tpu.dot_dimension_numbers<[1], [1], [0], [0], [0, 0, 1, 0], [], []>} : vector<16x8xf32>, vector<16x8xf32>, vector<16x16xf32> -> vector<16x16xf32>
    %79 = arith.addf %78, %2 : vector<16x16xf32>
    %cst_37 = arith.constant dense<0xFF800000> : vector<16xf32>
    %80 = vector.multi_reduction <maximumf>, %79, %cst_37 [1] : vector<16x16xf32> to vector<16xf32>
    %81 = vector.shape_cast %80 : vector<16xf32> to vector<16x1xf32>
    %82 = vector.broadcast %81 : vector<16x1xf32> to vector<16x16xf32>
    %83 = arith.subf %79, %82 : vector<16x16xf32>
    %84 = math.exp %83 : vector<16x16xf32>
    %cst_38 = arith.constant dense<0.000000e+00> : vector<16xf32>
    %85 = vector.multi_reduction <add>, %84, %cst_38 [1] : vector<16x16xf32> to vector<16xf32>
    %86 = vector.shape_cast %85 : vector<16xf32> to vector<16x1xf32>
    %87 = tpu.reciprocal %86 {approx = true} : vector<16x1xf32> -> vector<16x1xf32>
    %88 = vector.broadcast %87 : vector<16x1xf32> to vector<16x16xf32>
    %89 = arith.mulf %84, %88 : vector<16x16xf32>
    %cst_39 = arith.constant dense<0.000000e+00> : vector<16x8xf32>
    %90 = tpu.matmul %89, %77, %cst_39 {dimension_numbers = #tpu.dot_dimension_numbers<[1], [0], [0], [1], [0, 0, 1, 1], [], []>} : vector<16x16xf32>, vector<16x8xf32>, vector<16x8xf32> -> vector<16x8xf32>
    %91 = vector.extract_strided_slice %16 {offsets = [24, 0], sizes = [8, 32], strides = [1, 1]} : vector<32x32xf32> to vector<8x32xf32>
    %cst_40 = arith.constant dense<0.000000e+00> : vector<16x32xf32>
    %92 = tpu.matmul %90, %91, %cst_40 {dimension_numbers = #tpu.dot_dimension_numbers<[1], [0], [0], [1], [0, 0, 1, 1], [], []>} : vector<16x8xf32>, vector<8x32xf32>, vector<16x32xf32> -> vector<16x32xf32>
    %93 = arith.addf %74, %92 : vector<16x32xf32>
    %94 = arith.addf %0, %93 : vector<16x32xf32>
    %c0_41 = arith.constant 0 : index
    %c0_42 = arith.constant 0 : index
    %95 = vector.load %arg8[%c0_41, %c0_42] : memref<1x32xf32, #tpu.memory_space<vmem>>, vector<1x32xf32>
    %96 = vector.broadcast %95 : vector<1x32xf32> to vector<16x32xf32>
    %97 = arith.addf %94, %96 : vector<16x32xf32>
    %cst_43 = arith.constant dense<0.000000e+00> : vector<16xf32>
    %98 = vector.multi_reduction <add>, %97, %cst_43 [1] : vector<16x32xf32> to vector<16xf32>
    %99 = vector.shape_cast %98 : vector<16xf32> to vector<16x1xf32>
    %cst_44 = arith.constant 3.200000e+01 : f32
    %100 = vector.broadcast %cst_44 : f32 to vector<16x1xf32>
    %101 = arith.divf %99, %100 : vector<16x1xf32>
    %102 = vector.broadcast %101 : vector<16x1xf32> to vector<16x32xf32>
    %103 = arith.subf %97, %102 : vector<16x32xf32>
    %104 = arith.mulf %103, %103 : vector<16x32xf32>
    %cst_45 = arith.constant dense<0.000000e+00> : vector<16xf32>
    %105 = vector.multi_reduction <add>, %104, %cst_45 [1] : vector<16x32xf32> to vector<16xf32>
    %106 = vector.shape_cast %105 : vector<16xf32> to vector<16x1xf32>
    %cst_46 = arith.constant 3.200000e+01 : f32
    %107 = vector.broadcast %cst_46 : f32 to vector<16x1xf32>
    %108 = arith.divf %106, %107 : vector<16x1xf32>
    %cst_47 = arith.constant 9.99999997E-7 : f32
    %109 = vector.broadcast %cst_47 : f32 to vector<16x1xf32>
    %110 = arith.addf %108, %109 : vector<16x1xf32>
    %111 = math.rsqrt %110 : vector<16x1xf32>
    %112 = vector.broadcast %111 : vector<16x1xf32> to vector<16x32xf32>
    %113 = arith.mulf %103, %112 : vector<16x32xf32>
    %114 = vector.broadcast %4 : vector<1x32xf32> to vector<16x32xf32>
    %115 = arith.mulf %113, %114 : vector<16x32xf32>
    %116 = vector.broadcast %5 : vector<1x32xf32> to vector<16x32xf32>
    %117 = arith.addf %115, %116 : vector<16x32xf32>
    %c0_48 = arith.constant 0 : index
    %c0_49 = arith.constant 0 : index
    %118 = vector.load %arg9[%c0_48, %c0_49] : memref<32x32xf32, #tpu.memory_space<vmem>>, vector<32x32xf32>
    %cst_50 = arith.constant dense<0.000000e+00> : vector<16x32xf32>
    %119 = tpu.matmul %117, %118, %cst_50 {dimension_numbers = #tpu.dot_dimension_numbers<[1], [0], [0], [1], [0, 0, 1, 1], [], []>} : vector<16x32xf32>, vector<32x32xf32>, vector<16x32xf32> -> vector<16x32xf32>
    %c0_51 = arith.constant 0 : index
    %c0_52 = arith.constant 0 : index
    %120 = vector.load %arg10[%c0_51, %c0_52] : memref<1x32xf32, #tpu.memory_space<vmem>>, vector<1x32xf32>
    %121 = vector.broadcast %120 : vector<1x32xf32> to vector<16x32xf32>
    %122 = arith.addf %119, %121 : vector<16x32xf32>
    %c0_53 = arith.constant 0 : index
    %c0_54 = arith.constant 0 : index
    %123 = vector.load %arg11[%c0_53, %c0_54] : memref<32x64xf32, #tpu.memory_space<vmem>>, vector<32x64xf32>
    %cst_55 = arith.constant dense<0.000000e+00> : vector<16x64xf32>
    %124 = tpu.matmul %1, %123, %cst_55 {dimension_numbers = #tpu.dot_dimension_numbers<[1], [0], [0], [1], [0, 0, 1, 1], [], []>} : vector<16x32xf32>, vector<32x64xf32>, vector<16x64xf32> -> vector<16x64xf32>
    %c0_56 = arith.constant 0 : index
    %c0_57 = arith.constant 0 : index
    %125 = vector.load %arg12[%c0_56, %c0_57] : memref<1x64xf32, #tpu.memory_space<vmem>>, vector<1x64xf32>
    %126 = vector.broadcast %125 : vector<1x64xf32> to vector<16x64xf32>
    %127 = arith.addf %124, %126 : vector<16x64xf32>
    %128 = vector.extract_strided_slice %127 {offsets = [0, 0], sizes = [16, 32], strides = [1, 1]} : vector<16x64xf32> to vector<16x32xf32>
    %129 = vector.extract_strided_slice %127 {offsets = [0, 32], sizes = [16, 32], strides = [1, 1]} : vector<16x64xf32> to vector<16x32xf32>
    %c0_58 = arith.constant 0 : index
    %c0_59 = arith.constant 0 : index
    %130 = vector.load %arg13[%c0_58, %c0_59] : memref<32x32xf32, #tpu.memory_space<vmem>>, vector<32x32xf32>
    %cst_60 = arith.constant 0.000000e+00 : f32
    %131 = vector.broadcast %cst_60 : f32 to vector<16x32xf32>
    %132 = vector.extract_strided_slice %122 {offsets = [0, 0], sizes = [16, 8], strides = [1, 1]} : vector<16x32xf32> to vector<16x8xf32>
    %133 = vector.extract_strided_slice %128 {offsets = [0, 0], sizes = [16, 8], strides = [1, 1]} : vector<16x32xf32> to vector<16x8xf32>
    %134 = vector.extract_strided_slice %129 {offsets = [0, 0], sizes = [16, 8], strides = [1, 1]} : vector<16x32xf32> to vector<16x8xf32>
    %cst_61 = arith.constant dense<0.000000e+00> : vector<16x16xf32>
    %135 = tpu.matmul %132, %133, %cst_61 {dimension_numbers = #tpu.dot_dimension_numbers<[1], [1], [0], [0], [0, 0, 1, 0], [], []>} : vector<16x8xf32>, vector<16x8xf32>, vector<16x16xf32> -> vector<16x16xf32>
    %136 = arith.addf %135, %3 : vector<16x16xf32>
    %cst_62 = arith.constant dense<0xFF800000> : vector<16xf32>
    %137 = vector.multi_reduction <maximumf>, %136, %cst_62 [1] : vector<16x16xf32> to vector<16xf32>
    %138 = vector.shape_cast %137 : vector<16xf32> to vector<16x1xf32>
    %139 = vector.broadcast %138 : vector<16x1xf32> to vector<16x16xf32>
    %140 = arith.subf %136, %139 : vector<16x16xf32>
    %141 = math.exp %140 : vector<16x16xf32>
    %cst_63 = arith.constant dense<0.000000e+00> : vector<16xf32>
    %142 = vector.multi_reduction <add>, %141, %cst_63 [1] : vector<16x16xf32> to vector<16xf32>
    %143 = vector.shape_cast %142 : vector<16xf32> to vector<16x1xf32>
    %144 = tpu.reciprocal %143 {approx = true} : vector<16x1xf32> -> vector<16x1xf32>
    %145 = vector.broadcast %144 : vector<16x1xf32> to vector<16x16xf32>
    %146 = arith.mulf %141, %145 : vector<16x16xf32>
    %cst_64 = arith.constant dense<0.000000e+00> : vector<16x8xf32>
    %147 = tpu.matmul %146, %134, %cst_64 {dimension_numbers = #tpu.dot_dimension_numbers<[1], [0], [0], [1], [0, 0, 1, 1], [], []>} : vector<16x16xf32>, vector<16x8xf32>, vector<16x8xf32> -> vector<16x8xf32>
    %148 = vector.extract_strided_slice %130 {offsets = [0, 0], sizes = [8, 32], strides = [1, 1]} : vector<32x32xf32> to vector<8x32xf32>
    %cst_65 = arith.constant dense<0.000000e+00> : vector<16x32xf32>
    %149 = tpu.matmul %147, %148, %cst_65 {dimension_numbers = #tpu.dot_dimension_numbers<[1], [0], [0], [1], [0, 0, 1, 1], [], []>} : vector<16x8xf32>, vector<8x32xf32>, vector<16x32xf32> -> vector<16x32xf32>
    %150 = arith.addf %131, %149 : vector<16x32xf32>
    %151 = vector.extract_strided_slice %122 {offsets = [0, 8], sizes = [16, 8], strides = [1, 1]} : vector<16x32xf32> to vector<16x8xf32>
    %152 = vector.extract_strided_slice %128 {offsets = [0, 8], sizes = [16, 8], strides = [1, 1]} : vector<16x32xf32> to vector<16x8xf32>
    %153 = vector.extract_strided_slice %129 {offsets = [0, 8], sizes = [16, 8], strides = [1, 1]} : vector<16x32xf32> to vector<16x8xf32>
    %cst_66 = arith.constant dense<0.000000e+00> : vector<16x16xf32>
    %154 = tpu.matmul %151, %152, %cst_66 {dimension_numbers = #tpu.dot_dimension_numbers<[1], [1], [0], [0], [0, 0, 1, 0], [], []>} : vector<16x8xf32>, vector<16x8xf32>, vector<16x16xf32> -> vector<16x16xf32>
    %155 = arith.addf %154, %3 : vector<16x16xf32>
    %cst_67 = arith.constant dense<0xFF800000> : vector<16xf32>
    %156 = vector.multi_reduction <maximumf>, %155, %cst_67 [1] : vector<16x16xf32> to vector<16xf32>
    %157 = vector.shape_cast %156 : vector<16xf32> to vector<16x1xf32>
    %158 = vector.broadcast %157 : vector<16x1xf32> to vector<16x16xf32>
    %159 = arith.subf %155, %158 : vector<16x16xf32>
    %160 = math.exp %159 : vector<16x16xf32>
    %cst_68 = arith.constant dense<0.000000e+00> : vector<16xf32>
    %161 = vector.multi_reduction <add>, %160, %cst_68 [1] : vector<16x16xf32> to vector<16xf32>
    %162 = vector.shape_cast %161 : vector<16xf32> to vector<16x1xf32>
    %163 = tpu.reciprocal %162 {approx = true} : vector<16x1xf32> -> vector<16x1xf32>
    %164 = vector.broadcast %163 : vector<16x1xf32> to vector<16x16xf32>
    %165 = arith.mulf %160, %164 : vector<16x16xf32>
    %cst_69 = arith.constant dense<0.000000e+00> : vector<16x8xf32>
    %166 = tpu.matmul %165, %153, %cst_69 {dimension_numbers = #tpu.dot_dimension_numbers<[1], [0], [0], [1], [0, 0, 1, 1], [], []>} : vector<16x16xf32>, vector<16x8xf32>, vector<16x8xf32> -> vector<16x8xf32>
    %167 = vector.extract_strided_slice %130 {offsets = [8, 0], sizes = [8, 32], strides = [1, 1]} : vector<32x32xf32> to vector<8x32xf32>
    %cst_70 = arith.constant dense<0.000000e+00> : vector<16x32xf32>
    %168 = tpu.matmul %166, %167, %cst_70 {dimension_numbers = #tpu.dot_dimension_numbers<[1], [0], [0], [1], [0, 0, 1, 1], [], []>} : vector<16x8xf32>, vector<8x32xf32>, vector<16x32xf32> -> vector<16x32xf32>
    %169 = arith.addf %150, %168 : vector<16x32xf32>
    %170 = vector.extract_strided_slice %122 {offsets = [0, 16], sizes = [16, 8], strides = [1, 1]} : vector<16x32xf32> to vector<16x8xf32>
    %171 = vector.extract_strided_slice %128 {offsets = [0, 16], sizes = [16, 8], strides = [1, 1]} : vector<16x32xf32> to vector<16x8xf32>
    %172 = vector.extract_strided_slice %129 {offsets = [0, 16], sizes = [16, 8], strides = [1, 1]} : vector<16x32xf32> to vector<16x8xf32>
    %cst_71 = arith.constant dense<0.000000e+00> : vector<16x16xf32>
    %173 = tpu.matmul %170, %171, %cst_71 {dimension_numbers = #tpu.dot_dimension_numbers<[1], [1], [0], [0], [0, 0, 1, 0], [], []>} : vector<16x8xf32>, vector<16x8xf32>, vector<16x16xf32> -> vector<16x16xf32>
    %174 = arith.addf %173, %3 : vector<16x16xf32>
    %cst_72 = arith.constant dense<0xFF800000> : vector<16xf32>
    %175 = vector.multi_reduction <maximumf>, %174, %cst_72 [1] : vector<16x16xf32> to vector<16xf32>
    %176 = vector.shape_cast %175 : vector<16xf32> to vector<16x1xf32>
    %177 = vector.broadcast %176 : vector<16x1xf32> to vector<16x16xf32>
    %178 = arith.subf %174, %177 : vector<16x16xf32>
    %179 = math.exp %178 : vector<16x16xf32>
    %cst_73 = arith.constant dense<0.000000e+00> : vector<16xf32>
    %180 = vector.multi_reduction <add>, %179, %cst_73 [1] : vector<16x16xf32> to vector<16xf32>
    %181 = vector.shape_cast %180 : vector<16xf32> to vector<16x1xf32>
    %182 = tpu.reciprocal %181 {approx = true} : vector<16x1xf32> -> vector<16x1xf32>
    %183 = vector.broadcast %182 : vector<16x1xf32> to vector<16x16xf32>
    %184 = arith.mulf %179, %183 : vector<16x16xf32>
    %cst_74 = arith.constant dense<0.000000e+00> : vector<16x8xf32>
    %185 = tpu.matmul %184, %172, %cst_74 {dimension_numbers = #tpu.dot_dimension_numbers<[1], [0], [0], [1], [0, 0, 1, 1], [], []>} : vector<16x16xf32>, vector<16x8xf32>, vector<16x8xf32> -> vector<16x8xf32>
    %186 = vector.extract_strided_slice %130 {offsets = [16, 0], sizes = [8, 32], strides = [1, 1]} : vector<32x32xf32> to vector<8x32xf32>
    %cst_75 = arith.constant dense<0.000000e+00> : vector<16x32xf32>
    %187 = tpu.matmul %185, %186, %cst_75 {dimension_numbers = #tpu.dot_dimension_numbers<[1], [0], [0], [1], [0, 0, 1, 1], [], []>} : vector<16x8xf32>, vector<8x32xf32>, vector<16x32xf32> -> vector<16x32xf32>
    %188 = arith.addf %169, %187 : vector<16x32xf32>
    %189 = vector.extract_strided_slice %122 {offsets = [0, 24], sizes = [16, 8], strides = [1, 1]} : vector<16x32xf32> to vector<16x8xf32>
    %190 = vector.extract_strided_slice %128 {offsets = [0, 24], sizes = [16, 8], strides = [1, 1]} : vector<16x32xf32> to vector<16x8xf32>
    %191 = vector.extract_strided_slice %129 {offsets = [0, 24], sizes = [16, 8], strides = [1, 1]} : vector<16x32xf32> to vector<16x8xf32>
    %cst_76 = arith.constant dense<0.000000e+00> : vector<16x16xf32>
    %192 = tpu.matmul %189, %190, %cst_76 {dimension_numbers = #tpu.dot_dimension_numbers<[1], [1], [0], [0], [0, 0, 1, 0], [], []>} : vector<16x8xf32>, vector<16x8xf32>, vector<16x16xf32> -> vector<16x16xf32>
    %193 = arith.addf %192, %3 : vector<16x16xf32>
    %cst_77 = arith.constant dense<0xFF800000> : vector<16xf32>
    %194 = vector.multi_reduction <maximumf>, %193, %cst_77 [1] : vector<16x16xf32> to vector<16xf32>
    %195 = vector.shape_cast %194 : vector<16xf32> to vector<16x1xf32>
    %196 = vector.broadcast %195 : vector<16x1xf32> to vector<16x16xf32>
    %197 = arith.subf %193, %196 : vector<16x16xf32>
    %198 = math.exp %197 : vector<16x16xf32>
    %cst_78 = arith.constant dense<0.000000e+00> : vector<16xf32>
    %199 = vector.multi_reduction <add>, %198, %cst_78 [1] : vector<16x16xf32> to vector<16xf32>
    %200 = vector.shape_cast %199 : vector<16xf32> to vector<16x1xf32>
    %201 = tpu.reciprocal %200 {approx = true} : vector<16x1xf32> -> vector<16x1xf32>
    %202 = vector.broadcast %201 : vector<16x1xf32> to vector<16x16xf32>
    %203 = arith.mulf %198, %202 : vector<16x16xf32>
    %cst_79 = arith.constant dense<0.000000e+00> : vector<16x8xf32>
    %204 = tpu.matmul %203, %191, %cst_79 {dimension_numbers = #tpu.dot_dimension_numbers<[1], [0], [0], [1], [0, 0, 1, 1], [], []>} : vector<16x16xf32>, vector<16x8xf32>, vector<16x8xf32> -> vector<16x8xf32>
    %205 = vector.extract_strided_slice %130 {offsets = [24, 0], sizes = [8, 32], strides = [1, 1]} : vector<32x32xf32> to vector<8x32xf32>
    %cst_80 = arith.constant dense<0.000000e+00> : vector<16x32xf32>
    %206 = tpu.matmul %204, %205, %cst_80 {dimension_numbers = #tpu.dot_dimension_numbers<[1], [0], [0], [1], [0, 0, 1, 1], [], []>} : vector<16x8xf32>, vector<8x32xf32>, vector<16x32xf32> -> vector<16x32xf32>
    %207 = arith.addf %188, %206 : vector<16x32xf32>
    %208 = arith.addf %117, %207 : vector<16x32xf32>
    %c0_81 = arith.constant 0 : index
    %c0_82 = arith.constant 0 : index
    %209 = vector.load %arg14[%c0_81, %c0_82] : memref<1x32xf32, #tpu.memory_space<vmem>>, vector<1x32xf32>
    %210 = vector.broadcast %209 : vector<1x32xf32> to vector<16x32xf32>
    %211 = arith.addf %208, %210 : vector<16x32xf32>
    %cst_83 = arith.constant dense<0.000000e+00> : vector<16xf32>
    %212 = vector.multi_reduction <add>, %211, %cst_83 [1] : vector<16x32xf32> to vector<16xf32>
    %213 = vector.shape_cast %212 : vector<16xf32> to vector<16x1xf32>
    %cst_84 = arith.constant 3.200000e+01 : f32
    %214 = vector.broadcast %cst_84 : f32 to vector<16x1xf32>
    %215 = arith.divf %213, %214 : vector<16x1xf32>
    %216 = vector.broadcast %215 : vector<16x1xf32> to vector<16x32xf32>
    %217 = arith.subf %211, %216 : vector<16x32xf32>
    %218 = arith.mulf %217, %217 : vector<16x32xf32>
    %cst_85 = arith.constant dense<0.000000e+00> : vector<16xf32>
    %219 = vector.multi_reduction <add>, %218, %cst_85 [1] : vector<16x32xf32> to vector<16xf32>
    %220 = vector.shape_cast %219 : vector<16xf32> to vector<16x1xf32>
    %cst_86 = arith.constant 3.200000e+01 : f32
    %221 = vector.broadcast %cst_86 : f32 to vector<16x1xf32>
    %222 = arith.divf %220, %221 : vector<16x1xf32>
    %cst_87 = arith.constant 9.99999997E-7 : f32
    %223 = vector.broadcast %cst_87 : f32 to vector<16x1xf32>
    %224 = arith.addf %222, %223 : vector<16x1xf32>
    %225 = math.rsqrt %224 : vector<16x1xf32>
    %226 = vector.broadcast %225 : vector<16x1xf32> to vector<16x32xf32>
    %227 = arith.mulf %217, %226 : vector<16x32xf32>
    %228 = vector.broadcast %4 : vector<1x32xf32> to vector<16x32xf32>
    %229 = arith.mulf %227, %228 : vector<16x32xf32>
    %230 = vector.broadcast %5 : vector<1x32xf32> to vector<16x32xf32>
    %231 = arith.addf %229, %230 : vector<16x32xf32>
    %c0_88 = arith.constant 0 : index
    %c0_89 = arith.constant 0 : index
    %232 = vector.load %arg16[%c0_88, %c0_89] : memref<32x64xf32, #tpu.memory_space<vmem>>, vector<32x64xf32>
    %cst_90 = arith.constant dense<0.000000e+00> : vector<16x64xf32>
    %233 = tpu.matmul %231, %232, %cst_90 {dimension_numbers = #tpu.dot_dimension_numbers<[1], [0], [0], [1], [0, 0, 1, 1], [], []>} : vector<16x32xf32>, vector<32x64xf32>, vector<16x64xf32> -> vector<16x64xf32>
    %c0_91 = arith.constant 0 : index
    %c0_92 = arith.constant 0 : index
    %234 = vector.load %arg17[%c0_91, %c0_92] : memref<1x64xf32, #tpu.memory_space<vmem>>, vector<1x64xf32>
    %235 = vector.broadcast %234 : vector<1x64xf32> to vector<16x64xf32>
    %236 = arith.addf %233, %235 : vector<16x64xf32>
    %cst_93 = arith.constant 0.000000e+00 : f32
    %237 = vector.broadcast %cst_93 : f32 to vector<16x64xf32>
    %238 = arith.maximumf %236, %237 : vector<16x64xf32>
    %c0_94 = arith.constant 0 : index
    %c0_95 = arith.constant 0 : index
    %239 = vector.load %arg18[%c0_94, %c0_95] : memref<64x32xf32, #tpu.memory_space<vmem>>, vector<64x32xf32>
    %cst_96 = arith.constant dense<0.000000e+00> : vector<16x32xf32>
    %240 = tpu.matmul %238, %239, %cst_96 {dimension_numbers = #tpu.dot_dimension_numbers<[1], [0], [0], [1], [0, 0, 1, 1], [], []>} : vector<16x64xf32>, vector<64x32xf32>, vector<16x32xf32> -> vector<16x32xf32>
    %c0_97 = arith.constant 0 : index
    %c0_98 = arith.constant 0 : index
    %241 = vector.load %arg19[%c0_97, %c0_98] : memref<1x32xf32, #tpu.memory_space<vmem>>, vector<1x32xf32>
    %242 = vector.broadcast %241 : vector<1x32xf32> to vector<16x32xf32>
    %243 = arith.addf %240, %242 : vector<16x32xf32>
    %244 = arith.addf %231, %243 : vector<16x32xf32>
    %cst_99 = arith.constant dense<0.000000e+00> : vector<16xf32>
    %245 = vector.multi_reduction <add>, %244, %cst_99 [1] : vector<16x32xf32> to vector<16xf32>
    %246 = vector.shape_cast %245 : vector<16xf32> to vector<16x1xf32>
    %cst_100 = arith.constant 3.200000e+01 : f32
    %247 = vector.broadcast %cst_100 : f32 to vector<16x1xf32>
    %248 = arith.divf %246, %247 : vector<16x1xf32>
    %249 = vector.broadcast %248 : vector<16x1xf32> to vector<16x32xf32>
    %250 = arith.subf %244, %249 : vector<16x32xf32>
    %251 = arith.mulf %250, %250 : vector<16x32xf32>
    %cst_101 = arith.constant dense<0.000000e+00> : vector<16xf32>
    %252 = vector.multi_reduction <add>, %251, %cst_101 [1] : vector<16x32xf32> to vector<16xf32>
    %253 = vector.shape_cast %252 : vector<16xf32> to vector<16x1xf32>
    %cst_102 = arith.constant 3.200000e+01 : f32
    %254 = vector.broadcast %cst_102 : f32 to vector<16x1xf32>
    %255 = arith.divf %253, %254 : vector<16x1xf32>
    %cst_103 = arith.constant 9.99999997E-7 : f32
    %256 = vector.broadcast %cst_103 : f32 to vector<16x1xf32>
    %257 = arith.addf %255, %256 : vector<16x1xf32>
    %258 = math.rsqrt %257 : vector<16x1xf32>
    %259 = vector.broadcast %258 : vector<16x1xf32> to vector<16x32xf32>
    %260 = arith.mulf %250, %259 : vector<16x32xf32>
    %261 = vector.broadcast %6 : vector<1x32xf32> to vector<16x32xf32>
    %262 = arith.mulf %260, %261 : vector<16x32xf32>
    %263 = vector.broadcast %7 : vector<1x32xf32> to vector<16x32xf32>
    %264 = arith.addf %262, %263 : vector<16x32xf32>
    %c0_104 = arith.constant 0 : index
    %c0_105 = arith.constant 0 : index
    %265 = vector.load %arg21[%c0_104, %c0_105] : memref<16x32xf32, #tpu.memory_space<vmem>>, vector<16x32xf32>
    tpu.vector_store %arg21[%c0_104, %c0_105], %264 {strides = array<i32>} : memref<16x32xf32, #tpu.memory_space<vmem>>, vector<16x32xf32>,
    return
  }
  func.func @transform_0(%arg0: i32) -> (i32, i32) {
    %c0_i32 = arith.constant 0 : i32
    %c0_i32_0 = arith.constant 0 : i32
    %c0_i32_1 = arith.constant 0 : i32
    return %c0_i32, %c0_i32_0 : i32, i32
  }
  func.func @transform_1(%arg0: i32) -> (i32, i32) {
    %c0_i32 = arith.constant 0 : i32
    %c0_i32_0 = arith.constant 0 : i32
    %c0_i32_1 = arith.constant 0 : i32
    return %c0_i32, %c0_i32_0 : i32, i32
  }
  func.func @transform_2(%arg0: i32) -> (i32, i32) {
    %c0_i32 = arith.constant 0 : i32
    %c0_i32_0 = arith.constant 0 : i32
    %c0_i32_1 = arith.constant 0 : i32
    return %c0_i32, %c0_i32_0 : i32, i32
  }
  func.func @transform_3(%arg0: i32) -> (i32, i32) {
    %c0_i32 = arith.constant 0 : i32
    %c0_i32_0 = arith.constant 0 : i32
    %c0_i32_1 = arith.constant 0 : i32
    return %c0_i32, %c0_i32_0 : i32, i32
  }
  func.func @transform_4(%arg0: i32) -> (i32, i32) {
    %c0_i32 = arith.constant 0 : i32
    %c0_i32_0 = arith.constant 0 : i32
    %c0_i32_1 = arith.constant 0 : i32
    return %c0_i32, %c0_i32_0 : i32, i32
  }
  func.func @transform_5(%arg0: i32) -> (i32, i32) {
    %c0_i32 = arith.constant 0 : i32
    %c0_i32_0 = arith.constant 0 : i32
    %c0_i32_1 = arith.constant 0 : i32
    return %c0_i32, %c0_i32_0 : i32, i32
  }
  func.func @transform_6(%arg0: i32) -> (i32, i32) {
    %c0_i32 = arith.constant 0 : i32
    %c0_i32_0 = arith.constant 0 : i32
    %c0_i32_1 = arith.constant 0 : i32
    return %c0_i32, %c0_i32_0 : i32, i32
  }
  func.func @transform_7(%arg0: i32) -> (i32, i32) {
    %c0_i32 = arith.constant 0 : i32
    %c0_i32_0 = arith.constant 0 : i32
    %c0_i32_1 = arith.constant 0 : i32
    return %c0_i32, %c0_i32_0 : i32, i32
  }
  func.func @transform_8(%arg0: i32) -> (i32, i32) {
    %c0_i32 = arith.constant 0 : i32
    %c0_i32_0 = arith.constant 0 : i32
    %c0_i32_1 = arith.constant 0 : i32
    return %c0_i32, %c0_i32_0 : i32, i32
  }
  func.func @transform_9(%arg0: i32) -> (i32, i32) {
    %c0_i32 = arith.constant 0 : i32
    %c0_i32_0 = arith.constant 0 : i32
    %c0_i32_1 = arith.constant 0 : i32
    return %c0_i32, %c0_i32_0 : i32, i32
  }
  func.func @transform_10(%arg0: i32) -> (i32, i32) {
    %c0_i32 = arith.constant 0 : i32
    %c0_i32_0 = arith.constant 0 : i32
    %c0_i32_1 = arith.constant 0 : i32
    return %c0_i32, %c0_i32_0 : i32, i32
  }
  func.func @transform_11(%arg0: i32) -> (i32, i32) {
    %c0_i32 = arith.constant 0 : i32
    %c0_i32_0 = arith.constant 0 : i32
    %c0_i32_1 = arith.constant 0 : i32
    return %c0_i32, %c0_i32_0 : i32, i32
  }
  func.func @transform_12(%arg0: i32) -> (i32, i32) {
    %c0_i32 = arith.constant 0 : i32
    %c0_i32_0 = arith.constant 0 : i32
    %c0_i32_1 = arith.constant 0 : i32
    return %c0_i32, %c0_i32_0 : i32, i32
  }
  func.func @transform_13(%arg0: i32) -> (i32, i32) {
    %c0_i32 = arith.constant 0 : i32
    %c0_i32_0 = arith.constant 0 : i32
    %c0_i32_1 = arith.constant 0 : i32
    return %c0_i32, %c0_i32_0 : i32, i32
  }
  func.func @transform_14(%arg0: i32) -> (i32, i32) {
    %c0_i32 = arith.constant 0 : i32
    %c0_i32_0 = arith.constant 0 : i32
    %c0_i32_1 = arith.constant 0 : i32
    return %c0_i32, %c0_i32_0 : i32, i32
  }
  func.func @transform_15(%arg0: i32) -> (i32, i32) {
    %c0_i32 = arith.constant 0 : i32
    %c0_i32_0 = arith.constant 0 : i32
    %c0_i32_1 = arith.constant 0 : i32
    return %c0_i32, %c0_i32_0 : i32, i32
  }
  func.func @transform_16(%arg0: i32) -> (i32, i32) {
    %c0_i32 = arith.constant 0 : i32
    %c0_i32_0 = arith.constant 0 : i32
    %c0_i32_1 = arith.constant 0 : i32
    return %c0_i32, %c0_i32_0 : i32, i32
  }
  func.func @transform_17(%arg0: i32) -> (i32, i32) {
    %c0_i32 = arith.constant 0 : i32
    %c0_i32_0 = arith.constant 0 : i32
    %c0_i32_1 = arith.constant 0 : i32
    return %c0_i32, %c0_i32_0 : i32, i32
  }
  func.func @transform_18(%arg0: i32) -> (i32, i32) {
    %c0_i32 = arith.constant 0 : i32
    %c0_i32_0 = arith.constant 0 : i32
    %c0_i32_1 = arith.constant 0 : i32
    return %c0_i32, %c0_i32_0 : i32, i32
  }
  func.func @transform_19(%arg0: i32) -> (i32, i32) {
    %c0_i32 = arith.constant 0 : i32
    %c0_i32_0 = arith.constant 0 : i32
    %c0_i32_1 = arith.constant 0 : i32
    return %c0_i32, %c0_i32_0 : i32, i32
  }
  func.func @transform_20(%arg0: i32) -> (i32, i32) {
    %c0_i32 = arith.constant 0 : i32
    %c0_i32_0 = arith.constant 0 : i32
    %c0_i32_1 = arith.constant 0 : i32
    return %c0_i32, %c0_i32_0 : i32, i32
  }
}

</mosaic_0001>

<llo_original>
// kernel: tpu_custom_call.1
$region0: #{tpu_custom_call.1}
  #allocation0 [shape = 'u32[]', space=smem, size = 0x4, offset = 0x4, fixed_abs, tag = 'smem constant byte address 0x4 - core index']
  #allocation1 [shape = 'u32[144,128]{1,0:T(1,128)}', space=vmem, size = 0x12000, scoped, tag = 'internal scratch']
  %s0 = inlined_call_operand.hbm [shape: f32[16,32], index: 0, kind: input, shape index: {}]
  %s1 = inlined_call_operand.hbm [shape: f32[16,32], index: 1, kind: input, shape index: {}]
  %s2 = inlined_call_operand.hbm [shape: f32[16,16], index: 2, kind: input, shape index: {}]
  %s3 = inlined_call_operand.hbm [shape: f32[16,16], index: 3, kind: input, shape index: {}]
  %s4 = inlined_call_operand.vmem [shape: f32[32,96], index: 4, kind: input, shape index: {}]
  %s5 = inlined_call_operand.vmem [shape: f32[1,96], index: 5, kind: input, shape index: {}]
  %s6 = inlined_call_operand.vmem [shape: f32[32,32], index: 6, kind: input, shape index: {}]
  %s7 = inlined_call_operand.vmem [shape: f32[1,32], index: 7, kind: input, shape index: {}]
  %s8 = inlined_call_operand.vmem [shape: f32[32,32], index: 8, kind: input, shape index: {}]
  %s9 = inlined_call_operand.vmem [shape: f32[1,32], index: 9, kind: input, shape index: {}]
  %s10 = inlined_call_operand.hbm [shape: f32[32,64], index: 10, kind: input, shape index: {}]
  %s11 = inlined_call_operand.vmem [shape: f32[1,64], index: 11, kind: input, shape index: {}]
  %s12 = inlined_call_operand.hbm [shape: f32[32,32], index: 12, kind: input, shape index: {}]
  %s13 = inlined_call_operand.vmem [shape: f32[1,32], index: 13, kind: input, shape index: {}]
  %s14 = inlined_call_operand.vmem [shape: f32[2,32], index: 14, kind: input, shape index: {}]
  %s15 = inlined_call_operand.hbm [shape: f32[32,64], index: 15, kind: input, shape index: {}]
  %s16 = inlined_call_operand.vmem [shape: f32[1,64], index: 16, kind: input, shape index: {}]
  %s17 = inlined_call_operand.vmem [shape: f32[64,32], index: 17, kind: input, shape index: {}]
  %s18 = inlined_call_operand.vmem [shape: f32[1,32], index: 18, kind: input, shape index: {}]
  %s19 = inlined_call_operand.vmem [shape: f32[2,32], index: 19, kind: input, shape index: {}]
  %s20 = inlined_call_operand.hbm [shape: f32[16,32], index: 20, kind: output, shape index: {}]
  %s21 = sld [smem:[#allocation0]]
  $region118: #{tpu_custom_call.1} parent=0
    _
  %s23 = ssub.s32 1, %s21
  %s24 = scalar_select 0, %s23, %s21
  $region1: #{tpu_custom_call.1} parent=0
    #allocation2 [shape = 'u8[8192]{0}', space=vmem, size = 0x2000, scoped, tag = 'input window, operand 0, single buffered']
    #allocation3 [shape = 's32[1]{0}', space=sflag, size = 0x4, scoped, tag = 'scoped memory for tpu_custom_call.1']
    #allocation4 [shape = 's32[1]{0}', space=sflag, size = 0x4, scoped, tag = 'scoped memory for tpu_custom_call.1']
    #allocation5 [shape = 'u8[8192]{0}', space=vmem, size = 0x2000, scoped, tag = 'input window, operand 1, single buffered']
    #allocation6 [shape = 's32[1]{0}', space=sflag, size = 0x4, scoped, tag = 'scoped memory for tpu_custom_call.1']
    #allocation7 [shape = 'u8[8192]{0}', space=vmem, size = 0x2000, scoped, tag = 'input window, operand 2, single buffered']
    #allocation8 [shape = 'u8[8192]{0}', space=vmem, size = 0x2000, scoped, tag = 'input window, operand 3, single buffered']
    #allocation9 [shape = 's32[1]{0}', space=sflag, size = 0x4, scoped, tag = 'scoped memory for tpu_custom_call.1']
    #allocation10 [shape = 'u8[16384]{0}', space=vmem, size = 0x4000, scoped, tag = 'input window, operand 10, single buffered']
    #allocation11 [shape = 'u8[16384]{0}', space=vmem, size = 0x4000, scoped, tag = 'input window, operand 12, single buffered']
    #allocation12 [shape = 's32[1]{0}', space=sflag, size = 0x4, scoped, tag = 'scoped memory for tpu_custom_call.1']
    #allocation13 [shape = 'u8[16384]{0}', space=vmem, size = 0x4000, scoped, tag = 'input window, operand 15, single buffered']
    #allocation14 [shape = 'u8[8192]{0}', space=vmem, size = 0x2000, scoped, tag = 'output window, operand 0, single buffered']
    %25 = vsyncpa [#allocation3], 0
    %26 = vsyncpa [#allocation6], 0
    %27 = vsyncpa [#allocation9], 0
    %28 = vsyncpa [#allocation12], 0
    %29 = vsyncpa [#allocation4], 0
    // Predicated region
    $region2: #{tpu_custom_call.1} parent=1 // pred_check
      _
    $region3: #{tpu_custom_call.1} parent=1 // pred_check_branch
      %31 = sbr.rel (0) target = $region5
    $region4: #{tpu_custom_call.1} parent=1 // pred_region
      %s33 = ssub.s32 256, 256
      %34 = vsyncadd [#allocation3], %s33
      %s35 = sshll.u32 [#allocation2], 4
      %s36 = int_to_ptr.vmem [resolvable:$true] %s35
      %41 = dma.hbm_to_vmem [thread:$0]  %s0, 256, %s36, [#allocation3], 128, 128, 8
    $region5: #{tpu_custom_call.1} parent=1 // pred_fallthru
      _
    // Predicated region
    $region6: #{tpu_custom_call.1} parent=1 // pred_check
      _
    $region7: #{tpu_custom_call.1} parent=1 // pred_check_branch
      %43 = sbr.rel (0) target = $region9
    $region8: #{tpu_custom_call.1} parent=1 // pred_region
      %s45 = ssub.s32 256, 256
      %46 = vsyncadd [#allocation6], %s45
      %s47 = sshll.u32 [#allocation5], 4
      %s48 = int_to_ptr.vmem [resolvable:$true] %s47
      %53 = dma.hbm_to_vmem [thread:$0]  %s1, 256, %s48, [#allocation6], 128, 128, 8
    $region9: #{tpu_custom_call.1} parent=1 // pred_fallthru
      _
    // Predicated region
    $region10: #{tpu_custom_call.1} parent=1 // pred_check
      _
    $region11: #{tpu_custom_call.1} parent=1 // pred_check_branch
      %55 = sbr.rel (0) target = $region13
    $region12: #{tpu_custom_call.1} parent=1 // pred_region
      %s57 = ssub.s32 256, 256
      %58 = vsyncadd [#allocation6], %s57
      %s59 = sshll.u32 [#allocation7], 4
      %s60 = int_to_ptr.vmem [resolvable:$true] %s59
      %65 = dma.hbm_to_vmem [thread:$0]  %s2, 256, %s60, [#allocation6], 128, 128, 8
    $region13: #{tpu_custom_call.1} parent=1 // pred_fallthru
      _
    // Predicated region
    $region14: #{tpu_custom_call.1} parent=1 // pred_check
      _
    $region15: #{tpu_custom_call.1} parent=1 // pred_check_branch
      %67 = sbr.rel (0) target = $region17
    $region16: #{tpu_custom_call.1} parent=1 // pred_region
      %s69 = ssub.s32 256, 256
      %70 = vsyncadd [#allocation9], %s69
      %s71 = sshll.u32 [#allocation8], 4
      %s72 = int_to_ptr.vmem [resolvable:$true] %s71
      %77 = dma.hbm_to_vmem [thread:$0]  %s3, 256, %s72, [#allocation9], 128, 128, 8
    $region17: #{tpu_custom_call.1} parent=1 // pred_fallthru
      _
    // Predicated region
    $region18: #{tpu_custom_call.1} parent=1 // pred_check
      _
    $region19: #{tpu_custom_call.1} parent=1 // pred_check_branch
      %79 = sbr.rel (0) target = $region21
    $region20: #{tpu_custom_call.1} parent=1 // pred_region
      _
    $region21: #{tpu_custom_call.1} parent=1 // pred_fallthru
      _
    // Predicated region
    $region22: #{tpu_custom_call.1} parent=1 // pred_check
      _
    $region23: #{tpu_custom_call.1} parent=1 // pred_check_branch
      %81 = sbr.rel (0) target = $region25
    $region24: #{tpu_custom_call.1} parent=1 // pred_region
      _
    $region25: #{tpu_custom_call.1} parent=1 // pred_fallthru
      _
    // Predicated region
    $region26: #{tpu_custom_call.1} parent=1 // pred_check
      _
    $region27: #{tpu_custom_call.1} parent=1 // pred_check_branch
      %83 = sbr.rel (0) target = $region29
    $region28: #{tpu_custom_call.1} parent=1 // pred_region
      _
    $region29: #{tpu_custom_call.1} parent=1 // pred_fallthru
      _
    // Predicated region
    $region30: #{tpu_custom_call.1} parent=1 // pred_check
      _
    $region31: #{tpu_custom_call.1} parent=1 // pred_check_branch
      %85 = sbr.rel (0) target = $region33
    $region32: #{tpu_custom_call.1} parent=1 // pred_region
      _
    $region33: #{tpu_custom_call.1} parent=1 // pred_fallthru
      _
    // Predicated region
    $region34: #{tpu_custom_call.1} parent=1 // pred_check
      _
    $region35: #{tpu_custom_call.1} parent=1 // pred_check_branch
      %87 = sbr.rel (0) target = $region37
    $region36: #{tpu_custom_call.1} parent=1 // pred_region
      _
    $region37: #{tpu_custom_call.1} parent=1 // pred_fallthru
      _
    // Predicated region
    $region38: #{tpu_custom_call.1} parent=1 // pred_check
      _
    $region39: #{tpu_custom_call.1} parent=1 // pred_check_branch
      %89 = sbr.rel (0) target = $region41
    $region40: #{tpu_custom_call.1} parent=1 // pred_region
      _
    $region41: #{tpu_custom_call.1} parent=1 // pred_fallthru
      _
    // Predicated region
    $region42: #{tpu_custom_call.1} parent=1 // pred_check
      _
    $region43: #{tpu_custom_call.1} parent=1 // pred_check_branch
      %91 = sbr.rel (0) target = $region45
    $region44: #{tpu_custom_call.1} parent=1 // pred_region
      %s93 = ssub.s32 512, 512
      %94 = vsyncadd [#allocation9], %s93
      %s95 = sshll.u32 [#allocation10], 4
      %s96 = int_to_ptr.vmem [resolvable:$true] %s95
      %101 = dma.hbm_to_vmem [thread:$0]  %s10, 512, %s96, [#allocation9], 128, 128, 8
    $region45: #{tpu_custom_call.1} parent=1 // pred_fallthru
      _
    // Predicated region
    $region46: #{tpu_custom_call.1} parent=1 // pred_check
      _
    $region47: #{tpu_custom_call.1} parent=1 // pred_check_branch
      %103 = sbr.rel (0) target = $region49
    $region48: #{tpu_custom_call.1} parent=1 // pred_region
      _
    $region49: #{tpu_custom_call.1} parent=1 // pred_fallthru
      _
    // Predicated region
    $region50: #{tpu_custom_call.1} parent=1 // pred_check
      _
    $region51: #{tpu_custom_call.1} parent=1 // pred_check_branch
      %105 = sbr.rel (0) target = $region53
    $region52: #{tpu_custom_call.1} parent=1 // pred_region
      %s107 = ssub.s32 512, 512
      %108 = vsyncadd [#allocation12], %s107
      %s109 = sshll.u32 [#allocation11], 4
      %s110 = int_to_ptr.vmem [resolvable:$true] %s109
      %115 = dma.hbm_to_vmem [thread:$0]  %s12, 512, %s110, [#allocation12], 128, 128, 8
    $region53: #{tpu_custom_call.1} parent=1 // pred_fallthru
      _
    // Predicated region
    $region54: #{tpu_custom_call.1} parent=1 // pred_check
      _
    $region55: #{tpu_custom_call.1} parent=1 // pred_check_branch
      %117 = sbr.rel (0) target = $region57
    $region56: #{tpu_custom_call.1} parent=1 // pred_region
      _
    $region57: #{tpu_custom_call.1} parent=1 // pred_fallthru
      _
    // Predicated region
    $region58: #{tpu_custom_call.1} parent=1 // pred_check
      _
    $region59: #{tpu_custom_call.1} parent=1 // pred_check_branch
      %119 = sbr.rel (0) target = $region61
    $region60: #{tpu_custom_call.1} parent=1 // pred_region
      _
    $region61: #{tpu_custom_call.1} parent=1 // pred_fallthru
      _
    // Predicated region
    $region62: #{tpu_custom_call.1} parent=1 // pred_check
      _
    $region63: #{tpu_custom_call.1} parent=1 // pred_check_branch
      %121 = sbr.rel (0) target = $region65
    $region64: #{tpu_custom_call.1} parent=1 // pred_region
      %s123 = ssub.s32 512, 512
      %124 = vsyncadd [#allocation12], %s123
      %s125 = sshll.u32 [#allocation13], 4
      %s126 = int_to_ptr.vmem [resolvable:$true] %s125
      %131 = dma.hbm_to_vmem [thread:$0]  %s15, 512, %s126, [#allocation12], 128, 128, 8
    $region65: #{tpu_custom_call.1} parent=1 // pred_fallthru
      _
    // Predicated region
    $region66: #{tpu_custom_call.1} parent=1 // pred_check
      _
    $region67: #{tpu_custom_call.1} parent=1 // pred_check_branch
      %133 = sbr.rel (0) target = $region69
    $region68: #{tpu_custom_call.1} parent=1 // pred_region
      _
    $region69: #{tpu_custom_call.1} parent=1 // pred_fallthru
      _
    // Predicated region
    $region70: #{tpu_custom_call.1} parent=1 // pred_check
      _
    $region71: #{tpu_custom_call.1} parent=1 // pred_check_branch
      %135 = sbr.rel (0) target = $region73
    $region72: #{tpu_custom_call.1} parent=1 // pred_region
      _
    $region73: #{tpu_custom_call.1} parent=1 // pred_fallthru
      _
    // Predicated region
    $region74: #{tpu_custom_call.1} parent=1 // pred_check
      _
    $region75: #{tpu_custom_call.1} parent=1 // pred_check_branch
      %137 = sbr.rel (0) target = $region77
    $region76: #{tpu_custom_call.1} parent=1 // pred_region
      _
    $region77: #{tpu_custom_call.1} parent=1 // pred_fallthru
      _
    // Predicated region
    $region78: #{tpu_custom_call.1} parent=1 // pred_check
      _
    $region79: #{tpu_custom_call.1} parent=1 // pred_check_branch
      %139 = sbr.rel (0) target = $region81
    $region80: #{tpu_custom_call.1} parent=1 // pred_region
      _
    $region81: #{tpu_custom_call.1} parent=1 // pred_fallthru
      _
    // Predicated region
    $region82: #{tpu_custom_call.1} parent=1 // pred_check
      _
    $region83: #{tpu_custom_call.1} parent=1 // pred_check_branch
      %141 = sbr.rel (0) target = $region85
    $region84: #{tpu_custom_call.1} parent=1 // pred_region
      %142 = dma.done [#allocation3], 256
    $region85: #{tpu_custom_call.1} parent=1 // pred_fallthru
      _
    // Predicated region
    $region86: #{tpu_custom_call.1} parent=1 // pred_check
      _
    $region87: #{tpu_custom_call.1} parent=1 // pred_check_branch
      %144 = sbr.rel (0) target = $region89
    $region88: #{tpu_custom_call.1} parent=1 // pred_region
      %145 = dma.done [#allocation6], 256
    $region89: #{tpu_custom_call.1} parent=1 // pred_fallthru
      _
    // Predicated region
    $region90: #{tpu_custom_call.1} parent=1 // pred_check
      _
    $region91: #{tpu_custom_call.1} parent=1 // pred_check_branch
      %147 = sbr.rel (0) target = $region93
    $region92: #{tpu_custom_call.1} parent=1 // pred_region
      %148 = dma.done [#allocation6], 256
    $region93: #{tpu_custom_call.1} parent=1 // pred_fallthru
      _
    // Predicated region
    $region94: #{tpu_custom_call.1} parent=1 // pred_check
      _
    $region95: #{tpu_custom_call.1} parent=1 // pred_check_branch
      %150 = sbr.rel (0) target = $region97
    $region96: #{tpu_custom_call.1} parent=1 // pred_region
      %151 = dma.done [#allocation9], 256
    $region97: #{tpu_custom_call.1} parent=1 // pred_fallthru
      _
    // Predicated region
    $region98: #{tpu_custom_call.1} parent=1 // pred_check
      _
    $region99: #{tpu_custom_call.1} parent=1 // pred_check_branch
      %153 = sbr.rel (0) target = $region101
    $region100: #{tpu_custom_call.1} parent=1 // pred_region
      %154 = dma.done [#allocation9], 512
    $region101: #{tpu_custom_call.1} parent=1 // pred_fallthru
      _
    // Predicated region
    $region102: #{tpu_custom_call.1} parent=1 // pred_check
      _
    $region103: #{tpu_custom_call.1} parent=1 // pred_check_branch
      %156 = sbr.rel (0) target = $region105
    $region104: #{tpu_custom_call.1} parent=1 // pred_region
      %157 = dma.done [#allocation12], 512
    $region105: #{tpu_custom_call.1} parent=1 // pred_fallthru
      _
    // Predicated region
    $region106: #{tpu_custom_call.1} parent=1 // pred_check
      _
    $region107: #{tpu_custom_call.1} parent=1 // pred_check_branch
      %159 = sbr.rel (0) target = $region109
    $region108: #{tpu_custom_call.1} parent=1 // pred_region
      %160 = dma.done [#allocation12], 512
    $region109: #{tpu_custom_call.1} parent=1 // pred_fallthru
      _
    %v161 = vld [vmem:[#allocation2] sm:$0xff]
    %v162 = vld [vmem:[#allocation2 + $0x8] sm:$0xff]
    %v163 = vld [vmem:[#allocation5] sm:$0xff]
    %v164 = vld [vmem:[#allocation5 + $0x8] sm:$0xff]
    %v165 = vld [vmem:[#allocation7] sm:$0xff]
    %v166 = vld [vmem:[#allocation7 + $0x8] sm:$0xff]
    %v167 = vld [vmem:[#allocation8] sm:$0xff]
    %v168 = vld [vmem:[#allocation8 + $0x8] sm:$0xff]
    %v169 = vld [vmem:[%s14] sm:$0x1]
    %v170 = vld [vmem:[%s14 + $0x1] sm:$0x1]
    %v171 = vld [vmem:[%s19] sm:$0x1]
    %v172 = vld [vmem:[%s19 + $0x1] sm:$0x1]
    %v173 = vld [vmem:[%s4] sm:$0xff]
    %v174 = vld [vmem:[%s4 + $0x8] sm:$0xff]
    %v175 = vld [vmem:[%s4 + $0x10] sm:$0xff]
    %v176 = vld [vmem:[%s4 + $0x18] sm:$0xff]
    %v177 = vld [vmem:[%s5] sm:$0x1]
    %v179 = vlaneseq
    %v180 = vshrl.u32 %v179, 7
    %v181 = vsub.s32 0, %v180
    %v182 = vrot.slane %v177, %v181
    %vm184 = vcmask 261120
    %v186 = vsel %vm184, %v161, 0
    %v189 = vsel %vm184, %v162, 0
    %191 = vmatprep.subr.mxu0 0.0
    %192 = vmatpush1.msra.mxu0 0.0
    %193 = vmatprep.subr.mxu0 0.0
    %194 = vmatpush1.msra.mxu0 0.0
    %195 = vmatprep.subr.mxu0 0.0
    %196 = vmatpush1.msra.mxu0 0.0
    %197 = vmatprep.subr.mxu0 0.0
    %198 = vmatpush1.msra.mxu0 0.0
    %199 = vmatprep.subr.mxu0 0.0
    %200 = vmatpush1.msra.mxu0 0.0
    %201 = vmatprep.subr.mxu0 0.0
    %202 = vmatpush1.msra.mxu0 0.0
    %203 = vmatprep.subr.mxu0 0.0
    %204 = vmatpush1.msra.mxu0 0.0
    %205 = vmatprep.subr.mxu0 0.0
    %206 = vmatpush1.msra.mxu0 0.0
    %207 = vmatprep.subr.mxu0 0.0
    %208 = vmatpush1.msra.mxu0 0.0
    %209 = vmatprep.subr.mxu0 0.0
    %210 = vmatpush1.msra.mxu0 0.0
    %211 = vmatprep.subr.mxu0 0.0
    %212 = vmatpush1.msra.mxu0 0.0
    %213 = vmatprep.subr.mxu0 0.0
    %214 = vmatpush1.msra.mxu0 0.0
    %215 = vmatprep.subr.mxu0 0.0
    %216 = vmatpush1.msra.mxu0 %v176
    %217 = vmatprep.subr.mxu0 0.0
    %218 = vmatpush1.msra.mxu0 %v175
    %219 = vmatprep.subr.mxu0 0.0
    %220 = vmatpush1.msra.mxu0 %v174
    %221 = vmatprep.subr.mxu0 0.0
    %222 = vmatpush1.msra.mxu0 %v173
    %223 = vmatprep.subr.mxu0 0.0
    %224 = vmatpush2.msra.mxu0 0.0
    %225 = vmatprep.subr.mxu0 0.0
    %226 = vmatpush2.msra.mxu0 0.0
    %227 = vmatprep.subr.mxu0 0.0
    %228 = vmatpush2.msra.mxu0 0.0
    %229 = vmatprep.subr.mxu0 0.0
    %230 = vmatpush2.msra.mxu0 0.0
    %231 = vmatprep.subr.mxu0 0.0
    %232 = vmatpush2.msra.mxu0 0.0
    %233 = vmatprep.subr.mxu0 0.0
    %234 = vmatpush2.msra.mxu0 0.0
    %235 = vmatprep.subr.mxu0 0.0
    %236 = vmatpush2.msra.mxu0 0.0
    %237 = vmatprep.subr.mxu0 0.0
    %238 = vmatpush2.msra.mxu0 0.0
    %239 = vmatprep.subr.mxu0 0.0
    %240 = vmatpush2.msra.mxu0 0.0
    %241 = vmatprep.subr.mxu0 0.0
    %242 = vmatpush2.msra.mxu0 0.0
    %243 = vmatprep.subr.mxu0 0.0
    %244 = vmatpush2.msra.mxu0 0.0
    %245 = vmatprep.subr.mxu0 0.0
    %246 = vmatpush2.msra.mxu0 0.0
    %247 = vmatprep.subr.mxu0 0.0
    %248 = vmatpush2.msra.mxu0 0.0
    %249 = vmatprep.subr.mxu0 0.0
    %250 = vmatpush2.msra.mxu0 0.0
    %251 = vmatprep.subr.mxu0 0.0
    %252 = vmatpush2.msra.mxu0 0.0
    %253 = vmatprep.subr.mxu0 0.0
    %254 = vmatpush2.msra.mxu0 0.0
    %255 = vmatprep.mubr.f32.mxu0 0.0
    %256 = vmatmul.mubr.f32.gmra.mxu0 %v186
    %v257 = vpop.f32.mrf.mxu0
    %v258 = vadd.f32 %v182, %v257
    %v259 = vpop.f32.mrf.mxu0
    %260 = vmatprep.mubr.f32.mxu0 0.0
    %261 = vmatmul.mubr.f32.gmra.mxu0 %v189
    %v262 = vpop.f32.mrf.mxu0
    %v263 = vadd.f32 %v182, %v262
    %v264 = vpop.f32.mrf.mxu0
    %265 = vdwg.mxu0
    %v266 = vld [vmem:[%s6] sm:$0xff]
    %v267 = vld [vmem:[%s6 + $0x8] sm:$0xff]
    %v268 = vld [vmem:[%s6 + $0x10] sm:$0xff]
    %v269 = vld [vmem:[%s6 + $0x18] sm:$0xff]
    %272 = vrot.lane.b32.xlu0 %v258, 96
    %v273 = vpop.permute.xlu0 %272
    %274 = vrot.lane.b32.xlu0 %v263, 96
    %v275 = vpop.permute.xlu0 %274
    %vm276 = vcmask 64512
    %v277 = vsel %vm276, %v258, 0
    %v279 = vsel %vm276, %v263, 0
    %v281 = vsel %vm276, %v273, 0
    %v283 = vsel %vm276, %v275, 0
    %285 = vmatprep.subr.mxu0 0.0
    %286 = vmatpush1.xpose.msra.mxu0 0.0
    %287 = vmatprep.subr.mxu0 0.0
    %288 = vmatpush1.xpose.msra.mxu0 0.0
    %289 = vmatprep.subr.mxu0 0.0
    %290 = vmatpush1.xpose.msra.mxu0 0.0
    %291 = vmatprep.subr.mxu0 0.0
    %292 = vmatpush1.xpose.msra.mxu0 0.0
    %293 = vmatprep.subr.mxu0 0.0
    %294 = vmatpush1.xpose.msra.mxu0 0.0
    %295 = vmatprep.subr.mxu0 0.0
    %296 = vmatpush1.xpose.msra.mxu0 0.0
    %297 = vmatprep.subr.mxu0 0.0
    %298 = vmatpush1.xpose.msra.mxu0 0.0
    %299 = vmatprep.subr.mxu0 0.0
    %300 = vmatpush1.xpose.msra.mxu0 0.0
    %301 = vmatprep.subr.mxu0 0.0
    %302 = vmatpush1.xpose.msra.mxu0 0.0
    %303 = vmatprep.subr.mxu0 0.0
    %304 = vmatpush1.xpose.msra.mxu0 0.0
    %305 = vmatprep.subr.mxu0 0.0
    %306 = vmatpush1.xpose.msra.mxu0 0.0
    %307 = vmatprep.subr.mxu0 0.0
    %308 = vmatpush1.xpose.msra.mxu0 0.0
    %309 = vmatprep.subr.mxu0 0.0
    %310 = vmatpush1.xpose.msra.mxu0 0.0
    %311 = vmatprep.subr.mxu0 0.0
    %312 = vmatpush1.xpose.msra.mxu0 0.0
    %313 = vmatprep.subr.mxu0 0.0
    %314 = vmatpush1.xpose.msra.mxu0 %v283
    %315 = vmatprep.subr.mxu0 0.0
    %316 = vmatpush1.xpose.msra.mxu0 %v281
    %317 = vmatprep.subr.mxu0 0.0
    %318 = vmatpush2.xpose.msra.mxu0 0.0
    %319 = vmatprep.subr.mxu0 0.0
    %320 = vmatpush2.xpose.msra.mxu0 0.0
    %321 = vmatprep.subr.mxu0 0.0
    %322 = vmatpush2.xpose.msra.mxu0 0.0
    %323 = vmatprep.subr.mxu0 0.0
    %324 = vmatpush2.xpose.msra.mxu0 0.0
    %325 = vmatprep.subr.mxu0 0.0
    %326 = vmatpush2.xpose.msra.mxu0 0.0
    %327 = vmatprep.subr.mxu0 0.0
    %328 = vmatpush2.xpose.msra.mxu0 0.0
    %329 = vmatprep.subr.mxu0 0.0
    %330 = vmatpush2.xpose.msra.mxu0 0.0
    %331 = vmatprep.subr.mxu0 0.0
    %332 = vmatpush2.xpose.msra.mxu0 0.0
    %333 = vmatprep.subr.mxu0 0.0
    %334 = vmatpush2.xpose.msra.mxu0 0.0
    %335 = vmatprep.subr.mxu0 0.0
    %336 = vmatpush2.xpose.msra.mxu0 0.0
    %337 = vmatprep.subr.mxu0 0.0
    %338 = vmatpush2.xpose.msra.mxu0 0.0
    %339 = vmatprep.subr.mxu0 0.0
    %340 = vmatpush2.xpose.msra.mxu0 0.0
    %341 = vmatprep.subr.mxu0 0.0
    %342 = vmatpush2.xpose.msra.mxu0 0.0
    %343 = vmatprep.subr.mxu0 0.0
    %344 = vmatpush2.xpose.msra.mxu0 0.0
    %345 = vmatprep.subr.mxu0 0.0
    %346 = vmatpush2.xpose.msra.mxu0 0.0
    %347 = vmatprep.subr.mxu0 0.0
    %348 = vmatpush2.xpose.msra.mxu0 0.0
    %349 = vmatprep.mubr.f32.mxu0 0.0
    %350 = vmatmul.mubr.f32.gmra.mxu0 %v277
    %v351 = vpop.f32.mrf.mxu0
    %v352 = vadd.f32 %v165, %v351
    %v353 = vpop.f32.mrf.mxu0
    %354 = vmatprep.mubr.f32.mxu0 0.0
    %355 = vmatmul.mubr.f32.gmra.mxu0 %v279
    %v356 = vpop.f32.mrf.mxu0
    %v357 = vadd.f32 %v166, %v356
    %v358 = vpop.f32.mrf.mxu0
    %359 = vdwg.mxu0
    %vm360 = vcmask 130048
    %v361 = vsel %vm360, %v352, -inf
    %362 = vmax.xlane.f32.xlu0 %v361
    %v363 = vpop.xlane.xlu0 %362
    %v364 = vsel %vm360, %v357, -inf
    %365 = vmax.xlane.f32.xlu0 %v364
    %v366 = vpop.xlane.xlu0 %365
    %v367 = vsub.f32 %v352, %v363
    %v368 = vsub.f32 %v357, %v366
    %v369 = vmul.f32 %v367, 1.442695
    %v370 = vpow.pop %v369
    %v371 = vmul.f32 %v368, 1.442695
    %v372 = vpow.pop %v371
    %v373 = vsel %vm360, %v370, 0.0
    %374 = vadd.xlane.f32.xlu0 %v373
    %v375 = vpop.xlane.xlu0 %374
    %v376 = vsel %vm360, %v372, 0.0
    %377 = vadd.xlane.f32.xlu0 %v376
    %v378 = vpop.xlane.xlu0 %377
    %v379 = vrcp.pop %v375
    %v380 = vrcp.pop %v378
    %v381 = vmul.f32 %v370, %v379
    %v382 = vmul.f32 %v372, %v380
    %383 = vrot.lane.b32.xlu0 %v258, 64
    %v384 = vpop.permute.xlu0 %383
    %385 = vrot.lane.b32.xlu0 %v263, 64
    %v386 = vpop.permute.xlu0 %385
    %v390 = vsel %vm360, %v381, 0
    %v393 = vsel %vm360, %v382, 0
    %395 = vmatprep.subr.mxu0 0.0
    %396 = vmatpush1.msra.mxu0 0.0
    %397 = vmatprep.subr.mxu0 0.0
    %398 = vmatpush1.msra.mxu0 0.0
    %399 = vmatprep.subr.mxu0 0.0
    %400 = vmatpush1.msra.mxu0 0.0
    %401 = vmatprep.subr.mxu0 0.0
    %402 = vmatpush1.msra.mxu0 0.0
    %403 = vmatprep.subr.mxu0 0.0
    %404 = vmatpush1.msra.mxu0 0.0
    %405 = vmatprep.subr.mxu0 0.0
    %406 = vmatpush1.msra.mxu0 0.0
    %407 = vmatprep.subr.mxu0 0.0
    %408 = vmatpush1.msra.mxu0 0.0
    %409 = vmatprep.subr.mxu0 0.0
    %410 = vmatpush1.msra.mxu0 0.0
    %411 = vmatprep.subr.mxu0 0.0
    %412 = vmatpush1.msra.mxu0 0.0
    %413 = vmatprep.subr.mxu0 0.0
    %414 = vmatpush1.msra.mxu0 0.0
    %415 = vmatprep.subr.mxu0 0.0
    %416 = vmatpush1.msra.mxu0 0.0
    %417 = vmatprep.subr.mxu0 0.0
    %418 = vmatpush1.msra.mxu0 0.0
    %419 = vmatprep.subr.mxu0 0.0
    %420 = vmatpush1.msra.mxu0 0.0
    %421 = vmatprep.subr.mxu0 0.0
    %422 = vmatpush1.msra.mxu0 0.0
    %423 = vmatprep.subr.mxu0 0.0
    %424 = vmatpush1.msra.mxu0 %v386
    %425 = vmatprep.subr.mxu0 0.0
    %426 = vmatpush1.msra.mxu0 %v384
    %427 = vmatprep.subr.mxu0 0.0
    %428 = vmatpush2.msra.mxu0 0.0
    %429 = vmatprep.subr.mxu0 0.0
    %430 = vmatpush2.msra.mxu0 0.0
    %431 = vmatprep.subr.mxu0 0.0
    %432 = vmatpush2.msra.mxu0 0.0
    %433 = vmatprep.subr.mxu0 0.0
    %434 = vmatpush2.msra.mxu0 0.0
    %435 = vmatprep.subr.mxu0 0.0
    %436 = vmatpush2.msra.mxu0 0.0
    %437 = vmatprep.subr.mxu0 0.0
    %438 = vmatpush2.msra.mxu0 0.0
    %439 = vmatprep.subr.mxu0 0.0
    %440 = vmatpush2.msra.mxu0 0.0
    %441 = vmatprep.subr.mxu0 0.0
    %442 = vmatpush2.msra.mxu0 0.0
    %443 = vmatprep.subr.mxu0 0.0
    %444 = vmatpush2.msra.mxu0 0.0
    %445 = vmatprep.subr.mxu0 0.0
    %446 = vmatpush2.msra.mxu0 0.0
    %447 = vmatprep.subr.mxu0 0.0
    %448 = vmatpush2.msra.mxu0 0.0
    %449 = vmatprep.subr.mxu0 0.0
    %450 = vmatpush2.msra.mxu0 0.0
    %451 = vmatprep.subr.mxu0 0.0
    %452 = vmatpush2.msra.mxu0 0.0
    %453 = vmatprep.subr.mxu0 0.0
    %454 = vmatpush2.msra.mxu0 0.0
    %455 = vmatprep.subr.mxu0 0.0
    %456 = vmatpush2.msra.mxu0 0.0
    %457 = vmatprep.subr.mxu0 0.0
    %458 = vmatpush2.msra.mxu0 0.0
    %459 = vmatprep.mubr.f32.mxu0 0.0
    %460 = vmatmul.mubr.f32.gmra.mxu0 %v390
    %v461 = vpop.f32.mrf.mxu0
    %v462 = vadd.f32 0.0, %v461
    %v463 = vpop.f32.mrf.mxu0
    %464 = vmatprep.mubr.f32.mxu0 0.0
    %465 = vmatmul.mubr.f32.gmra.mxu0 %v393
    %v466 = vpop.f32.mrf.mxu0
    %v467 = vadd.f32 0.0, %v466
    %v468 = vpop.f32.mrf.mxu0
    %469 = vdwg.mxu0
    %470 = vrot.lane.b32.xlu0 %v258, 120
    %v471 = vpop.permute.xlu0 %470
    %472 = vrot.lane.b32.xlu0 %v263, 120
    %v473 = vpop.permute.xlu0 %472
    %474 = vrot.lane.b32.xlu0 %v258, 88
    %v475 = vpop.permute.xlu0 %474
    %476 = vrot.lane.b32.xlu0 %v263, 88
    %v477 = vpop.permute.xlu0 %476
    %v478 = vsel %vm276, %v471, 0
    %v480 = vsel %vm276, %v473, 0
    %v482 = vsel %vm276, %v475, 0
    %v484 = vsel %vm276, %v477, 0
    %486 = vmatprep.subr.mxu0 0.0
    %487 = vmatpush1.xpose.msra.mxu0 0.0
    %488 = vmatprep.subr.mxu0 0.0
    %489 = vmatpush1.xpose.msra.mxu0 0.0
    %490 = vmatprep.subr.mxu0 0.0
    %491 = vmatpush1.xpose.msra.mxu0 0.0
    %492 = vmatprep.subr.mxu0 0.0
    %493 = vmatpush1.xpose.msra.mxu0 0.0
    %494 = vmatprep.subr.mxu0 0.0
    %495 = vmatpush1.xpose.msra.mxu0 0.0
    %496 = vmatprep.subr.mxu0 0.0
    %497 = vmatpush1.xpose.msra.mxu0 0.0
    %498 = vmatprep.subr.mxu0 0.0
    %499 = vmatpush1.xpose.msra.mxu0 0.0
    %500 = vmatprep.subr.mxu0 0.0
    %501 = vmatpush1.xpose.msra.mxu0 0.0
    %502 = vmatprep.subr.mxu0 0.0
    %503 = vmatpush1.xpose.msra.mxu0 0.0
    %504 = vmatprep.subr.mxu0 0.0
    %505 = vmatpush1.xpose.msra.mxu0 0.0
    %506 = vmatprep.subr.mxu0 0.0
    %507 = vmatpush1.xpose.msra.mxu0 0.0
    %508 = vmatprep.subr.mxu0 0.0
    %509 = vmatpush1.xpose.msra.mxu0 0.0
    %510 = vmatprep.subr.mxu0 0.0
    %511 = vmatpush1.xpose.msra.mxu0 0.0
    %512 = vmatprep.subr.mxu0 0.0
    %513 = vmatpush1.xpose.msra.mxu0 0.0
    %514 = vmatprep.subr.mxu0 0.0
    %515 = vmatpush1.xpose.msra.mxu0 %v484
    %516 = vmatprep.subr.mxu0 0.0
    %517 = vmatpush1.xpose.msra.mxu0 %v482
    %518 = vmatprep.subr.mxu0 0.0
    %519 = vmatpush2.xpose.msra.mxu0 0.0
    %520 = vmatprep.subr.mxu0 0.0
    %521 = vmatpush2.xpose.msra.mxu0 0.0
    %522 = vmatprep.subr.mxu0 0.0
    %523 = vmatpush2.xpose.msra.mxu0 0.0
    %524 = vmatprep.subr.mxu0 0.0
    %525 = vmatpush2.xpose.msra.mxu0 0.0
    %526 = vmatprep.subr.mxu0 0.0
    %527 = vmatpush2.xpose.msra.mxu0 0.0
    %528 = vmatprep.subr.mxu0 0.0
    %529 = vmatpush2.xpose.msra.mxu0 0.0
    %530 = vmatprep.subr.mxu0 0.0
    %531 = vmatpush2.xpose.msra.mxu0 0.0
    %532 = vmatprep.subr.mxu0 0.0
    %533 = vmatpush2.xpose.msra.mxu0 0.0
    %534 = vmatprep.subr.mxu0 0.0
    %535 = vmatpush2.xpose.msra.mxu0 0.0
    %536 = vmatprep.subr.mxu0 0.0
    %537 = vmatpush2.xpose.msra.mxu0 0.0
    %538 = vmatprep.subr.mxu0 0.0
    %539 = vmatpush2.xpose.msra.mxu0 0.0
    %540 = vmatprep.subr.mxu0 0.0
    %541 = vmatpush2.xpose.msra.mxu0 0.0
    %542 = vmatprep.subr.mxu0 0.0
    %543 = vmatpush2.xpose.msra.mxu0 0.0
    %544 = vmatprep.subr.mxu0 0.0
    %545 = vmatpush2.xpose.msra.mxu0 0.0
    %546 = vmatprep.subr.mxu0 0.0
    %547 = vmatpush2.xpose.msra.mxu0 0.0
    %548 = vmatprep.subr.mxu0 0.0
    %549 = vmatpush2.xpose.msra.mxu0 0.0
    %550 = vmatprep.mubr.f32.mxu0 0.0
    %551 = vmatmul.mubr.f32.gmra.mxu0 %v478
    %v552 = vpop.f32.mrf.mxu0
    %v553 = vadd.f32 %v165, %v552
    %v554 = vpop.f32.mrf.mxu0
    %555 = vmatprep.mubr.f32.mxu0 0.0
    %556 = vmatmul.mubr.f32.gmra.mxu0 %v480
    %v557 = vpop.f32.mrf.mxu0
    %v558 = vadd.f32 %v166, %v557
    %v559 = vpop.f32.mrf.mxu0
    %560 = vdwg.mxu0
    %v561 = vsel %vm360, %v553, -inf
    %562 = vmax.xlane.f32.xlu0 %v561
    %v563 = vpop.xlane.xlu0 %562
    %v564 = vsel %vm360, %v558, -inf
    %565 = vmax.xlane.f32.xlu0 %v564
    %v566 = vpop.xlane.xlu0 %565
    %v567 = vsub.f32 %v553, %v563
    %v568 = vsub.f32 %v558, %v566
    %v569 = vmul.f32 %v567, 1.442695
    %v570 = vpow.pop %v569
    %v571 = vmul.f32 %v568, 1.442695
    %v572 = vpow.pop %v571
    %v573 = vsel %vm360, %v570, 0.0
    %574 = vadd.xlane.f32.xlu0 %v573
    %v575 = vpop.xlane.xlu0 %574
    %v576 = vsel %vm360, %v572, 0.0
    %577 = vadd.xlane.f32.xlu0 %v576
    %v578 = vpop.xlane.xlu0 %577
    %v579 = vrcp.pop %v575
    %v580 = vrcp.pop %v578
    %v581 = vmul.f32 %v570, %v579
    %v582 = vmul.f32 %v572, %v580
    %583 = vrot.lane.b32.xlu0 %v258, 56
    %v584 = vpop.permute.xlu0 %583
    %585 = vrot.lane.b32.xlu0 %v263, 56
    %v586 = vpop.permute.xlu0 %585
    %v590 = vsel %vm360, %v581, 0
    %v593 = vsel %vm360, %v582, 0
    %595 = vmatprep.subr.mxu0 0.0
    %596 = vmatpush1.msra.mxu0 0.0
    %597 = vmatprep.subr.mxu0 0.0
    %598 = vmatpush1.msra.mxu0 0.0
    %599 = vmatprep.subr.mxu0 0.0
    %600 = vmatpush1.msra.mxu0 0.0
    %601 = vmatprep.subr.mxu0 0.0
    %602 = vmatpush1.msra.mxu0 0.0
    %603 = vmatprep.subr.mxu0 0.0
    %604 = vmatpush1.msra.mxu0 0.0
    %605 = vmatprep.subr.mxu0 0.0
    %606 = vmatpush1.msra.mxu0 0.0
    %607 = vmatprep.subr.mxu0 0.0
    %608 = vmatpush1.msra.mxu0 0.0
    %609 = vmatprep.subr.mxu0 0.0
    %610 = vmatpush1.msra.mxu0 0.0
    %611 = vmatprep.subr.mxu0 0.0
    %612 = vmatpush1.msra.mxu0 0.0
    %613 = vmatprep.subr.mxu0 0.0
    %614 = vmatpush1.msra.mxu0 0.0
    %615 = vmatprep.subr.mxu0 0.0
    %616 = vmatpush1.msra.mxu0 0.0
    %617 = vmatprep.subr.mxu0 0.0
    %618 = vmatpush1.msra.mxu0 0.0
    %619 = vmatprep.subr.mxu0 0.0
    %620 = vmatpush1.msra.mxu0 0.0
    %621 = vmatprep.subr.mxu0 0.0
    %622 = vmatpush1.msra.mxu0 0.0
    %623 = vmatprep.subr.mxu0 0.0
    %624 = vmatpush1.msra.mxu0 %v586
    %625 = vmatprep.subr.mxu0 0.0
    %626 = vmatpush1.msra.mxu0 %v584
    %627 = vmatprep.subr.mxu0 0.0
    %628 = vmatpush2.msra.mxu0 0.0
    %629 = vmatprep.subr.mxu0 0.0
    %630 = vmatpush2.msra.mxu0 0.0
    %631 = vmatprep.subr.mxu0 0.0
    %632 = vmatpush2.msra.mxu0 0.0
    %633 = vmatprep.subr.mxu0 0.0
    %634 = vmatpush2.msra.mxu0 0.0
    %635 = vmatprep.subr.mxu0 0.0
    %636 = vmatpush2.msra.mxu0 0.0
    %637 = vmatprep.subr.mxu0 0.0
    %638 = vmatpush2.msra.mxu0 0.0
    %639 = vmatprep.subr.mxu0 0.0
    %640 = vmatpush2.msra.mxu0 0.0
    %641 = vmatprep.subr.mxu0 0.0
    %642 = vmatpush2.msra.mxu0 0.0
    %643 = vmatprep.subr.mxu0 0.0
    %644 = vmatpush2.msra.mxu0 0.0
    %645 = vmatprep.subr.mxu0 0.0
    %646 = vmatpush2.msra.mxu0 0.0
    %647 = vmatprep.subr.mxu0 0.0
    %648 = vmatpush2.msra.mxu0 0.0
    %649 = vmatprep.subr.mxu0 0.0
    %650 = vmatpush2.msra.mxu0 0.0
    %651 = vmatprep.subr.mxu0 0.0
    %652 = vmatpush2.msra.mxu0 0.0
    %653 = vmatprep.subr.mxu0 0.0
    %654 = vmatpush2.msra.mxu0 0.0
    %655 = vmatprep.subr.mxu0 0.0
    %656 = vmatpush2.msra.mxu0 0.0
    %657 = vmatprep.subr.mxu0 0.0
    %658 = vmatpush2.msra.mxu0 0.0
    %659 = vmatprep.mubr.f32.mxu0 0.0
    %660 = vmatmul.mubr.f32.gmra.mxu0 %v590
    %v661 = vpop.f32.mrf.mxu0
    %v662 = vadd.f32 0.0, %v661
    %v663 = vpop.f32.mrf.mxu0
    %664 = vmatprep.mubr.f32.mxu0 0.0
    %665 = vmatmul.mubr.f32.gmra.mxu0 %v593
    %v666 = vpop.f32.mrf.mxu0
    %v667 = vadd.f32 0.0, %v666
    %v668 = vpop.f32.mrf.mxu0
    %669 = vdwg.mxu0
    %v671 = vsel %vm276, %v662, 0
    %v674 = vsel %vm276, %v667, 0
    %676 = vmatprep.subr.mxu0 0.0
    %677 = vmatpush1.msra.mxu0 0.0
    %678 = vmatprep.subr.mxu0 0.0
    %679 = vmatpush1.msra.mxu0 0.0
    %680 = vmatprep.subr.mxu0 0.0
    %681 = vmatpush1.msra.mxu0 0.0
    %682 = vmatprep.subr.mxu0 0.0
    %683 = vmatpush1.msra.mxu0 0.0
    %684 = vmatprep.subr.mxu0 0.0
    %685 = vmatpush1.msra.mxu0 0.0
    %686 = vmatprep.subr.mxu0 0.0
    %687 = vmatpush1.msra.mxu0 0.0
    %688 = vmatprep.subr.mxu0 0.0
    %689 = vmatpush1.msra.mxu0 0.0
    %690 = vmatprep.subr.mxu0 0.0
    %691 = vmatpush1.msra.mxu0 0.0
    %692 = vmatprep.subr.mxu0 0.0
    %693 = vmatpush1.msra.mxu0 0.0
    %694 = vmatprep.subr.mxu0 0.0
    %695 = vmatpush1.msra.mxu0 0.0
    %696 = vmatprep.subr.mxu0 0.0
    %697 = vmatpush1.msra.mxu0 0.0
    %698 = vmatprep.subr.mxu0 0.0
    %699 = vmatpush1.msra.mxu0 0.0
    %700 = vmatprep.subr.mxu0 0.0
    %701 = vmatpush1.msra.mxu0 0.0
    %702 = vmatprep.subr.mxu0 0.0
    %703 = vmatpush1.msra.mxu0 0.0
    %704 = vmatprep.subr.mxu0 0.0
    %705 = vmatpush1.msra.mxu0 0.0
    %706 = vmatprep.subr.mxu0 0.0
    %707 = vmatpush1.msra.mxu0 %v267
    %708 = vmatprep.subr.mxu0 0.0
    %709 = vmatpush2.msra.mxu0 0.0
    %710 = vmatprep.subr.mxu0 0.0
    %711 = vmatpush2.msra.mxu0 0.0
    %712 = vmatprep.subr.mxu0 0.0
    %713 = vmatpush2.msra.mxu0 0.0
    %714 = vmatprep.subr.mxu0 0.0
    %715 = vmatpush2.msra.mxu0 0.0
    %716 = vmatprep.subr.mxu0 0.0
    %717 = vmatpush2.msra.mxu0 0.0
    %718 = vmatprep.subr.mxu0 0.0
    %719 = vmatpush2.msra.mxu0 0.0
    %720 = vmatprep.subr.mxu0 0.0
    %721 = vmatpush2.msra.mxu0 0.0
    %722 = vmatprep.subr.mxu0 0.0
    %723 = vmatpush2.msra.mxu0 0.0
    %724 = vmatprep.subr.mxu0 0.0
    %725 = vmatpush2.msra.mxu0 0.0
    %726 = vmatprep.subr.mxu0 0.0
    %727 = vmatpush2.msra.mxu0 0.0
    %728 = vmatprep.subr.mxu0 0.0
    %729 = vmatpush2.msra.mxu0 0.0
    %730 = vmatprep.subr.mxu0 0.0
    %731 = vmatpush2.msra.mxu0 0.0
    %732 = vmatprep.subr.mxu0 0.0
    %733 = vmatpush2.msra.mxu0 0.0
    %734 = vmatprep.subr.mxu0 0.0
    %735 = vmatpush2.msra.mxu0 0.0
    %736 = vmatprep.subr.mxu0 0.0
    %737 = vmatpush2.msra.mxu0 0.0
    %738 = vmatprep.subr.mxu0 0.0
    %739 = vmatpush2.msra.mxu0 0.0
    %740 = vmatprep.mubr.f32.mxu0 0.0
    %741 = vmatmul.mubr.f32.gmra.mxu0 %v671
    %v742 = vpop.f32.mrf.mxu0
    %v743 = vadd.f32 0.0, %v742
    %v744 = vpop.f32.mrf.mxu0
    %745 = vmatprep.mubr.f32.mxu0 0.0
    %746 = vmatmul.mubr.f32.gmra.mxu0 %v674
    %v747 = vpop.f32.mrf.mxu0
    %v748 = vadd.f32 0.0, %v747
    %v749 = vpop.f32.mrf.mxu0
    %750 = vdwg.mxu0
    %v752 = vsel %vm276, %v462, 0
    %v755 = vsel %vm276, %v467, 0
    %757 = vmatprep.subr.mxu0 0.0
    %758 = vmatpush1.msra.mxu0 0.0
    %759 = vmatprep.subr.mxu0 0.0
    %760 = vmatpush1.msra.mxu0 0.0
    %761 = vmatprep.subr.mxu0 0.0
    %762 = vmatpush1.msra.mxu0 0.0
    %763 = vmatprep.subr.mxu0 0.0
    %764 = vmatpush1.msra.mxu0 0.0
    %765 = vmatprep.subr.mxu0 0.0
    %766 = vmatpush1.msra.mxu0 0.0
    %767 = vmatprep.subr.mxu0 0.0
    %768 = vmatpush1.msra.mxu0 0.0
    %769 = vmatprep.subr.mxu0 0.0
    %770 = vmatpush1.msra.mxu0 0.0
    %771 = vmatprep.subr.mxu0 0.0
    %772 = vmatpush1.msra.mxu0 0.0
    %773 = vmatprep.subr.mxu0 0.0
    %774 = vmatpush1.msra.mxu0 0.0
    %775 = vmatprep.subr.mxu0 0.0
    %776 = vmatpush1.msra.mxu0 0.0
    %777 = vmatprep.subr.mxu0 0.0
    %778 = vmatpush1.msra.mxu0 0.0
    %779 = vmatprep.subr.mxu0 0.0
    %780 = vmatpush1.msra.mxu0 0.0
    %781 = vmatprep.subr.mxu0 0.0
    %782 = vmatpush1.msra.mxu0 0.0
    %783 = vmatprep.subr.mxu0 0.0
    %784 = vmatpush1.msra.mxu0 0.0
    %785 = vmatprep.subr.mxu0 0.0
    %786 = vmatpush1.msra.mxu0 0.0
    %787 = vmatprep.subr.mxu0 0.0
    %788 = vmatpush1.msra.mxu0 %v266
    %789 = vmatprep.subr.mxu0 0.0
    %790 = vmatpush2.msra.mxu0 0.0
    %791 = vmatprep.subr.mxu0 0.0
    %792 = vmatpush2.msra.mxu0 0.0
    %793 = vmatprep.subr.mxu0 0.0
    %794 = vmatpush2.msra.mxu0 0.0
    %795 = vmatprep.subr.mxu0 0.0
    %796 = vmatpush2.msra.mxu0 0.0
    %797 = vmatprep.subr.mxu0 0.0
    %798 = vmatpush2.msra.mxu0 0.0
    %799 = vmatprep.subr.mxu0 0.0
    %800 = vmatpush2.msra.mxu0 0.0
    %801 = vmatprep.subr.mxu0 0.0
    %802 = vmatpush2.msra.mxu0 0.0
    %803 = vmatprep.subr.mxu0 0.0
    %804 = vmatpush2.msra.mxu0 0.0
    %805 = vmatprep.subr.mxu0 0.0
    %806 = vmatpush2.msra.mxu0 0.0
    %807 = vmatprep.subr.mxu0 0.0
    %808 = vmatpush2.msra.mxu0 0.0
    %809 = vmatprep.subr.mxu0 0.0
    %810 = vmatpush2.msra.mxu0 0.0
    %811 = vmatprep.subr.mxu0 0.0
    %812 = vmatpush2.msra.mxu0 0.0
    %813 = vmatprep.subr.mxu0 0.0
    %814 = vmatpush2.msra.mxu0 0.0
    %815 = vmatprep.subr.mxu0 0.0
    %816 = vmatpush2.msra.mxu0 0.0
    %817 = vmatprep.subr.mxu0 0.0
    %818 = vmatpush2.msra.mxu0 0.0
    %819 = vmatprep.subr.mxu0 0.0
    %820 = vmatpush2.msra.mxu0 0.0
    %821 = vmatprep.mubr.f32.mxu0 0.0
    %822 = vmatmul.mubr.f32.gmra.mxu0 %v752
    %v823 = vpop.f32.mrf.mxu0
    %v824 = vadd.f32 %v743, %v823
    %v825 = vpop.f32.mrf.mxu0
    %826 = vmatprep.mubr.f32.mxu0 0.0
    %827 = vmatmul.mubr.f32.gmra.mxu0 %v755
    %v828 = vpop.f32.mrf.mxu0
    %v829 = vadd.f32 %v748, %v828
    %v830 = vpop.f32.mrf.mxu0
    %831 = vdwg.mxu0
    %832 = vrot.lane.b32.xlu0 %v258, 112
    %v833 = vpop.permute.xlu0 %832
    %834 = vrot.lane.b32.xlu0 %v263, 112
    %v835 = vpop.permute.xlu0 %834
    %836 = vrot.lane.b32.xlu0 %v258, 80
    %v837 = vpop.permute.xlu0 %836
    %838 = vrot.lane.b32.xlu0 %v263, 80
    %v839 = vpop.permute.xlu0 %838
    %v840 = vsel %vm276, %v833, 0
    %v842 = vsel %vm276, %v835, 0
    %v844 = vsel %vm276, %v837, 0
    %v846 = vsel %vm276, %v839, 0
    %848 = vmatprep.subr.mxu0 0.0
    %849 = vmatpush1.xpose.msra.mxu0 0.0
    %850 = vmatprep.subr.mxu0 0.0
    %851 = vmatpush1.xpose.msra.mxu0 0.0
    %852 = vmatprep.subr.mxu0 0.0
    %853 = vmatpush1.xpose.msra.mxu0 0.0
    %854 = vmatprep.subr.mxu0 0.0
    %855 = vmatpush1.xpose.msra.mxu0 0.0
    %856 = vmatprep.subr.mxu0 0.0
    %857 = vmatpush1.xpose.msra.mxu0 0.0
    %858 = vmatprep.subr.mxu0 0.0
    %859 = vmatpush1.xpose.msra.mxu0 0.0
    %860 = vmatprep.subr.mxu0 0.0
    %861 = vmatpush1.xpose.msra.mxu0 0.0
    %862 = vmatprep.subr.mxu0 0.0
    %863 = vmatpush1.xpose.msra.mxu0 0.0
    %864 = vmatprep.subr.mxu0 0.0
    %865 = vmatpush1.xpose.msra.mxu0 0.0
    %866 = vmatprep.subr.mxu0 0.0
    %867 = vmatpush1.xpose.msra.mxu0 0.0
    %868 = vmatprep.subr.mxu0 0.0
    %869 = vmatpush1.xpose.msra.mxu0 0.0
    %870 = vmatprep.subr.mxu0 0.0
    %871 = vmatpush1.xpose.msra.mxu0 0.0
    %872 = vmatprep.subr.mxu0 0.0
    %873 = vmatpush1.xpose.msra.mxu0 0.0
    %874 = vmatprep.subr.mxu0 0.0
    %875 = vmatpush1.xpose.msra.mxu0 0.0
    %876 = vmatprep.subr.mxu0 0.0
    %877 = vmatpush1.xpose.msra.mxu0 %v846
    %878 = vmatprep.subr.mxu0 0.0
    %879 = vmatpush1.xpose.msra.mxu0 %v844
    %880 = vmatprep.subr.mxu0 0.0
    %881 = vmatpush2.xpose.msra.mxu0 0.0
    %882 = vmatprep.subr.mxu0 0.0
    %883 = vmatpush2.xpose.msra.mxu0 0.0
    %884 = vmatprep.subr.mxu0 0.0
    %885 = vmatpush2.xpose.msra.mxu0 0.0
    %886 = vmatprep.subr.mxu0 0.0
    %887 = vmatpush2.xpose.msra.mxu0 0.0
    %888 = vmatprep.subr.mxu0 0.0
    %889 = vmatpush2.xpose.msra.mxu0 0.0
    %890 = vmatprep.subr.mxu0 0.0
    %891 = vmatpush2.xpose.msra.mxu0 0.0
    %892 = vmatprep.subr.mxu0 0.0
    %893 = vmatpush2.xpose.msra.mxu0 0.0
    %894 = vmatprep.subr.mxu0 0.0
    %895 = vmatpush2.xpose.msra.mxu0 0.0
    %896 = vmatprep.subr.mxu0 0.0
    %897 = vmatpush2.xpose.msra.mxu0 0.0
    %898 = vmatprep.subr.mxu0 0.0
    %899 = vmatpush2.xpose.msra.mxu0 0.0
    %900 = vmatprep.subr.mxu0 0.0
    %901 = vmatpush2.xpose.msra.mxu0 0.0
    %902 = vmatprep.subr.mxu0 0.0
    %903 = vmatpush2.xpose.msra.mxu0 0.0
    %904 = vmatprep.subr.mxu0 0.0
    %905 = vmatpush2.xpose.msra.mxu0 0.0
    %906 = vmatprep.subr.mxu0 0.0
    %907 = vmatpush2.xpose.msra.mxu0 0.0
    %908 = vmatprep.subr.mxu0 0.0
    %909 = vmatpush2.xpose.msra.mxu0 0.0
    %910 = vmatprep.subr.mxu0 0.0
    %911 = vmatpush2.xpose.msra.mxu0 0.0
    %912 = vmatprep.mubr.f32.mxu0 0.0
    %913 = vmatmul.mubr.f32.gmra.mxu0 %v840
    %v914 = vpop.f32.mrf.mxu0
    %v915 = vadd.f32 %v165, %v914
    %v916 = vpop.f32.mrf.mxu0
    %917 = vmatprep.mubr.f32.mxu0 0.0
    %918 = vmatmul.mubr.f32.gmra.mxu0 %v842
    %v919 = vpop.f32.mrf.mxu0
    %v920 = vadd.f32 %v166, %v919
    %v921 = vpop.f32.mrf.mxu0
    %922 = vdwg.mxu0
    %v923 = vsel %vm360, %v915, -inf
    %924 = vmax.xlane.f32.xlu0 %v923
    %v925 = vpop.xlane.xlu0 %924
    %v926 = vsel %vm360, %v920, -inf
    %927 = vmax.xlane.f32.xlu0 %v926
    %v928 = vpop.xlane.xlu0 %927
    %v929 = vsub.f32 %v915, %v925
    %v930 = vsub.f32 %v920, %v928
    %v931 = vmul.f32 %v929, 1.442695
    %v932 = vpow.pop %v931
    %v933 = vmul.f32 %v930, 1.442695
    %v934 = vpow.pop %v933
    %v935 = vsel %vm360, %v932, 0.0
    %936 = vadd.xlane.f32.xlu0 %v935
    %v937 = vpop.xlane.xlu0 %936
    %v938 = vsel %vm360, %v934, 0.0
    %939 = vadd.xlane.f32.xlu0 %v938
    %v940 = vpop.xlane.xlu0 %939
    %v941 = vrcp.pop %v937
    %v942 = vrcp.pop %v940
    %v943 = vmul.f32 %v932, %v941
    %v944 = vmul.f32 %v934, %v942
    %945 = vrot.lane.b32.xlu0 %v258, 48
    %v946 = vpop.permute.xlu0 %945
    %947 = vrot.lane.b32.xlu0 %v263, 48
    %v948 = vpop.permute.xlu0 %947
    %v952 = vsel %vm360, %v943, 0
    %v955 = vsel %vm360, %v944, 0
    %957 = vmatprep.subr.mxu0 0.0
    %958 = vmatpush1.msra.mxu0 0.0
    %959 = vmatprep.subr.mxu0 0.0
    %960 = vmatpush1.msra.mxu0 0.0
    %961 = vmatprep.subr.mxu0 0.0
    %962 = vmatpush1.msra.mxu0 0.0
    %963 = vmatprep.subr.mxu0 0.0
    %964 = vmatpush1.msra.mxu0 0.0
    %965 = vmatprep.subr.mxu0 0.0
    %966 = vmatpush1.msra.mxu0 0.0
    %967 = vmatprep.subr.mxu0 0.0
    %968 = vmatpush1.msra.mxu0 0.0
    %969 = vmatprep.subr.mxu0 0.0
    %970 = vmatpush1.msra.mxu0 0.0
    %971 = vmatprep.subr.mxu0 0.0
    %972 = vmatpush1.msra.mxu0 0.0
    %973 = vmatprep.subr.mxu0 0.0
    %974 = vmatpush1.msra.mxu0 0.0
    %975 = vmatprep.subr.mxu0 0.0
    %976 = vmatpush1.msra.mxu0 0.0
    %977 = vmatprep.subr.mxu0 0.0
    %978 = vmatpush1.msra.mxu0 0.0
    %979 = vmatprep.subr.mxu0 0.0
    %980 = vmatpush1.msra.mxu0 0.0
    %981 = vmatprep.subr.mxu0 0.0
    %982 = vmatpush1.msra.mxu0 0.0
    %983 = vmatprep.subr.mxu0 0.0
    %984 = vmatpush1.msra.mxu0 0.0
    %985 = vmatprep.subr.mxu0 0.0
    %986 = vmatpush1.msra.mxu0 %v948
    %987 = vmatprep.subr.mxu0 0.0
    %988 = vmatpush1.msra.mxu0 %v946
    %989 = vmatprep.subr.mxu0 0.0
    %990 = vmatpush2.msra.mxu0 0.0
    %991 = vmatprep.subr.mxu0 0.0
    %992 = vmatpush2.msra.mxu0 0.0
    %993 = vmatprep.subr.mxu0 0.0
    %994 = vmatpush2.msra.mxu0 0.0
    %995 = vmatprep.subr.mxu0 0.0
    %996 = vmatpush2.msra.mxu0 0.0
    %997 = vmatprep.subr.mxu0 0.0
    %998 = vmatpush2.msra.mxu0 0.0
    %999 = vmatprep.subr.mxu0 0.0
    %1000 = vmatpush2.msra.mxu0 0.0
    %1001 = vmatprep.subr.mxu0 0.0
    %1002 = vmatpush2.msra.mxu0 0.0
    %1003 = vmatprep.subr.mxu0 0.0
    %1004 = vmatpush2.msra.mxu0 0.0
    %1005 = vmatprep.subr.mxu0 0.0
    %1006 = vmatpush2.msra.mxu0 0.0
    %1007 = vmatprep.subr.mxu0 0.0
    %1008 = vmatpush2.msra.mxu0 0.0
    %1009 = vmatprep.subr.mxu0 0.0
    %1010 = vmatpush2.msra.mxu0 0.0
    %1011 = vmatprep.subr.mxu0 0.0
    %1012 = vmatpush2.msra.mxu0 0.0
    %1013 = vmatprep.subr.mxu0 0.0
    %1014 = vmatpush2.msra.mxu0 0.0
    %1015 = vmatprep.subr.mxu0 0.0
    %1016 = vmatpush2.msra.mxu0 0.0
    %1017 = vmatprep.subr.mxu0 0.0
    %1018 = vmatpush2.msra.mxu0 0.0
    %1019 = vmatprep.subr.mxu0 0.0
    %1020 = vmatpush2.msra.mxu0 0.0
    %1021 = vmatprep.mubr.f32.mxu0 0.0
    %1022 = vmatmul.mubr.f32.gmra.mxu0 %v952
    %v1023 = vpop.f32.mrf.mxu0
    %v1024 = vadd.f32 0.0, %v1023
    %v1025 = vpop.f32.mrf.mxu0
    %1026 = vmatprep.mubr.f32.mxu0 0.0
    %1027 = vmatmul.mubr.f32.gmra.mxu0 %v955
    %v1028 = vpop.f32.mrf.mxu0
    %v1029 = vadd.f32 0.0, %v1028
    %v1030 = vpop.f32.mrf.mxu0
    %1031 = vdwg.mxu0
    %v1033 = vsel %vm276, %v1024, 0
    %v1036 = vsel %vm276, %v1029, 0
    %1038 = vmatprep.subr.mxu0 0.0
    %1039 = vmatpush1.msra.mxu0 0.0
    %1040 = vmatprep.subr.mxu0 0.0
    %1041 = vmatpush1.msra.mxu0 0.0
    %1042 = vmatprep.subr.mxu0 0.0
    %1043 = vmatpush1.msra.mxu0 0.0
    %1044 = vmatprep.subr.mxu0 0.0
    %1045 = vmatpush1.msra.mxu0 0.0
    %1046 = vmatprep.subr.mxu0 0.0
    %1047 = vmatpush1.msra.mxu0 0.0
    %1048 = vmatprep.subr.mxu0 0.0
    %1049 = vmatpush1.msra.mxu0 0.0
    %1050 = vmatprep.subr.mxu0 0.0
    %1051 = vmatpush1.msra.mxu0 0.0
    %1052 = vmatprep.subr.mxu0 0.0
    %1053 = vmatpush1.msra.mxu0 0.0
    %1054 = vmatprep.subr.mxu0 0.0
    %1055 = vmatpush1.msra.mxu0 0.0
    %1056 = vmatprep.subr.mxu0 0.0
    %1057 = vmatpush1.msra.mxu0 0.0
    %1058 = vmatprep.subr.mxu0 0.0
    %1059 = vmatpush1.msra.mxu0 0.0
    %1060 = vmatprep.subr.mxu0 0.0
    %1061 = vmatpush1.msra.mxu0 0.0
    %1062 = vmatprep.subr.mxu0 0.0
    %1063 = vmatpush1.msra.mxu0 0.0
    %1064 = vmatprep.subr.mxu0 0.0
    %1065 = vmatpush1.msra.mxu0 0.0
    %1066 = vmatprep.subr.mxu0 0.0
    %1067 = vmatpush1.msra.mxu0 0.0
    %1068 = vmatprep.subr.mxu0 0.0
    %1069 = vmatpush1.msra.mxu0 %v268
    %1070 = vmatprep.subr.mxu0 0.0
    %1071 = vmatpush2.msra.mxu0 0.0
    %1072 = vmatprep.subr.mxu0 0.0
    %1073 = vmatpush2.msra.mxu0 0.0
    %1074 = vmatprep.subr.mxu0 0.0
    %1075 = vmatpush2.msra.mxu0 0.0
    %1076 = vmatprep.subr.mxu0 0.0
    %1077 = vmatpush2.msra.mxu0 0.0
    %1078 = vmatprep.subr.mxu0 0.0
    %1079 = vmatpush2.msra.mxu0 0.0
    %1080 = vmatprep.subr.mxu0 0.0
    %1081 = vmatpush2.msra.mxu0 0.0
    %1082 = vmatprep.subr.mxu0 0.0
    %1083 = vmatpush2.msra.mxu0 0.0
    %1084 = vmatprep.subr.mxu0 0.0
    %1085 = vmatpush2.msra.mxu0 0.0
    %1086 = vmatprep.subr.mxu0 0.0
    %1087 = vmatpush2.msra.mxu0 0.0
    %1088 = vmatprep.subr.mxu0 0.0
    %1089 = vmatpush2.msra.mxu0 0.0
    %1090 = vmatprep.subr.mxu0 0.0
    %1091 = vmatpush2.msra.mxu0 0.0
    %1092 = vmatprep.subr.mxu0 0.0
    %1093 = vmatpush2.msra.mxu0 0.0
    %1094 = vmatprep.subr.mxu0 0.0
    %1095 = vmatpush2.msra.mxu0 0.0
    %1096 = vmatprep.subr.mxu0 0.0
    %1097 = vmatpush2.msra.mxu0 0.0
    %1098 = vmatprep.subr.mxu0 0.0
    %1099 = vmatpush2.msra.mxu0 0.0
    %1100 = vmatprep.subr.mxu0 0.0
    %1101 = vmatpush2.msra.mxu0 0.0
    %1102 = vmatprep.mubr.f32.mxu0 0.0
    %1103 = vmatmul.mubr.f32.gmra.mxu0 %v1033
    %v1104 = vpop.f32.mrf.mxu0
    %v1105 = vadd.f32 0.0, %v1104
    %v1106 = vpop.f32.mrf.mxu0
    %1107 = vmatprep.mubr.f32.mxu0 0.0
    %1108 = vmatmul.mubr.f32.gmra.mxu0 %v1036
    %v1109 = vpop.f32.mrf.mxu0
    %v1110 = vadd.f32 0.0, %v1109
    %v1111 = vpop.f32.mrf.mxu0
    %1112 = vdwg.mxu0
    %v1113 = vadd.f32 %v824, %v1105
    %v1114 = vadd.f32 %v829, %v1110
    %1115 = vrot.lane.b32.xlu0 %v258, 104
    %v1116 = vpop.permute.xlu0 %1115
    %1117 = vrot.lane.b32.xlu0 %v263, 104
    %v1118 = vpop.permute.xlu0 %1117
    %1119 = vrot.lane.b32.xlu0 %v258, 72
    %v1120 = vpop.permute.xlu0 %1119
    %1121 = vrot.lane.b32.xlu0 %v263, 72
    %v1122 = vpop.permute.xlu0 %1121
    %v1123 = vsel %vm276, %v1116, 0
    %v1125 = vsel %vm276, %v1118, 0
    %v1127 = vsel %vm276, %v1120, 0
    %v1129 = vsel %vm276, %v1122, 0
    %1131 = vmatprep.subr.mxu0 0.0
    %1132 = vmatpush1.xpose.msra.mxu0 0.0
    %1133 = vmatprep.subr.mxu0 0.0
    %1134 = vmatpush1.xpose.msra.mxu0 0.0
    %1135 = vmatprep.subr.mxu0 0.0
    %1136 = vmatpush1.xpose.msra.mxu0 0.0
    %1137 = vmatprep.subr.mxu0 0.0
    %1138 = vmatpush1.xpose.msra.mxu0 0.0
    %1139 = vmatprep.subr.mxu0 0.0
    %1140 = vmatpush1.xpose.msra.mxu0 0.0
    %1141 = vmatprep.subr.mxu0 0.0
    %1142 = vmatpush1.xpose.msra.mxu0 0.0
    %1143 = vmatprep.subr.mxu0 0.0
    %1144 = vmatpush1.xpose.msra.mxu0 0.0
    %1145 = vmatprep.subr.mxu0 0.0
    %1146 = vmatpush1.xpose.msra.mxu0 0.0
    %1147 = vmatprep.subr.mxu0 0.0
    %1148 = vmatpush1.xpose.msra.mxu0 0.0
    %1149 = vmatprep.subr.mxu0 0.0
    %1150 = vmatpush1.xpose.msra.mxu0 0.0
    %1151 = vmatprep.subr.mxu0 0.0
    %1152 = vmatpush1.xpose.msra.mxu0 0.0
    %1153 = vmatprep.subr.mxu0 0.0
    %1154 = vmatpush1.xpose.msra.mxu0 0.0
    %1155 = vmatprep.subr.mxu0 0.0
    %1156 = vmatpush1.xpose.msra.mxu0 0.0
    %1157 = vmatprep.subr.mxu0 0.0
    %1158 = vmatpush1.xpose.msra.mxu0 0.0
    %1159 = vmatprep.subr.mxu0 0.0
    %1160 = vmatpush1.xpose.msra.mxu0 %v1129
    %1161 = vmatprep.subr.mxu0 0.0
    %1162 = vmatpush1.xpose.msra.mxu0 %v1127
    %1163 = vmatprep.subr.mxu0 0.0
    %1164 = vmatpush2.xpose.msra.mxu0 0.0
    %1165 = vmatprep.subr.mxu0 0.0
    %1166 = vmatpush2.xpose.msra.mxu0 0.0
    %1167 = vmatprep.subr.mxu0 0.0
    %1168 = vmatpush2.xpose.msra.mxu0 0.0
    %1169 = vmatprep.subr.mxu0 0.0
    %1170 = vmatpush2.xpose.msra.mxu0 0.0
    %1171 = vmatprep.subr.mxu0 0.0
    %1172 = vmatpush2.xpose.msra.mxu0 0.0
    %1173 = vmatprep.subr.mxu0 0.0
    %1174 = vmatpush2.xpose.msra.mxu0 0.0
    %1175 = vmatprep.subr.mxu0 0.0
    %1176 = vmatpush2.xpose.msra.mxu0 0.0
    %1177 = vmatprep.subr.mxu0 0.0
    %1178 = vmatpush2.xpose.msra.mxu0 0.0
    %1179 = vmatprep.subr.mxu0 0.0
    %1180 = vmatpush2.xpose.msra.mxu0 0.0
    %1181 = vmatprep.subr.mxu0 0.0
    %1182 = vmatpush2.xpose.msra.mxu0 0.0
    %1183 = vmatprep.subr.mxu0 0.0
    %1184 = vmatpush2.xpose.msra.mxu0 0.0
    %1185 = vmatprep.subr.mxu0 0.0
    %1186 = vmatpush2.xpose.msra.mxu0 0.0
    %1187 = vmatprep.subr.mxu0 0.0
    %1188 = vmatpush2.xpose.msra.mxu0 0.0
    %1189 = vmatprep.subr.mxu0 0.0
    %1190 = vmatpush2.xpose.msra.mxu0 0.0
    %1191 = vmatprep.subr.mxu0 0.0
    %1192 = vmatpush2.xpose.msra.mxu0 0.0
    %1193 = vmatprep.subr.mxu0 0.0
    %1194 = vmatpush2.xpose.msra.mxu0 0.0
    %1195 = vmatprep.mubr.f32.mxu0 0.0
    %1196 = vmatmul.mubr.f32.gmra.mxu0 %v1123
    %v1197 = vpop.f32.mrf.mxu0
    %v1198 = vadd.f32 %v165, %v1197
    %v1199 = vpop.f32.mrf.mxu0
    %1200 = vmatprep.mubr.f32.mxu0 0.0
    %1201 = vmatmul.mubr.f32.gmra.mxu0 %v1125
    %v1202 = vpop.f32.mrf.mxu0
    %v1203 = vadd.f32 %v166, %v1202
    %v1204 = vpop.f32.mrf.mxu0
    %1205 = vdwg.mxu0
    %v1206 = vsel %vm360, %v1198, -inf
    %1207 = vmax.xlane.f32.xlu0 %v1206
    %v1208 = vpop.xlane.xlu0 %1207
    %v1209 = vsel %vm360, %v1203, -inf
    %1210 = vmax.xlane.f32.xlu0 %v1209
    %v1211 = vpop.xlane.xlu0 %1210
    %v1212 = vsub.f32 %v1198, %v1208
    %v1213 = vsub.f32 %v1203, %v1211
    %v1214 = vmul.f32 %v1212, 1.442695
    %v1215 = vpow.pop %v1214
    %v1216 = vmul.f32 %v1213, 1.442695
    %v1217 = vpow.pop %v1216
    %v1218 = vsel %vm360, %v1215, 0.0
    %1219 = vadd.xlane.f32.xlu0 %v1218
    %v1220 = vpop.xlane.xlu0 %1219
    %v1221 = vsel %vm360, %v1217, 0.0
    %1222 = vadd.xlane.f32.xlu0 %v1221
    %v1223 = vpop.xlane.xlu0 %1222
    %v1224 = vrcp.pop %v1220
    %v1225 = vrcp.pop %v1223
    %v1226 = vmul.f32 %v1215, %v1224
    %v1227 = vmul.f32 %v1217, %v1225
    %1228 = vrot.lane.b32.xlu0 %v258, 40
    %v1229 = vpop.permute.xlu0 %1228
    %1230 = vrot.lane.b32.xlu0 %v263, 40
    %v1231 = vpop.permute.xlu0 %1230
    %v1235 = vsel %vm360, %v1226, 0
    %v1238 = vsel %vm360, %v1227, 0
    %1240 = vmatprep.subr.mxu0 0.0
    %1241 = vmatpush1.msra.mxu0 0.0
    %1242 = vmatprep.subr.mxu0 0.0
    %1243 = vmatpush1.msra.mxu0 0.0
    %1244 = vmatprep.subr.mxu0 0.0
    %1245 = vmatpush1.msra.mxu0 0.0
    %1246 = vmatprep.subr.mxu0 0.0
    %1247 = vmatpush1.msra.mxu0 0.0
    %1248 = vmatprep.subr.mxu0 0.0
    %1249 = vmatpush1.msra.mxu0 0.0
    %1250 = vmatprep.subr.mxu0 0.0
    %1251 = vmatpush1.msra.mxu0 0.0
    %1252 = vmatprep.subr.mxu0 0.0
    %1253 = vmatpush1.msra.mxu0 0.0
    %1254 = vmatprep.subr.mxu0 0.0
    %1255 = vmatpush1.msra.mxu0 0.0
    %1256 = vmatprep.subr.mxu0 0.0
    %1257 = vmatpush1.msra.mxu0 0.0
    %1258 = vmatprep.subr.mxu0 0.0
    %1259 = vmatpush1.msra.mxu0 0.0
    %1260 = vmatprep.subr.mxu0 0.0
    %1261 = vmatpush1.msra.mxu0 0.0
    %1262 = vmatprep.subr.mxu0 0.0
    %1263 = vmatpush1.msra.mxu0 0.0
    %1264 = vmatprep.subr.mxu0 0.0
    %1265 = vmatpush1.msra.mxu0 0.0
    %1266 = vmatprep.subr.mxu0 0.0
    %1267 = vmatpush1.msra.mxu0 0.0
    %1268 = vmatprep.subr.mxu0 0.0
    %1269 = vmatpush1.msra.mxu0 %v1231
    %1270 = vmatprep.subr.mxu0 0.0
    %1271 = vmatpush1.msra.mxu0 %v1229
    %1272 = vmatprep.subr.mxu0 0.0
    %1273 = vmatpush2.msra.mxu0 0.0
    %1274 = vmatprep.subr.mxu0 0.0
    %1275 = vmatpush2.msra.mxu0 0.0
    %1276 = vmatprep.subr.mxu0 0.0
    %1277 = vmatpush2.msra.mxu0 0.0
    %1278 = vmatprep.subr.mxu0 0.0
    %1279 = vmatpush2.msra.mxu0 0.0
    %1280 = vmatprep.subr.mxu0 0.0
    %1281 = vmatpush2.msra.mxu0 0.0
    %1282 = vmatprep.subr.mxu0 0.0
    %1283 = vmatpush2.msra.mxu0 0.0
    %1284 = vmatprep.subr.mxu0 0.0
    %1285 = vmatpush2.msra.mxu0 0.0
    %1286 = vmatprep.subr.mxu0 0.0
    %1287 = vmatpush2.msra.mxu0 0.0
    %1288 = vmatprep.subr.mxu0 0.0
    %1289 = vmatpush2.msra.mxu0 0.0
    %1290 = vmatprep.subr.mxu0 0.0
    %1291 = vmatpush2.msra.mxu0 0.0
    %1292 = vmatprep.subr.mxu0 0.0
    %1293 = vmatpush2.msra.mxu0 0.0
    %1294 = vmatprep.subr.mxu0 0.0
    %1295 = vmatpush2.msra.mxu0 0.0
    %1296 = vmatprep.subr.mxu0 0.0
    %1297 = vmatpush2.msra.mxu0 0.0
    %1298 = vmatprep.subr.mxu0 0.0
    %1299 = vmatpush2.msra.mxu0 0.0
    %1300 = vmatprep.subr.mxu0 0.0
    %1301 = vmatpush2.msra.mxu0 0.0
    %1302 = vmatprep.subr.mxu0 0.0
    %1303 = vmatpush2.msra.mxu0 0.0
    %1304 = vmatprep.mubr.f32.mxu0 0.0
    %1305 = vmatmul.mubr.f32.gmra.mxu0 %v1235
    %v1306 = vpop.f32.mrf.mxu0
    %v1307 = vadd.f32 0.0, %v1306
    %v1308 = vpop.f32.mrf.mxu0
    %1309 = vmatprep.mubr.f32.mxu0 0.0
    %1310 = vmatmul.mubr.f32.gmra.mxu0 %v1238
    %v1311 = vpop.f32.mrf.mxu0
    %v1312 = vadd.f32 0.0, %v1311
    %v1313 = vpop.f32.mrf.mxu0
    %1314 = vdwg.mxu0
    %v1316 = vsel %vm276, %v1307, 0
    %v1319 = vsel %vm276, %v1312, 0
    %1321 = vmatprep.subr.mxu0 0.0
    %1322 = vmatpush1.msra.mxu0 0.0
    %1323 = vmatprep.subr.mxu0 0.0
    %1324 = vmatpush1.msra.mxu0 0.0
    %1325 = vmatprep.subr.mxu0 0.0
    %1326 = vmatpush1.msra.mxu0 0.0
    %1327 = vmatprep.subr.mxu0 0.0
    %1328 = vmatpush1.msra.mxu0 0.0
    %1329 = vmatprep.subr.mxu0 0.0
    %1330 = vmatpush1.msra.mxu0 0.0
    %1331 = vmatprep.subr.mxu0 0.0
    %1332 = vmatpush1.msra.mxu0 0.0
    %1333 = vmatprep.subr.mxu0 0.0
    %1334 = vmatpush1.msra.mxu0 0.0
    %1335 = vmatprep.subr.mxu0 0.0
    %1336 = vmatpush1.msra.mxu0 0.0
    %1337 = vmatprep.subr.mxu0 0.0
    %1338 = vmatpush1.msra.mxu0 0.0
    %1339 = vmatprep.subr.mxu0 0.0
    %1340 = vmatpush1.msra.mxu0 0.0
    %1341 = vmatprep.subr.mxu0 0.0
    %1342 = vmatpush1.msra.mxu0 0.0
    %1343 = vmatprep.subr.mxu0 0.0
    %1344 = vmatpush1.msra.mxu0 0.0
    %1345 = vmatprep.subr.mxu0 0.0
    %1346 = vmatpush1.msra.mxu0 0.0
    %1347 = vmatprep.subr.mxu0 0.0
    %1348 = vmatpush1.msra.mxu0 0.0
    %1349 = vmatprep.subr.mxu0 0.0
    %1350 = vmatpush1.msra.mxu0 0.0
    %1351 = vmatprep.subr.mxu0 0.0
    %1352 = vmatpush1.msra.mxu0 %v269
    %1353 = vmatprep.subr.mxu0 0.0
    %1354 = vmatpush2.msra.mxu0 0.0
    %1355 = vmatprep.subr.mxu0 0.0
    %1356 = vmatpush2.msra.mxu0 0.0
    %1357 = vmatprep.subr.mxu0 0.0
    %1358 = vmatpush2.msra.mxu0 0.0
    %1359 = vmatprep.subr.mxu0 0.0
    %1360 = vmatpush2.msra.mxu0 0.0
    %1361 = vmatprep.subr.mxu0 0.0
    %1362 = vmatpush2.msra.mxu0 0.0
    %1363 = vmatprep.subr.mxu0 0.0
    %1364 = vmatpush2.msra.mxu0 0.0
    %1365 = vmatprep.subr.mxu0 0.0
    %1366 = vmatpush2.msra.mxu0 0.0
    %1367 = vmatprep.subr.mxu0 0.0
    %1368 = vmatpush2.msra.mxu0 0.0
    %1369 = vmatprep.subr.mxu0 0.0
    %1370 = vmatpush2.msra.mxu0 0.0
    %1371 = vmatprep.subr.mxu0 0.0
    %1372 = vmatpush2.msra.mxu0 0.0
    %1373 = vmatprep.subr.mxu0 0.0
    %1374 = vmatpush2.msra.mxu0 0.0
    %1375 = vmatprep.subr.mxu0 0.0
    %1376 = vmatpush2.msra.mxu0 0.0
    %1377 = vmatprep.subr.mxu0 0.0
    %1378 = vmatpush2.msra.mxu0 0.0
    %1379 = vmatprep.subr.mxu0 0.0
    %1380 = vmatpush2.msra.mxu0 0.0
    %1381 = vmatprep.subr.mxu0 0.0
    %1382 = vmatpush2.msra.mxu0 0.0
    %1383 = vmatprep.subr.mxu0 0.0
    %1384 = vmatpush2.msra.mxu0 0.0
    %1385 = vmatprep.mubr.f32.mxu0 0.0
    %1386 = vmatmul.mubr.f32.gmra.mxu0 %v1316
    %v1387 = vpop.f32.mrf.mxu0
    %v1388 = vadd.f32 0.0, %v1387
    %v1389 = vpop.f32.mrf.mxu0
    %1390 = vmatprep.mubr.f32.mxu0 0.0
    %1391 = vmatmul.mubr.f32.gmra.mxu0 %v1319
    %v1392 = vpop.f32.mrf.mxu0
    %v1393 = vadd.f32 0.0, %v1392
    %v1394 = vpop.f32.mrf.mxu0
    %1395 = vdwg.mxu0
    %v1396 = vadd.f32 %v1113, %v1388
    %v1397 = vadd.f32 %v1114, %v1393
    %v1398 = vadd.f32 %v161, %v1396
    %v1399 = vadd.f32 %v162, %v1397
    %v1400 = vld [vmem:[%s7] sm:$0x1]
    %v1402 = vlaneseq
    %v1403 = vshrl.u32 %v1402, 7
    %v1404 = vsub.s32 0, %v1403
    %v1405 = vrot.slane %v1400, %v1404
    %v1407 = vadd.f32 %v1398, %v1405
    %v1408 = vadd.f32 %v1399, %v1405
    %v1409 = vsel %vm184, %v1407, 0.0
    %1410 = vadd.xlane.f32.xlu0 %v1409
    %v1411 = vpop.xlane.xlu0 %1410
    %v1412 = vsel %vm184, %v1408, 0.0
    %1413 = vadd.xlane.f32.xlu0 %v1412
    %v1414 = vpop.xlane.xlu0 %1413
    %v1415 = vrcp.pop 32.0
    %v1416 = vmul.f32 %v1411, %v1415
    %v1417 = vmul.f32 %v1414, %v1415
    %v1418 = vsub.f32 %v1407, %v1416
    %v1419 = vsub.f32 %v1408, %v1417
    %v1420 = vmul.f32 %v1418, %v1418
    %v1421 = vmul.f32 %v1419, %v1419
    %v1422 = vsel %vm184, %v1420, 0.0
    %1423 = vadd.xlane.f32.xlu0 %v1422
    %v1424 = vpop.xlane.xlu0 %1423
    %v1425 = vsel %vm184, %v1421, 0.0
    %1426 = vadd.xlane.f32.xlu0 %v1425
    %v1427 = vpop.xlane.xlu0 %1426
    %v1428 = vmul.f32 %v1424, %v1415
    %v1429 = vmul.f32 %v1427, %v1415
    %v1430 = vadd.f32 %v1428, 1e-06
    %v1431 = vadd.f32 %v1429, 1e-06
    %v1432 = vrsqrt.pop %v1430
    %v1433 = vrsqrt.pop %v1431
    %v1434 = vmul.f32 %v1418, %v1432
    %v1435 = vmul.f32 %v1419, %v1433
    %v1436 = vlaneseq
    %v1437 = vshrl.u32 %v1436, 7
    %v1438 = vsub.s32 0, %v1437
    %v1439 = vrot.slane %v169, %v1438
    %v1440 = vmul.f32 %v1434, %v1439
    %v1441 = vmul.f32 %v1435, %v1439
    %v1442 = vlaneseq
    %v1443 = vshrl.u32 %v1442, 7
    %v1444 = vsub.s32 0, %v1443
    %v1445 = vrot.slane %v170, %v1444
    %v1446 = vadd.f32 %v1440, %v1445
    %v1447 = vadd.f32 %v1441, %v1445
    %v1448 = vld [vmem:[%s8] sm:$0xff]
    %v1449 = vld [vmem:[%s8 + $0x8] sm:$0xff]
    %v1450 = vld [vmem:[%s8 + $0x10] sm:$0xff]
    %v1451 = vld [vmem:[%s8 + $0x18] sm:$0xff]
    %v1452 = vld [vmem:[%s9] sm:$0x1]
    %v1454 = vlaneseq
    %v1455 = vshrl.u32 %v1454, 7
    %v1456 = vsub.s32 0, %v1455
    %v1457 = vrot.slane %v1452, %v1456
    %v1460 = vsel %vm184, %v1446, 0
    %v1463 = vsel %vm184, %v1447, 0
    %1465 = vmatprep.subr.mxu0 0.0
    %1466 = vmatpush1.msra.mxu0 0.0
    %1467 = vmatprep.subr.mxu0 0.0
    %1468 = vmatpush1.msra.mxu0 0.0
    %1469 = vmatprep.subr.mxu0 0.0
    %1470 = vmatpush1.msra.mxu0 0.0
    %1471 = vmatprep.subr.mxu0 0.0
    %1472 = vmatpush1.msra.mxu0 0.0
    %1473 = vmatprep.subr.mxu0 0.0
    %1474 = vmatpush1.msra.mxu0 0.0
    %1475 = vmatprep.subr.mxu0 0.0
    %1476 = vmatpush1.msra.mxu0 0.0
    %1477 = vmatprep.subr.mxu0 0.0
    %1478 = vmatpush1.msra.mxu0 0.0
    %1479 = vmatprep.subr.mxu0 0.0
    %1480 = vmatpush1.msra.mxu0 0.0
    %1481 = vmatprep.subr.mxu0 0.0
    %1482 = vmatpush1.msra.mxu0 0.0
    %1483 = vmatprep.subr.mxu0 0.0
    %1484 = vmatpush1.msra.mxu0 0.0
    %1485 = vmatprep.subr.mxu0 0.0
    %1486 = vmatpush1.msra.mxu0 0.0
    %1487 = vmatprep.subr.mxu0 0.0
    %1488 = vmatpush1.msra.mxu0 0.0
    %1489 = vmatprep.subr.mxu0 0.0
    %1490 = vmatpush1.msra.mxu0 %v1451
    %1491 = vmatprep.subr.mxu0 0.0
    %1492 = vmatpush1.msra.mxu0 %v1450
    %1493 = vmatprep.subr.mxu0 0.0
    %1494 = vmatpush1.msra.mxu0 %v1449
    %1495 = vmatprep.subr.mxu0 0.0
    %1496 = vmatpush1.msra.mxu0 %v1448
    %1497 = vmatprep.subr.mxu0 0.0
    %1498 = vmatpush2.msra.mxu0 0.0
    %1499 = vmatprep.subr.mxu0 0.0
    %1500 = vmatpush2.msra.mxu0 0.0
    %1501 = vmatprep.subr.mxu0 0.0
    %1502 = vmatpush2.msra.mxu0 0.0
    %1503 = vmatprep.subr.mxu0 0.0
    %1504 = vmatpush2.msra.mxu0 0.0
    %1505 = vmatprep.subr.mxu0 0.0
    %1506 = vmatpush2.msra.mxu0 0.0
    %1507 = vmatprep.subr.mxu0 0.0
    %1508 = vmatpush2.msra.mxu0 0.0
    %1509 = vmatprep.subr.mxu0 0.0
    %1510 = vmatpush2.msra.mxu0 0.0
    %1511 = vmatprep.subr.mxu0 0.0
    %1512 = vmatpush2.msra.mxu0 0.0
    %1513 = vmatprep.subr.mxu0 0.0
    %1514 = vmatpush2.msra.mxu0 0.0
    %1515 = vmatprep.subr.mxu0 0.0
    %1516 = vmatpush2.msra.mxu0 0.0
    %1517 = vmatprep.subr.mxu0 0.0
    %1518 = vmatpush2.msra.mxu0 0.0
    %1519 = vmatprep.subr.mxu0 0.0
    %1520 = vmatpush2.msra.mxu0 0.0
    %1521 = vmatprep.subr.mxu0 0.0
    %1522 = vmatpush2.msra.mxu0 0.0
    %1523 = vmatprep.subr.mxu0 0.0
    %1524 = vmatpush2.msra.mxu0 0.0
    %1525 = vmatprep.subr.mxu0 0.0
    %1526 = vmatpush2.msra.mxu0 0.0
    %1527 = vmatprep.subr.mxu0 0.0
    %1528 = vmatpush2.msra.mxu0 0.0
    %1529 = vmatprep.mubr.f32.mxu0 0.0
    %1530 = vmatmul.mubr.f32.gmra.mxu0 %v1460
    %v1531 = vpop.f32.mrf.mxu0
    %v1532 = vadd.f32 %v1457, %v1531
    %v1533 = vpop.f32.mrf.mxu0
    %1534 = vmatprep.mubr.f32.mxu0 0.0
    %1535 = vmatmul.mubr.f32.gmra.mxu0 %v1463
    %v1536 = vpop.f32.mrf.mxu0
    %v1537 = vadd.f32 %v1457, %v1536
    %v1538 = vpop.f32.mrf.mxu0
    %1539 = vdwg.mxu0
    %v1540 = vld [vmem:[#allocation10] sm:$0xff]
    %v1541 = vld [vmem:[#allocation10 + $0x8] sm:$0xff]
    %v1542 = vld [vmem:[#allocation10 + $0x10] sm:$0xff]
    %v1543 = vld [vmem:[#allocation10 + $0x18] sm:$0xff]
    %v1544 = vld [vmem:[%s11] sm:$0x1]
    %v1546 = vlaneseq
    %v1547 = vshrl.u32 %v1546, 7
    %v1548 = vsub.s32 0, %v1547
    %v1549 = vrot.slane %v1544, %v1548
    %v1552 = vsel %vm184, %v163, 0
    %v1555 = vsel %vm184, %v164, 0
    %1557 = vmatprep.subr.mxu0 0.0
    %1558 = vmatpush1.msra.mxu0 0.0
    %1559 = vmatprep.subr.mxu0 0.0
    %1560 = vmatpush1.msra.mxu0 0.0
    %1561 = vmatprep.subr.mxu0 0.0
    %1562 = vmatpush1.msra.mxu0 0.0
    %1563 = vmatprep.subr.mxu0 0.0
    %1564 = vmatpush1.msra.mxu0 0.0
    %1565 = vmatprep.subr.mxu0 0.0
    %1566 = vmatpush1.msra.mxu0 0.0
    %1567 = vmatprep.subr.mxu0 0.0
    %1568 = vmatpush1.msra.mxu0 0.0
    %1569 = vmatprep.subr.mxu0 0.0
    %1570 = vmatpush1.msra.mxu0 0.0
    %1571 = vmatprep.subr.mxu0 0.0
    %1572 = vmatpush1.msra.mxu0 0.0
    %1573 = vmatprep.subr.mxu0 0.0
    %1574 = vmatpush1.msra.mxu0 0.0
    %1575 = vmatprep.subr.mxu0 0.0
    %1576 = vmatpush1.msra.mxu0 0.0
    %1577 = vmatprep.subr.mxu0 0.0
    %1578 = vmatpush1.msra.mxu0 0.0
    %1579 = vmatprep.subr.mxu0 0.0
    %1580 = vmatpush1.msra.mxu0 0.0
    %1581 = vmatprep.subr.mxu0 0.0
    %1582 = vmatpush1.msra.mxu0 %v1543
    %1583 = vmatprep.subr.mxu0 0.0
    %1584 = vmatpush1.msra.mxu0 %v1542
    %1585 = vmatprep.subr.mxu0 0.0
    %1586 = vmatpush1.msra.mxu0 %v1541
    %1587 = vmatprep.subr.mxu0 0.0
    %1588 = vmatpush1.msra.mxu0 %v1540
    %1589 = vmatprep.subr.mxu0 0.0
    %1590 = vmatpush2.msra.mxu0 0.0
    %1591 = vmatprep.subr.mxu0 0.0
    %1592 = vmatpush2.msra.mxu0 0.0
    %1593 = vmatprep.subr.mxu0 0.0
    %1594 = vmatpush2.msra.mxu0 0.0
    %1595 = vmatprep.subr.mxu0 0.0
    %1596 = vmatpush2.msra.mxu0 0.0
    %1597 = vmatprep.subr.mxu0 0.0
    %1598 = vmatpush2.msra.mxu0 0.0
    %1599 = vmatprep.subr.mxu0 0.0
    %1600 = vmatpush2.msra.mxu0 0.0
    %1601 = vmatprep.subr.mxu0 0.0
    %1602 = vmatpush2.msra.mxu0 0.0
    %1603 = vmatprep.subr.mxu0 0.0
    %1604 = vmatpush2.msra.mxu0 0.0
    %1605 = vmatprep.subr.mxu0 0.0
    %1606 = vmatpush2.msra.mxu0 0.0
    %1607 = vmatprep.subr.mxu0 0.0
    %1608 = vmatpush2.msra.mxu0 0.0
    %1609 = vmatprep.subr.mxu0 0.0
    %1610 = vmatpush2.msra.mxu0 0.0
    %1611 = vmatprep.subr.mxu0 0.0
    %1612 = vmatpush2.msra.mxu0 0.0
    %1613 = vmatprep.subr.mxu0 0.0
    %1614 = vmatpush2.msra.mxu0 0.0
    %1615 = vmatprep.subr.mxu0 0.0
    %1616 = vmatpush2.msra.mxu0 0.0
    %1617 = vmatprep.subr.mxu0 0.0
    %1618 = vmatpush2.msra.mxu0 0.0
    %1619 = vmatprep.subr.mxu0 0.0
    %1620 = vmatpush2.msra.mxu0 0.0
    %1621 = vmatprep.mubr.f32.mxu0 0.0
    %1622 = vmatmul.mubr.f32.gmra.mxu0 %v1552
    %v1623 = vpop.f32.mrf.mxu0
    %v1624 = vadd.f32 %v1549, %v1623
    %v1625 = vpop.f32.mrf.mxu0
    %1626 = vmatprep.mubr.f32.mxu0 0.0
    %1627 = vmatmul.mubr.f32.gmra.mxu0 %v1555
    %v1628 = vpop.f32.mrf.mxu0
    %v1629 = vadd.f32 %v1549, %v1628
    %v1630 = vpop.f32.mrf.mxu0
    %1631 = vdwg.mxu0
    %v1632 = vld [vmem:[#allocation11] sm:$0xff]
    %v1633 = vld [vmem:[#allocation11 + $0x8] sm:$0xff]
    %v1634 = vld [vmem:[#allocation11 + $0x10] sm:$0xff]
    %v1635 = vld [vmem:[#allocation11 + $0x18] sm:$0xff]
    %v1637 = vsel %vm276, %v1532, 0
    %v1640 = vsel %vm276, %v1537, 0
    %v1643 = vsel %vm276, %v1624, 0
    %v1646 = vsel %vm276, %v1629, 0
    %1648 = vmatprep.subr.mxu0 0.0
    %1649 = vmatpush1.xpose.msra.mxu0 0.0
    %1650 = vmatprep.subr.mxu0 0.0
    %1651 = vmatpush1.xpose.msra.mxu0 0.0
    %1652 = vmatprep.subr.mxu0 0.0
    %1653 = vmatpush1.xpose.msra.mxu0 0.0
    %1654 = vmatprep.subr.mxu0 0.0
    %1655 = vmatpush1.xpose.msra.mxu0 0.0
    %1656 = vmatprep.subr.mxu0 0.0
    %1657 = vmatpush1.xpose.msra.mxu0 0.0
    %1658 = vmatprep.subr.mxu0 0.0
    %1659 = vmatpush1.xpose.msra.mxu0 0.0
    %1660 = vmatprep.subr.mxu0 0.0
    %1661 = vmatpush1.xpose.msra.mxu0 0.0
    %1662 = vmatprep.subr.mxu0 0.0
    %1663 = vmatpush1.xpose.msra.mxu0 0.0
    %1664 = vmatprep.subr.mxu0 0.0
    %1665 = vmatpush1.xpose.msra.mxu0 0.0
    %1666 = vmatprep.subr.mxu0 0.0
    %1667 = vmatpush1.xpose.msra.mxu0 0.0
    %1668 = vmatprep.subr.mxu0 0.0
    %1669 = vmatpush1.xpose.msra.mxu0 0.0
    %1670 = vmatprep.subr.mxu0 0.0
    %1671 = vmatpush1.xpose.msra.mxu0 0.0
    %1672 = vmatprep.subr.mxu0 0.0
    %1673 = vmatpush1.xpose.msra.mxu0 0.0
    %1674 = vmatprep.subr.mxu0 0.0
    %1675 = vmatpush1.xpose.msra.mxu0 0.0
    %1676 = vmatprep.subr.mxu0 0.0
    %1677 = vmatpush1.xpose.msra.mxu0 %v1646
    %1678 = vmatprep.subr.mxu0 0.0
    %1679 = vmatpush1.xpose.msra.mxu0 %v1643
    %1680 = vmatprep.subr.mxu0 0.0
    %1681 = vmatpush2.xpose.msra.mxu0 0.0
    %1682 = vmatprep.subr.mxu0 0.0
    %1683 = vmatpush2.xpose.msra.mxu0 0.0
    %1684 = vmatprep.subr.mxu0 0.0
    %1685 = vmatpush2.xpose.msra.mxu0 0.0
    %1686 = vmatprep.subr.mxu0 0.0
    %1687 = vmatpush2.xpose.msra.mxu0 0.0
    %1688 = vmatprep.subr.mxu0 0.0
    %1689 = vmatpush2.xpose.msra.mxu0 0.0
    %1690 = vmatprep.subr.mxu0 0.0
    %1691 = vmatpush2.xpose.msra.mxu0 0.0
    %1692 = vmatprep.subr.mxu0 0.0
    %1693 = vmatpush2.xpose.msra.mxu0 0.0
    %1694 = vmatprep.subr.mxu0 0.0
    %1695 = vmatpush2.xpose.msra.mxu0 0.0
    %1696 = vmatprep.subr.mxu0 0.0
    %1697 = vmatpush2.xpose.msra.mxu0 0.0
    %1698 = vmatprep.subr.mxu0 0.0
    %1699 = vmatpush2.xpose.msra.mxu0 0.0
    %1700 = vmatprep.subr.mxu0 0.0
    %1701 = vmatpush2.xpose.msra.mxu0 0.0
    %1702 = vmatprep.subr.mxu0 0.0
    %1703 = vmatpush2.xpose.msra.mxu0 0.0
    %1704 = vmatprep.subr.mxu0 0.0
    %1705 = vmatpush2.xpose.msra.mxu0 0.0
    %1706 = vmatprep.subr.mxu0 0.0
    %1707 = vmatpush2.xpose.msra.mxu0 0.0
    %1708 = vmatprep.subr.mxu0 0.0
    %1709 = vmatpush2.xpose.msra.mxu0 0.0
    %1710 = vmatprep.subr.mxu0 0.0
    %1711 = vmatpush2.xpose.msra.mxu0 0.0
    %1712 = vmatprep.mubr.f32.mxu0 0.0
    %1713 = vmatmul.mubr.f32.gmra.mxu0 %v1637
    %v1714 = vpop.f32.mrf.mxu0
    %v1715 = vadd.f32 %v167, %v1714
    %v1716 = vpop.f32.mrf.mxu0
    %1717 = vmatprep.mubr.f32.mxu0 0.0
    %1718 = vmatmul.mubr.f32.gmra.mxu0 %v1640
    %v1719 = vpop.f32.mrf.mxu0
    %v1720 = vadd.f32 %v168, %v1719
    %v1721 = vpop.f32.mrf.mxu0
    %1722 = vdwg.mxu0
    %v1723 = vsel %vm360, %v1715, -inf
    %1724 = vmax.xlane.f32.xlu0 %v1723
    %v1725 = vpop.xlane.xlu0 %1724
    %v1726 = vsel %vm360, %v1720, -inf
    %1727 = vmax.xlane.f32.xlu0 %v1726
    %v1728 = vpop.xlane.xlu0 %1727
    %v1729 = vsub.f32 %v1715, %v1725
    %v1730 = vsub.f32 %v1720, %v1728
    %v1731 = vmul.f32 %v1729, 1.442695
    %v1732 = vpow.pop %v1731
    %v1733 = vmul.f32 %v1730, 1.442695
    %v1734 = vpow.pop %v1733
    %v1735 = vsel %vm360, %v1732, 0.0
    %1736 = vadd.xlane.f32.xlu0 %v1735
    %v1737 = vpop.xlane.xlu0 %1736
    %v1738 = vsel %vm360, %v1734, 0.0
    %1739 = vadd.xlane.f32.xlu0 %v1738
    %v1740 = vpop.xlane.xlu0 %1739
    %v1741 = vrcp.pop %v1737
    %v1742 = vrcp.pop %v1740
    %v1743 = vmul.f32 %v1732, %v1741
    %v1744 = vmul.f32 %v1734, %v1742
    %1745 = vrot.lane.b32.xlu0 %v1624, 96
    %v1746 = vpop.permute.xlu0 %1745
    %1747 = vrot.lane.b32.xlu0 %v1629, 96
    %v1748 = vpop.permute.xlu0 %1747
    %v1752 = vsel %vm360, %v1743, 0
    %v1755 = vsel %vm360, %v1744, 0
    %1757 = vmatprep.subr.mxu0 0.0
    %1758 = vmatpush1.msra.mxu0 0.0
    %1759 = vmatprep.subr.mxu0 0.0
    %1760 = vmatpush1.msra.mxu0 0.0
    %1761 = vmatprep.subr.mxu0 0.0
    %1762 = vmatpush1.msra.mxu0 0.0
    %1763 = vmatprep.subr.mxu0 0.0
    %1764 = vmatpush1.msra.mxu0 0.0
    %1765 = vmatprep.subr.mxu0 0.0
    %1766 = vmatpush1.msra.mxu0 0.0
    %1767 = vmatprep.subr.mxu0 0.0
    %1768 = vmatpush1.msra.mxu0 0.0
    %1769 = vmatprep.subr.mxu0 0.0
    %1770 = vmatpush1.msra.mxu0 0.0
    %1771 = vmatprep.subr.mxu0 0.0
    %1772 = vmatpush1.msra.mxu0 0.0
    %1773 = vmatprep.subr.mxu0 0.0
    %1774 = vmatpush1.msra.mxu0 0.0
    %1775 = vmatprep.subr.mxu0 0.0
    %1776 = vmatpush1.msra.mxu0 0.0
    %1777 = vmatprep.subr.mxu0 0.0
    %1778 = vmatpush1.msra.mxu0 0.0
    %1779 = vmatprep.subr.mxu0 0.0
    %1780 = vmatpush1.msra.mxu0 0.0
    %1781 = vmatprep.subr.mxu0 0.0
    %1782 = vmatpush1.msra.mxu0 0.0
    %1783 = vmatprep.subr.mxu0 0.0
    %1784 = vmatpush1.msra.mxu0 0.0
    %1785 = vmatprep.subr.mxu0 0.0
    %1786 = vmatpush1.msra.mxu0 %v1748
    %1787 = vmatprep.subr.mxu0 0.0
    %1788 = vmatpush1.msra.mxu0 %v1746
    %1789 = vmatprep.subr.mxu0 0.0
    %1790 = vmatpush2.msra.mxu0 0.0
    %1791 = vmatprep.subr.mxu0 0.0
    %1792 = vmatpush2.msra.mxu0 0.0
    %1793 = vmatprep.subr.mxu0 0.0
    %1794 = vmatpush2.msra.mxu0 0.0
    %1795 = vmatprep.subr.mxu0 0.0
    %1796 = vmatpush2.msra.mxu0 0.0
    %1797 = vmatprep.subr.mxu0 0.0
    %1798 = vmatpush2.msra.mxu0 0.0
    %1799 = vmatprep.subr.mxu0 0.0
    %1800 = vmatpush2.msra.mxu0 0.0
    %1801 = vmatprep.subr.mxu0 0.0
    %1802 = vmatpush2.msra.mxu0 0.0
    %1803 = vmatprep.subr.mxu0 0.0
    %1804 = vmatpush2.msra.mxu0 0.0
    %1805 = vmatprep.subr.mxu0 0.0
    %1806 = vmatpush2.msra.mxu0 0.0
    %1807 = vmatprep.subr.mxu0 0.0
    %1808 = vmatpush2.msra.mxu0 0.0
    %1809 = vmatprep.subr.mxu0 0.0
    %1810 = vmatpush2.msra.mxu0 0.0
    %1811 = vmatprep.subr.mxu0 0.0
    %1812 = vmatpush2.msra.mxu0 0.0
    %1813 = vmatprep.subr.mxu0 0.0
    %1814 = vmatpush2.msra.mxu0 0.0
    %1815 = vmatprep.subr.mxu0 0.0
    %1816 = vmatpush2.msra.mxu0 0.0
    %1817 = vmatprep.subr.mxu0 0.0
    %1818 = vmatpush2.msra.mxu0 0.0
    %1819 = vmatprep.subr.mxu0 0.0
    %1820 = vmatpush2.msra.mxu0 0.0
    %1821 = vmatprep.mubr.f32.mxu0 0.0
    %1822 = vmatmul.mubr.f32.gmra.mxu0 %v1752
    %v1823 = vpop.f32.mrf.mxu0
    %v1824 = vadd.f32 0.0, %v1823
    %v1825 = vpop.f32.mrf.mxu0
    %1826 = vmatprep.mubr.f32.mxu0 0.0
    %1827 = vmatmul.mubr.f32.gmra.mxu0 %v1755
    %v1828 = vpop.f32.mrf.mxu0
    %v1829 = vadd.f32 0.0, %v1828
    %v1830 = vpop.f32.mrf.mxu0
    %1831 = vdwg.mxu0
    %1832 = vrot.lane.b32.xlu0 %v1532, 120
    %v1833 = vpop.permute.xlu0 %1832
    %1834 = vrot.lane.b32.xlu0 %v1537, 120
    %v1835 = vpop.permute.xlu0 %1834
    %1836 = vrot.lane.b32.xlu0 %v1624, 120
    %v1837 = vpop.permute.xlu0 %1836
    %1838 = vrot.lane.b32.xlu0 %v1629, 120
    %v1839 = vpop.permute.xlu0 %1838
    %v1840 = vsel %vm276, %v1833, 0
    %v1842 = vsel %vm276, %v1835, 0
    %v1844 = vsel %vm276, %v1837, 0
    %v1846 = vsel %vm276, %v1839, 0
    %1848 = vmatprep.subr.mxu0 0.0
    %1849 = vmatpush1.xpose.msra.mxu0 0.0
    %1850 = vmatprep.subr.mxu0 0.0
    %1851 = vmatpush1.xpose.msra.mxu0 0.0
    %1852 = vmatprep.subr.mxu0 0.0
    %1853 = vmatpush1.xpose.msra.mxu0 0.0
    %1854 = vmatprep.subr.mxu0 0.0
    %1855 = vmatpush1.xpose.msra.mxu0 0.0
    %1856 = vmatprep.subr.mxu0 0.0
    %1857 = vmatpush1.xpose.msra.mxu0 0.0
    %1858 = vmatprep.subr.mxu0 0.0
    %1859 = vmatpush1.xpose.msra.mxu0 0.0
    %1860 = vmatprep.subr.mxu0 0.0
    %1861 = vmatpush1.xpose.msra.mxu0 0.0
    %1862 = vmatprep.subr.mxu0 0.0
    %1863 = vmatpush1.xpose.msra.mxu0 0.0
    %1864 = vmatprep.subr.mxu0 0.0
    %1865 = vmatpush1.xpose.msra.mxu0 0.0
    %1866 = vmatprep.subr.mxu0 0.0
    %1867 = vmatpush1.xpose.msra.mxu0 0.0
    %1868 = vmatprep.subr.mxu0 0.0
    %1869 = vmatpush1.xpose.msra.mxu0 0.0
    %1870 = vmatprep.subr.mxu0 0.0
    %1871 = vmatpush1.xpose.msra.mxu0 0.0
    %1872 = vmatprep.subr.mxu0 0.0
    %1873 = vmatpush1.xpose.msra.mxu0 0.0
    %1874 = vmatprep.subr.mxu0 0.0
    %1875 = vmatpush1.xpose.msra.mxu0 0.0
    %1876 = vmatprep.subr.mxu0 0.0
    %1877 = vmatpush1.xpose.msra.mxu0 %v1846
    %1878 = vmatprep.subr.mxu0 0.0
    %1879 = vmatpush1.xpose.msra.mxu0 %v1844
    %1880 = vmatprep.subr.mxu0 0.0
    %1881 = vmatpush2.xpose.msra.mxu0 0.0
    %1882 = vmatprep.subr.mxu0 0.0
    %1883 = vmatpush2.xpose.msra.mxu0 0.0
    %1884 = vmatprep.subr.mxu0 0.0
    %1885 = vmatpush2.xpose.msra.mxu0 0.0
    %1886 = vmatprep.subr.mxu0 0.0
    %1887 = vmatpush2.xpose.msra.mxu0 0.0
    %1888 = vmatprep.subr.mxu0 0.0
    %1889 = vmatpush2.xpose.msra.mxu0 0.0
    %1890 = vmatprep.subr.mxu0 0.0
    %1891 = vmatpush2.xpose.msra.mxu0 0.0
    %1892 = vmatprep.subr.mxu0 0.0
    %1893 = vmatpush2.xpose.msra.mxu0 0.0
    %1894 = vmatprep.subr.mxu0 0.0
    %1895 = vmatpush2.xpose.msra.mxu0 0.0
    %1896 = vmatprep.subr.mxu0 0.0
    %1897 = vmatpush2.xpose.msra.mxu0 0.0
    %1898 = vmatprep.subr.mxu0 0.0
    %1899 = vmatpush2.xpose.msra.mxu0 0.0
    %1900 = vmatprep.subr.mxu0 0.0
    %1901 = vmatpush2.xpose.msra.mxu0 0.0
    %1902 = vmatprep.subr.mxu0 0.0
    %1903 = vmatpush2.xpose.msra.mxu0 0.0
    %1904 = vmatprep.subr.mxu0 0.0
    %1905 = vmatpush2.xpose.msra.mxu0 0.0
    %1906 = vmatprep.subr.mxu0 0.0
    %1907 = vmatpush2.xpose.msra.mxu0 0.0
    %1908 = vmatprep.subr.mxu0 0.0
    %1909 = vmatpush2.xpose.msra.mxu0 0.0
    %1910 = vmatprep.subr.mxu0 0.0
    %1911 = vmatpush2.xpose.msra.mxu0 0.0
    %1912 = vmatprep.mubr.f32.mxu0 0.0
    %1913 = vmatmul.mubr.f32.gmra.mxu0 %v1840
    %v1914 = vpop.f32.mrf.mxu0
    %v1915 = vadd.f32 %v167, %v1914
    %v1916 = vpop.f32.mrf.mxu0
    %1917 = vmatprep.mubr.f32.mxu0 0.0
    %1918 = vmatmul.mubr.f32.gmra.mxu0 %v1842
    %v1919 = vpop.f32.mrf.mxu0
    %v1920 = vadd.f32 %v168, %v1919
    %v1921 = vpop.f32.mrf.mxu0
    %1922 = vdwg.mxu0
    %v1923 = vsel %vm360, %v1915, -inf
    %1924 = vmax.xlane.f32.xlu0 %v1923
    %v1925 = vpop.xlane.xlu0 %1924
    %v1926 = vsel %vm360, %v1920, -inf
    %1927 = vmax.xlane.f32.xlu0 %v1926
    %v1928 = vpop.xlane.xlu0 %1927
    %v1929 = vsub.f32 %v1915, %v1925
    %v1930 = vsub.f32 %v1920, %v1928
    %v1931 = vmul.f32 %v1929, 1.442695
    %v1932 = vpow.pop %v1931
    %v1933 = vmul.f32 %v1930, 1.442695
    %v1934 = vpow.pop %v1933
    %v1935 = vsel %vm360, %v1932, 0.0
    %1936 = vadd.xlane.f32.xlu0 %v1935
    %v1937 = vpop.xlane.xlu0 %1936
    %v1938 = vsel %vm360, %v1934, 0.0
    %1939 = vadd.xlane.f32.xlu0 %v1938
    %v1940 = vpop.xlane.xlu0 %1939
    %v1941 = vrcp.pop %v1937
    %v1942 = vrcp.pop %v1940
    %v1943 = vmul.f32 %v1932, %v1941
    %v1944 = vmul.f32 %v1934, %v1942
    %1945 = vrot.lane.b32.xlu0 %v1624, 88
    %v1946 = vpop.permute.xlu0 %1945
    %1947 = vrot.lane.b32.xlu0 %v1629, 88
    %v1948 = vpop.permute.xlu0 %1947
    %v1952 = vsel %vm360, %v1943, 0
    %v1955 = vsel %vm360, %v1944, 0
    %1957 = vmatprep.subr.mxu0 0.0
    %1958 = vmatpush1.msra.mxu0 0.0
    %1959 = vmatprep.subr.mxu0 0.0
    %1960 = vmatpush1.msra.mxu0 0.0
    %1961 = vmatprep.subr.mxu0 0.0
    %1962 = vmatpush1.msra.mxu0 0.0
    %1963 = vmatprep.subr.mxu0 0.0
    %1964 = vmatpush1.msra.mxu0 0.0
    %1965 = vmatprep.subr.mxu0 0.0
    %1966 = vmatpush1.msra.mxu0 0.0
    %1967 = vmatprep.subr.mxu0 0.0
    %1968 = vmatpush1.msra.mxu0 0.0
    %1969 = vmatprep.subr.mxu0 0.0
    %1970 = vmatpush1.msra.mxu0 0.0
    %1971 = vmatprep.subr.mxu0 0.0
    %1972 = vmatpush1.msra.mxu0 0.0
    %1973 = vmatprep.subr.mxu0 0.0
    %1974 = vmatpush1.msra.mxu0 0.0
    %1975 = vmatprep.subr.mxu0 0.0
    %1976 = vmatpush1.msra.mxu0 0.0
    %1977 = vmatprep.subr.mxu0 0.0
    %1978 = vmatpush1.msra.mxu0 0.0
    %1979 = vmatprep.subr.mxu0 0.0
    %1980 = vmatpush1.msra.mxu0 0.0
    %1981 = vmatprep.subr.mxu0 0.0
    %1982 = vmatpush1.msra.mxu0 0.0
    %1983 = vmatprep.subr.mxu0 0.0
    %1984 = vmatpush1.msra.mxu0 0.0
    %1985 = vmatprep.subr.mxu0 0.0
    %1986 = vmatpush1.msra.mxu0 %v1948
    %1987 = vmatprep.subr.mxu0 0.0
    %1988 = vmatpush1.msra.mxu0 %v1946
    %1989 = vmatprep.subr.mxu0 0.0
    %1990 = vmatpush2.msra.mxu0 0.0
    %1991 = vmatprep.subr.mxu0 0.0
    %1992 = vmatpush2.msra.mxu0 0.0
    %1993 = vmatprep.subr.mxu0 0.0
    %1994 = vmatpush2.msra.mxu0 0.0
    %1995 = vmatprep.subr.mxu0 0.0
    %1996 = vmatpush2.msra.mxu0 0.0
    %1997 = vmatprep.subr.mxu0 0.0
    %1998 = vmatpush2.msra.mxu0 0.0
    %1999 = vmatprep.subr.mxu0 0.0
    %2000 = vmatpush2.msra.mxu0 0.0
    %2001 = vmatprep.subr.mxu0 0.0
    %2002 = vmatpush2.msra.mxu0 0.0
    %2003 = vmatprep.subr.mxu0 0.0
    %2004 = vmatpush2.msra.mxu0 0.0
    %2005 = vmatprep.subr.mxu0 0.0
    %2006 = vmatpush2.msra.mxu0 0.0
    %2007 = vmatprep.subr.mxu0 0.0
    %2008 = vmatpush2.msra.mxu0 0.0
    %2009 = vmatprep.subr.mxu0 0.0
    %2010 = vmatpush2.msra.mxu0 0.0
    %2011 = vmatprep.subr.mxu0 0.0
    %2012 = vmatpush2.msra.mxu0 0.0
    %2013 = vmatprep.subr.mxu0 0.0
    %2014 = vmatpush2.msra.mxu0 0.0
    %2015 = vmatprep.subr.mxu0 0.0
    %2016 = vmatpush2.msra.mxu0 0.0
    %2017 = vmatprep.subr.mxu0 0.0
    %2018 = vmatpush2.msra.mxu0 0.0
    %2019 = vmatprep.subr.mxu0 0.0
    %2020 = vmatpush2.msra.mxu0 0.0
    %2021 = vmatprep.mubr.f32.mxu0 0.0
    %2022 = vmatmul.mubr.f32.gmra.mxu0 %v1952
    %v2023 = vpop.f32.mrf.mxu0
    %v2024 = vadd.f32 0.0, %v2023
    %v2025 = vpop.f32.mrf.mxu0
    %2026 = vmatprep.mubr.f32.mxu0 0.0
    %2027 = vmatmul.mubr.f32.gmra.mxu0 %v1955
    %v2028 = vpop.f32.mrf.mxu0
    %v2029 = vadd.f32 0.0, %v2028
    %v2030 = vpop.f32.mrf.mxu0
    %2031 = vdwg.mxu0
    %v2033 = vsel %vm276, %v2024, 0
    %v2036 = vsel %vm276, %v2029, 0
    %2038 = vmatprep.subr.mxu0 0.0
    %2039 = vmatpush1.msra.mxu0 0.0
    %2040 = vmatprep.subr.mxu0 0.0
    %2041 = vmatpush1.msra.mxu0 0.0
    %2042 = vmatprep.subr.mxu0 0.0
    %2043 = vmatpush1.msra.mxu0 0.0
    %2044 = vmatprep.subr.mxu0 0.0
    %2045 = vmatpush1.msra.mxu0 0.0
    %2046 = vmatprep.subr.mxu0 0.0
    %2047 = vmatpush1.msra.mxu0 0.0
    %2048 = vmatprep.subr.mxu0 0.0
    %2049 = vmatpush1.msra.mxu0 0.0
    %2050 = vmatprep.subr.mxu0 0.0
    %2051 = vmatpush1.msra.mxu0 0.0
    %2052 = vmatprep.subr.mxu0 0.0
    %2053 = vmatpush1.msra.mxu0 0.0
    %2054 = vmatprep.subr.mxu0 0.0
    %2055 = vmatpush1.msra.mxu0 0.0
    %2056 = vmatprep.subr.mxu0 0.0
    %2057 = vmatpush1.msra.mxu0 0.0
    %2058 = vmatprep.subr.mxu0 0.0
    %2059 = vmatpush1.msra.mxu0 0.0
    %2060 = vmatprep.subr.mxu0 0.0
    %2061 = vmatpush1.msra.mxu0 0.0
    %2062 = vmatprep.subr.mxu0 0.0
    %2063 = vmatpush1.msra.mxu0 0.0
    %2064 = vmatprep.subr.mxu0 0.0
    %2065 = vmatpush1.msra.mxu0 0.0
    %2066 = vmatprep.subr.mxu0 0.0
    %2067 = vmatpush1.msra.mxu0 0.0
    %2068 = vmatprep.subr.mxu0 0.0
    %2069 = vmatpush1.msra.mxu0 %v1633
    %2070 = vmatprep.subr.mxu0 0.0
    %2071 = vmatpush2.msra.mxu0 0.0
    %2072 = vmatprep.subr.mxu0 0.0
    %2073 = vmatpush2.msra.mxu0 0.0
    %2074 = vmatprep.subr.mxu0 0.0
    %2075 = vmatpush2.msra.mxu0 0.0
    %2076 = vmatprep.subr.mxu0 0.0
    %2077 = vmatpush2.msra.mxu0 0.0
    %2078 = vmatprep.subr.mxu0 0.0
    %2079 = vmatpush2.msra.mxu0 0.0
    %2080 = vmatprep.subr.mxu0 0.0
    %2081 = vmatpush2.msra.mxu0 0.0
    %2082 = vmatprep.subr.mxu0 0.0
    %2083 = vmatpush2.msra.mxu0 0.0
    %2084 = vmatprep.subr.mxu0 0.0
    %2085 = vmatpush2.msra.mxu0 0.0
    %2086 = vmatprep.subr.mxu0 0.0
    %2087 = vmatpush2.msra.mxu0 0.0
    %2088 = vmatprep.subr.mxu0 0.0
    %2089 = vmatpush2.msra.mxu0 0.0
    %2090 = vmatprep.subr.mxu0 0.0
    %2091 = vmatpush2.msra.mxu0 0.0
    %2092 = vmatprep.subr.mxu0 0.0
    %2093 = vmatpush2.msra.mxu0 0.0
    %2094 = vmatprep.subr.mxu0 0.0
    %2095 = vmatpush2.msra.mxu0 0.0
    %2096 = vmatprep.subr.mxu0 0.0
    %2097 = vmatpush2.msra.mxu0 0.0
    %2098 = vmatprep.subr.mxu0 0.0
    %2099 = vmatpush2.msra.mxu0 0.0
    %2100 = vmatprep.subr.mxu0 0.0
    %2101 = vmatpush2.msra.mxu0 0.0
    %2102 = vmatprep.mubr.f32.mxu0 0.0
    %2103 = vmatmul.mubr.f32.gmra.mxu0 %v2033
    %v2104 = vpop.f32.mrf.mxu0
    %v2105 = vadd.f32 0.0, %v2104
    %v2106 = vpop.f32.mrf.mxu0
    %2107 = vmatprep.mubr.f32.mxu0 0.0
    %2108 = vmatmul.mubr.f32.gmra.mxu0 %v2036
    %v2109 = vpop.f32.mrf.mxu0
    %v2110 = vadd.f32 0.0, %v2109
    %v2111 = vpop.f32.mrf.mxu0
    %2112 = vdwg.mxu0
    %v2114 = vsel %vm276, %v1824, 0
    %v2117 = vsel %vm276, %v1829, 0
    %2119 = vmatprep.subr.mxu0 0.0
    %2120 = vmatpush1.msra.mxu0 0.0
    %2121 = vmatprep.subr.mxu0 0.0
    %2122 = vmatpush1.msra.mxu0 0.0
    %2123 = vmatprep.subr.mxu0 0.0
    %2124 = vmatpush1.msra.mxu0 0.0
    %2125 = vmatprep.subr.mxu0 0.0
    %2126 = vmatpush1.msra.mxu0 0.0
    %2127 = vmatprep.subr.mxu0 0.0
    %2128 = vmatpush1.msra.mxu0 0.0
    %2129 = vmatprep.subr.mxu0 0.0
    %2130 = vmatpush1.msra.mxu0 0.0
    %2131 = vmatprep.subr.mxu0 0.0
    %2132 = vmatpush1.msra.mxu0 0.0
    %2133 = vmatprep.subr.mxu0 0.0
    %2134 = vmatpush1.msra.mxu0 0.0
    %2135 = vmatprep.subr.mxu0 0.0
    %2136 = vmatpush1.msra.mxu0 0.0
    %2137 = vmatprep.subr.mxu0 0.0
    %2138 = vmatpush1.msra.mxu0 0.0
    %2139 = vmatprep.subr.mxu0 0.0
    %2140 = vmatpush1.msra.mxu0 0.0
    %2141 = vmatprep.subr.mxu0 0.0
    %2142 = vmatpush1.msra.mxu0 0.0
    %2143 = vmatprep.subr.mxu0 0.0
    %2144 = vmatpush1.msra.mxu0 0.0
    %2145 = vmatprep.subr.mxu0 0.0
    %2146 = vmatpush1.msra.mxu0 0.0
    %2147 = vmatprep.subr.mxu0 0.0
    %2148 = vmatpush1.msra.mxu0 0.0
    %2149 = vmatprep.subr.mxu0 0.0
    %2150 = vmatpush1.msra.mxu0 %v1632
    %2151 = vmatprep.subr.mxu0 0.0
    %2152 = vmatpush2.msra.mxu0 0.0
    %2153 = vmatprep.subr.mxu0 0.0
    %2154 = vmatpush2.msra.mxu0 0.0
    %2155 = vmatprep.subr.mxu0 0.0
    %2156 = vmatpush2.msra.mxu0 0.0
    %2157 = vmatprep.subr.mxu0 0.0
    %2158 = vmatpush2.msra.mxu0 0.0
    %2159 = vmatprep.subr.mxu0 0.0
    %2160 = vmatpush2.msra.mxu0 0.0
    %2161 = vmatprep.subr.mxu0 0.0
    %2162 = vmatpush2.msra.mxu0 0.0
    %2163 = vmatprep.subr.mxu0 0.0
    %2164 = vmatpush2.msra.mxu0 0.0
    %2165 = vmatprep.subr.mxu0 0.0
    %2166 = vmatpush2.msra.mxu0 0.0
    %2167 = vmatprep.subr.mxu0 0.0
    %2168 = vmatpush2.msra.mxu0 0.0
    %2169 = vmatprep.subr.mxu0 0.0
    %2170 = vmatpush2.msra.mxu0 0.0
    %2171 = vmatprep.subr.mxu0 0.0
    %2172 = vmatpush2.msra.mxu0 0.0
    %2173 = vmatprep.subr.mxu0 0.0
    %2174 = vmatpush2.msra.mxu0 0.0
    %2175 = vmatprep.subr.mxu0 0.0
    %2176 = vmatpush2.msra.mxu0 0.0
    %2177 = vmatprep.subr.mxu0 0.0
    %2178 = vmatpush2.msra.mxu0 0.0
    %2179 = vmatprep.subr.mxu0 0.0
    %2180 = vmatpush2.msra.mxu0 0.0
    %2181 = vmatprep.subr.mxu0 0.0
    %2182 = vmatpush2.msra.mxu0 0.0
    %2183 = vmatprep.mubr.f32.mxu0 0.0
    %2184 = vmatmul.mubr.f32.gmra.mxu0 %v2114
    %v2185 = vpop.f32.mrf.mxu0
    %v2186 = vadd.f32 %v2105, %v2185
    %v2187 = vpop.f32.mrf.mxu0
    %2188 = vmatprep.mubr.f32.mxu0 0.0
    %2189 = vmatmul.mubr.f32.gmra.mxu0 %v2117
    %v2190 = vpop.f32.mrf.mxu0
    %v2191 = vadd.f32 %v2110, %v2190
    %v2192 = vpop.f32.mrf.mxu0
    %2193 = vdwg.mxu0
    %2194 = vrot.lane.b32.xlu0 %v1532, 112
    %v2195 = vpop.permute.xlu0 %2194
    %2196 = vrot.lane.b32.xlu0 %v1537, 112
    %v2197 = vpop.permute.xlu0 %2196
    %2198 = vrot.lane.b32.xlu0 %v1624, 112
    %v2199 = vpop.permute.xlu0 %2198
    %2200 = vrot.lane.b32.xlu0 %v1629, 112
    %v2201 = vpop.permute.xlu0 %2200
    %v2202 = vsel %vm276, %v2195, 0
    %v2204 = vsel %vm276, %v2197, 0
    %v2206 = vsel %vm276, %v2199, 0
    %v2208 = vsel %vm276, %v2201, 0
    %2210 = vmatprep.subr.mxu0 0.0
    %2211 = vmatpush1.xpose.msra.mxu0 0.0
    %2212 = vmatprep.subr.mxu0 0.0
    %2213 = vmatpush1.xpose.msra.mxu0 0.0
    %2214 = vmatprep.subr.mxu0 0.0
    %2215 = vmatpush1.xpose.msra.mxu0 0.0
    %2216 = vmatprep.subr.mxu0 0.0
    %2217 = vmatpush1.xpose.msra.mxu0 0.0
    %2218 = vmatprep.subr.mxu0 0.0
    %2219 = vmatpush1.xpose.msra.mxu0 0.0
    %2220 = vmatprep.subr.mxu0 0.0
    %2221 = vmatpush1.xpose.msra.mxu0 0.0
    %2222 = vmatprep.subr.mxu0 0.0
    %2223 = vmatpush1.xpose.msra.mxu0 0.0
    %2224 = vmatprep.subr.mxu0 0.0
    %2225 = vmatpush1.xpose.msra.mxu0 0.0
    %2226 = vmatprep.subr.mxu0 0.0
    %2227 = vmatpush1.xpose.msra.mxu0 0.0
    %2228 = vmatprep.subr.mxu0 0.0
    %2229 = vmatpush1.xpose.msra.mxu0 0.0
    %2230 = vmatprep.subr.mxu0 0.0
    %2231 = vmatpush1.xpose.msra.mxu0 0.0
    %2232 = vmatprep.subr.mxu0 0.0
    %2233 = vmatpush1.xpose.msra.mxu0 0.0
    %2234 = vmatprep.subr.mxu0 0.0
    %2235 = vmatpush1.xpose.msra.mxu0 0.0
    %2236 = vmatprep.subr.mxu0 0.0
    %2237 = vmatpush1.xpose.msra.mxu0 0.0
    %2238 = vmatprep.subr.mxu0 0.0
    %2239 = vmatpush1.xpose.msra.mxu0 %v2208
    %2240 = vmatprep.subr.mxu0 0.0
    %2241 = vmatpush1.xpose.msra.mxu0 %v2206
    %2242 = vmatprep.subr.mxu0 0.0
    %2243 = vmatpush2.xpose.msra.mxu0 0.0
    %2244 = vmatprep.subr.mxu0 0.0
    %2245 = vmatpush2.xpose.msra.mxu0 0.0
    %2246 = vmatprep.subr.mxu0 0.0
    %2247 = vmatpush2.xpose.msra.mxu0 0.0
    %2248 = vmatprep.subr.mxu0 0.0
    %2249 = vmatpush2.xpose.msra.mxu0 0.0
    %2250 = vmatprep.subr.mxu0 0.0
    %2251 = vmatpush2.xpose.msra.mxu0 0.0
    %2252 = vmatprep.subr.mxu0 0.0
    %2253 = vmatpush2.xpose.msra.mxu0 0.0
    %2254 = vmatprep.subr.mxu0 0.0
    %2255 = vmatpush2.xpose.msra.mxu0 0.0
    %2256 = vmatprep.subr.mxu0 0.0
    %2257 = vmatpush2.xpose.msra.mxu0 0.0
    %2258 = vmatprep.subr.mxu0 0.0
    %2259 = vmatpush2.xpose.msra.mxu0 0.0
    %2260 = vmatprep.subr.mxu0 0.0
    %2261 = vmatpush2.xpose.msra.mxu0 0.0
    %2262 = vmatprep.subr.mxu0 0.0
    %2263 = vmatpush2.xpose.msra.mxu0 0.0
    %2264 = vmatprep.subr.mxu0 0.0
    %2265 = vmatpush2.xpose.msra.mxu0 0.0
    %2266 = vmatprep.subr.mxu0 0.0
    %2267 = vmatpush2.xpose.msra.mxu0 0.0
    %2268 = vmatprep.subr.mxu0 0.0
    %2269 = vmatpush2.xpose.msra.mxu0 0.0
    %2270 = vmatprep.subr.mxu0 0.0
    %2271 = vmatpush2.xpose.msra.mxu0 0.0
    %2272 = vmatprep.subr.mxu0 0.0
    %2273 = vmatpush2.xpose.msra.mxu0 0.0
    %2274 = vmatprep.mubr.f32.mxu0 0.0
    %2275 = vmatmul.mubr.f32.gmra.mxu0 %v2202
    %v2276 = vpop.f32.mrf.mxu0
    %v2277 = vadd.f32 %v167, %v2276
    %v2278 = vpop.f32.mrf.mxu0
    %2279 = vmatprep.mubr.f32.mxu0 0.0
    %2280 = vmatmul.mubr.f32.gmra.mxu0 %v2204
    %v2281 = vpop.f32.mrf.mxu0
    %v2282 = vadd.f32 %v168, %v2281
    %v2283 = vpop.f32.mrf.mxu0
    %2284 = vdwg.mxu0
    %v2285 = vsel %vm360, %v2277, -inf
    %2286 = vmax.xlane.f32.xlu0 %v2285
    %v2287 = vpop.xlane.xlu0 %2286
    %v2288 = vsel %vm360, %v2282, -inf
    %2289 = vmax.xlane.f32.xlu0 %v2288
    %v2290 = vpop.xlane.xlu0 %2289
    %v2291 = vsub.f32 %v2277, %v2287
    %v2292 = vsub.f32 %v2282, %v2290
    %v2293 = vmul.f32 %v2291, 1.442695
    %v2294 = vpow.pop %v2293
    %v2295 = vmul.f32 %v2292, 1.442695
    %v2296 = vpow.pop %v2295
    %v2297 = vsel %vm360, %v2294, 0.0
    %2298 = vadd.xlane.f32.xlu0 %v2297
    %v2299 = vpop.xlane.xlu0 %2298
    %v2300 = vsel %vm360, %v2296, 0.0
    %2301 = vadd.xlane.f32.xlu0 %v2300
    %v2302 = vpop.xlane.xlu0 %2301
    %v2303 = vrcp.pop %v2299
    %v2304 = vrcp.pop %v2302
    %v2305 = vmul.f32 %v2294, %v2303
    %v2306 = vmul.f32 %v2296, %v2304
    %2307 = vrot.lane.b32.xlu0 %v1624, 80
    %v2308 = vpop.permute.xlu0 %2307
    %2309 = vrot.lane.b32.xlu0 %v1629, 80
    %v2310 = vpop.permute.xlu0 %2309
    %v2314 = vsel %vm360, %v2305, 0
    %v2317 = vsel %vm360, %v2306, 0
    %2319 = vmatprep.subr.mxu0 0.0
    %2320 = vmatpush1.msra.mxu0 0.0
    %2321 = vmatprep.subr.mxu0 0.0
    %2322 = vmatpush1.msra.mxu0 0.0
    %2323 = vmatprep.subr.mxu0 0.0
    %2324 = vmatpush1.msra.mxu0 0.0
    %2325 = vmatprep.subr.mxu0 0.0
    %2326 = vmatpush1.msra.mxu0 0.0
    %2327 = vmatprep.subr.mxu0 0.0
    %2328 = vmatpush1.msra.mxu0 0.0
    %2329 = vmatprep.subr.mxu0 0.0
    %2330 = vmatpush1.msra.mxu0 0.0
    %2331 = vmatprep.subr.mxu0 0.0
    %2332 = vmatpush1.msra.mxu0 0.0
    %2333 = vmatprep.subr.mxu0 0.0
    %2334 = vmatpush1.msra.mxu0 0.0
    %2335 = vmatprep.subr.mxu0 0.0
    %2336 = vmatpush1.msra.mxu0 0.0
    %2337 = vmatprep.subr.mxu0 0.0
    %2338 = vmatpush1.msra.mxu0 0.0
    %2339 = vmatprep.subr.mxu0 0.0
    %2340 = vmatpush1.msra.mxu0 0.0
    %2341 = vmatprep.subr.mxu0 0.0
    %2342 = vmatpush1.msra.mxu0 0.0
    %2343 = vmatprep.subr.mxu0 0.0
    %2344 = vmatpush1.msra.mxu0 0.0
    %2345 = vmatprep.subr.mxu0 0.0
    %2346 = vmatpush1.msra.mxu0 0.0
    %2347 = vmatprep.subr.mxu0 0.0
    %2348 = vmatpush1.msra.mxu0 %v2310
    %2349 = vmatprep.subr.mxu0 0.0
    %2350 = vmatpush1.msra.mxu0 %v2308
    %2351 = vmatprep.subr.mxu0 0.0
    %2352 = vmatpush2.msra.mxu0 0.0
    %2353 = vmatprep.subr.mxu0 0.0
    %2354 = vmatpush2.msra.mxu0 0.0
    %2355 = vmatprep.subr.mxu0 0.0
    %2356 = vmatpush2.msra.mxu0 0.0
    %2357 = vmatprep.subr.mxu0 0.0
    %2358 = vmatpush2.msra.mxu0 0.0
    %2359 = vmatprep.subr.mxu0 0.0
    %2360 = vmatpush2.msra.mxu0 0.0
    %2361 = vmatprep.subr.mxu0 0.0
    %2362 = vmatpush2.msra.mxu0 0.0
    %2363 = vmatprep.subr.mxu0 0.0
    %2364 = vmatpush2.msra.mxu0 0.0
    %2365 = vmatprep.subr.mxu0 0.0
    %2366 = vmatpush2.msra.mxu0 0.0
    %2367 = vmatprep.subr.mxu0 0.0
    %2368 = vmatpush2.msra.mxu0 0.0
    %2369 = vmatprep.subr.mxu0 0.0
    %2370 = vmatpush2.msra.mxu0 0.0
    %2371 = vmatprep.subr.mxu0 0.0
    %2372 = vmatpush2.msra.mxu0 0.0
    %2373 = vmatprep.subr.mxu0 0.0
    %2374 = vmatpush2.msra.mxu0 0.0
    %2375 = vmatprep.subr.mxu0 0.0
    %2376 = vmatpush2.msra.mxu0 0.0
    %2377 = vmatprep.subr.mxu0 0.0
    %2378 = vmatpush2.msra.mxu0 0.0
    %2379 = vmatprep.subr.mxu0 0.0
    %2380 = vmatpush2.msra.mxu0 0.0
    %2381 = vmatprep.subr.mxu0 0.0
    %2382 = vmatpush2.msra.mxu0 0.0
    %2383 = vmatprep.mubr.f32.mxu0 0.0
    %2384 = vmatmul.mubr.f32.gmra.mxu0 %v2314
    %v2385 = vpop.f32.mrf.mxu0
    %v2386 = vadd.f32 0.0, %v2385
    %v2387 = vpop.f32.mrf.mxu0
    %2388 = vmatprep.mubr.f32.mxu0 0.0
    %2389 = vmatmul.mubr.f32.gmra.mxu0 %v2317
    %v2390 = vpop.f32.mrf.mxu0
    %v2391 = vadd.f32 0.0, %v2390
    %v2392 = vpop.f32.mrf.mxu0
    %2393 = vdwg.mxu0
    %v2395 = vsel %vm276, %v2386, 0
    %v2398 = vsel %vm276, %v2391, 0
    %2400 = vmatprep.subr.mxu0 0.0
    %2401 = vmatpush1.msra.mxu0 0.0
    %2402 = vmatprep.subr.mxu0 0.0
    %2403 = vmatpush1.msra.mxu0 0.0
    %2404 = vmatprep.subr.mxu0 0.0
    %2405 = vmatpush1.msra.mxu0 0.0
    %2406 = vmatprep.subr.mxu0 0.0
    %2407 = vmatpush1.msra.mxu0 0.0
    %2408 = vmatprep.subr.mxu0 0.0
    %2409 = vmatpush1.msra.mxu0 0.0
    %2410 = vmatprep.subr.mxu0 0.0
    %2411 = vmatpush1.msra.mxu0 0.0
    %2412 = vmatprep.subr.mxu0 0.0
    %2413 = vmatpush1.msra.mxu0 0.0
    %2414 = vmatprep.subr.mxu0 0.0
    %2415 = vmatpush1.msra.mxu0 0.0
    %2416 = vmatprep.subr.mxu0 0.0
    %2417 = vmatpush1.msra.mxu0 0.0
    %2418 = vmatprep.subr.mxu0 0.0
    %2419 = vmatpush1.msra.mxu0 0.0
    %2420 = vmatprep.subr.mxu0 0.0
    %2421 = vmatpush1.msra.mxu0 0.0
    %2422 = vmatprep.subr.mxu0 0.0
    %2423 = vmatpush1.msra.mxu0 0.0
    %2424 = vmatprep.subr.mxu0 0.0
    %2425 = vmatpush1.msra.mxu0 0.0
    %2426 = vmatprep.subr.mxu0 0.0
    %2427 = vmatpush1.msra.mxu0 0.0
    %2428 = vmatprep.subr.mxu0 0.0
    %2429 = vmatpush1.msra.mxu0 0.0
    %2430 = vmatprep.subr.mxu0 0.0
    %2431 = vmatpush1.msra.mxu0 %v1634
    %2432 = vmatprep.subr.mxu0 0.0
    %2433 = vmatpush2.msra.mxu0 0.0
    %2434 = vmatprep.subr.mxu0 0.0
    %2435 = vmatpush2.msra.mxu0 0.0
    %2436 = vmatprep.subr.mxu0 0.0
    %2437 = vmatpush2.msra.mxu0 0.0
    %2438 = vmatprep.subr.mxu0 0.0
    %2439 = vmatpush2.msra.mxu0 0.0
    %2440 = vmatprep.subr.mxu0 0.0
    %2441 = vmatpush2.msra.mxu0 0.0
    %2442 = vmatprep.subr.mxu0 0.0
    %2443 = vmatpush2.msra.mxu0 0.0
    %2444 = vmatprep.subr.mxu0 0.0
    %2445 = vmatpush2.msra.mxu0 0.0
    %2446 = vmatprep.subr.mxu0 0.0
    %2447 = vmatpush2.msra.mxu0 0.0
    %2448 = vmatprep.subr.mxu0 0.0
    %2449 = vmatpush2.msra.mxu0 0.0
    %2450 = vmatprep.subr.mxu0 0.0
    %2451 = vmatpush2.msra.mxu0 0.0
    %2452 = vmatprep.subr.mxu0 0.0
    %2453 = vmatpush2.msra.mxu0 0.0
    %2454 = vmatprep.subr.mxu0 0.0
    %2455 = vmatpush2.msra.mxu0 0.0
    %2456 = vmatprep.subr.mxu0 0.0
    %2457 = vmatpush2.msra.mxu0 0.0
    %2458 = vmatprep.subr.mxu0 0.0
    %2459 = vmatpush2.msra.mxu0 0.0
    %2460 = vmatprep.subr.mxu0 0.0
    %2461 = vmatpush2.msra.mxu0 0.0
    %2462 = vmatprep.subr.mxu0 0.0
    %2463 = vmatpush2.msra.mxu0 0.0
    %2464 = vmatprep.mubr.f32.mxu0 0.0
    %2465 = vmatmul.mubr.f32.gmra.mxu0 %v2395
    %v2466 = vpop.f32.mrf.mxu0
    %v2467 = vadd.f32 0.0, %v2466
    %v2468 = vpop.f32.mrf.mxu0
    %2469 = vmatprep.mubr.f32.mxu0 0.0
    %2470 = vmatmul.mubr.f32.gmra.mxu0 %v2398
    %v2471 = vpop.f32.mrf.mxu0
    %v2472 = vadd.f32 0.0, %v2471
    %v2473 = vpop.f32.mrf.mxu0
    %2474 = vdwg.mxu0
    %v2475 = vadd.f32 %v2186, %v2467
    %v2476 = vadd.f32 %v2191, %v2472
    %2477 = vrot.lane.b32.xlu0 %v1532, 104
    %v2478 = vpop.permute.xlu0 %2477
    %2479 = vrot.lane.b32.xlu0 %v1537, 104
    %v2480 = vpop.permute.xlu0 %2479
    %2481 = vrot.lane.b32.xlu0 %v1624, 104
    %v2482 = vpop.permute.xlu0 %2481
    %2483 = vrot.lane.b32.xlu0 %v1629, 104
    %v2484 = vpop.permute.xlu0 %2483
    %v2485 = vsel %vm276, %v2478, 0
    %v2487 = vsel %vm276, %v2480, 0
    %v2489 = vsel %vm276, %v2482, 0
    %v2491 = vsel %vm276, %v2484, 0
    %2493 = vmatprep.subr.mxu0 0.0
    %2494 = vmatpush1.xpose.msra.mxu0 0.0
    %2495 = vmatprep.subr.mxu0 0.0
    %2496 = vmatpush1.xpose.msra.mxu0 0.0
    %2497 = vmatprep.subr.mxu0 0.0
    %2498 = vmatpush1.xpose.msra.mxu0 0.0
    %2499 = vmatprep.subr.mxu0 0.0
    %2500 = vmatpush1.xpose.msra.mxu0 0.0
    %2501 = vmatprep.subr.mxu0 0.0
    %2502 = vmatpush1.xpose.msra.mxu0 0.0
    %2503 = vmatprep.subr.mxu0 0.0
    %2504 = vmatpush1.xpose.msra.mxu0 0.0
    %2505 = vmatprep.subr.mxu0 0.0
    %2506 = vmatpush1.xpose.msra.mxu0 0.0
    %2507 = vmatprep.subr.mxu0 0.0
    %2508 = vmatpush1.xpose.msra.mxu0 0.0
    %2509 = vmatprep.subr.mxu0 0.0
    %2510 = vmatpush1.xpose.msra.mxu0 0.0
    %2511 = vmatprep.subr.mxu0 0.0
    %2512 = vmatpush1.xpose.msra.mxu0 0.0
    %2513 = vmatprep.subr.mxu0 0.0
    %2514 = vmatpush1.xpose.msra.mxu0 0.0
    %2515 = vmatprep.subr.mxu0 0.0
    %2516 = vmatpush1.xpose.msra.mxu0 0.0
    %2517 = vmatprep.subr.mxu0 0.0
    %2518 = vmatpush1.xpose.msra.mxu0 0.0
    %2519 = vmatprep.subr.mxu0 0.0
    %2520 = vmatpush1.xpose.msra.mxu0 0.0
    %2521 = vmatprep.subr.mxu0 0.0
    %2522 = vmatpush1.xpose.msra.mxu0 %v2491
    %2523 = vmatprep.subr.mxu0 0.0
    %2524 = vmatpush1.xpose.msra.mxu0 %v2489
    %2525 = vmatprep.subr.mxu0 0.0
    %2526 = vmatpush2.xpose.msra.mxu0 0.0
    %2527 = vmatprep.subr.mxu0 0.0
    %2528 = vmatpush2.xpose.msra.mxu0 0.0
    %2529 = vmatprep.subr.mxu0 0.0
    %2530 = vmatpush2.xpose.msra.mxu0 0.0
    %2531 = vmatprep.subr.mxu0 0.0
    %2532 = vmatpush2.xpose.msra.mxu0 0.0
    %2533 = vmatprep.subr.mxu0 0.0
    %2534 = vmatpush2.xpose.msra.mxu0 0.0
    %2535 = vmatprep.subr.mxu0 0.0
    %2536 = vmatpush2.xpose.msra.mxu0 0.0
    %2537 = vmatprep.subr.mxu0 0.0
    %2538 = vmatpush2.xpose.msra.mxu0 0.0
    %2539 = vmatprep.subr.mxu0 0.0
    %2540 = vmatpush2.xpose.msra.mxu0 0.0
    %2541 = vmatprep.subr.mxu0 0.0
    %2542 = vmatpush2.xpose.msra.mxu0 0.0
    %2543 = vmatprep.subr.mxu0 0.0
    %2544 = vmatpush2.xpose.msra.mxu0 0.0
    %2545 = vmatprep.subr.mxu0 0.0
    %2546 = vmatpush2.xpose.msra.mxu0 0.0
    %2547 = vmatprep.subr.mxu0 0.0
    %2548 = vmatpush2.xpose.msra.mxu0 0.0
    %2549 = vmatprep.subr.mxu0 0.0
    %2550 = vmatpush2.xpose.msra.mxu0 0.0
    %2551 = vmatprep.subr.mxu0 0.0
    %2552 = vmatpush2.xpose.msra.mxu0 0.0
    %2553 = vmatprep.subr.mxu0 0.0
    %2554 = vmatpush2.xpose.msra.mxu0 0.0
    %2555 = vmatprep.subr.mxu0 0.0
    %2556 = vmatpush2.xpose.msra.mxu0 0.0
    %2557 = vmatprep.mubr.f32.mxu0 0.0
    %2558 = vmatmul.mubr.f32.gmra.mxu0 %v2485
    %v2559 = vpop.f32.mrf.mxu0
    %v2560 = vadd.f32 %v167, %v2559
    %v2561 = vpop.f32.mrf.mxu0
    %2562 = vmatprep.mubr.f32.mxu0 0.0
    %2563 = vmatmul.mubr.f32.gmra.mxu0 %v2487
    %v2564 = vpop.f32.mrf.mxu0
    %v2565 = vadd.f32 %v168, %v2564
    %v2566 = vpop.f32.mrf.mxu0
    %2567 = vdwg.mxu0
    %v2568 = vsel %vm360, %v2560, -inf
    %2569 = vmax.xlane.f32.xlu0 %v2568
    %v2570 = vpop.xlane.xlu0 %2569
    %v2571 = vsel %vm360, %v2565, -inf
    %2572 = vmax.xlane.f32.xlu0 %v2571
    %v2573 = vpop.xlane.xlu0 %2572
    %v2574 = vsub.f32 %v2560, %v2570
    %v2575 = vsub.f32 %v2565, %v2573
    %v2576 = vmul.f32 %v2574, 1.442695
    %v2577 = vpow.pop %v2576
    %v2578 = vmul.f32 %v2575, 1.442695
    %v2579 = vpow.pop %v2578
    %v2580 = vsel %vm360, %v2577, 0.0
    %2581 = vadd.xlane.f32.xlu0 %v2580
    %v2582 = vpop.xlane.xlu0 %2581
    %v2583 = vsel %vm360, %v2579, 0.0
    %2584 = vadd.xlane.f32.xlu0 %v2583
    %v2585 = vpop.xlane.xlu0 %2584
    %v2586 = vrcp.pop %v2582
    %v2587 = vrcp.pop %v2585
    %v2588 = vmul.f32 %v2577, %v2586
    %v2589 = vmul.f32 %v2579, %v2587
    %2590 = vrot.lane.b32.xlu0 %v1624, 72
    %v2591 = vpop.permute.xlu0 %2590
    %2592 = vrot.lane.b32.xlu0 %v1629, 72
    %v2593 = vpop.permute.xlu0 %2592
    %v2597 = vsel %vm360, %v2588, 0
    %v2600 = vsel %vm360, %v2589, 0
    %2602 = vmatprep.subr.mxu0 0.0
    %2603 = vmatpush1.msra.mxu0 0.0
    %2604 = vmatprep.subr.mxu0 0.0
    %2605 = vmatpush1.msra.mxu0 0.0
    %2606 = vmatprep.subr.mxu0 0.0
    %2607 = vmatpush1.msra.mxu0 0.0
    %2608 = vmatprep.subr.mxu0 0.0
    %2609 = vmatpush1.msra.mxu0 0.0
    %2610 = vmatprep.subr.mxu0 0.0
    %2611 = vmatpush1.msra.mxu0 0.0
    %2612 = vmatprep.subr.mxu0 0.0
    %2613 = vmatpush1.msra.mxu0 0.0
    %2614 = vmatprep.subr.mxu0 0.0
    %2615 = vmatpush1.msra.mxu0 0.0
    %2616 = vmatprep.subr.mxu0 0.0
    %2617 = vmatpush1.msra.mxu0 0.0
    %2618 = vmatprep.subr.mxu0 0.0
    %2619 = vmatpush1.msra.mxu0 0.0
    %2620 = vmatprep.subr.mxu0 0.0
    %2621 = vmatpush1.msra.mxu0 0.0
    %2622 = vmatprep.subr.mxu0 0.0
    %2623 = vmatpush1.msra.mxu0 0.0
    %2624 = vmatprep.subr.mxu0 0.0
    %2625 = vmatpush1.msra.mxu0 0.0
    %2626 = vmatprep.subr.mxu0 0.0
    %2627 = vmatpush1.msra.mxu0 0.0
    %2628 = vmatprep.subr.mxu0 0.0
    %2629 = vmatpush1.msra.mxu0 0.0
    %2630 = vmatprep.subr.mxu0 0.0
    %2631 = vmatpush1.msra.mxu0 %v2593
    %2632 = vmatprep.subr.mxu0 0.0
    %2633 = vmatpush1.msra.mxu0 %v2591
    %2634 = vmatprep.subr.mxu0 0.0
    %2635 = vmatpush2.msra.mxu0 0.0
    %2636 = vmatprep.subr.mxu0 0.0
    %2637 = vmatpush2.msra.mxu0 0.0
    %2638 = vmatprep.subr.mxu0 0.0
    %2639 = vmatpush2.msra.mxu0 0.0
    %2640 = vmatprep.subr.mxu0 0.0
    %2641 = vmatpush2.msra.mxu0 0.0
    %2642 = vmatprep.subr.mxu0 0.0
    %2643 = vmatpush2.msra.mxu0 0.0
    %2644 = vmatprep.subr.mxu0 0.0
    %2645 = vmatpush2.msra.mxu0 0.0
    %2646 = vmatprep.subr.mxu0 0.0
    %2647 = vmatpush2.msra.mxu0 0.0
    %2648 = vmatprep.subr.mxu0 0.0
    %2649 = vmatpush2.msra.mxu0 0.0
    %2650 = vmatprep.subr.mxu0 0.0
    %2651 = vmatpush2.msra.mxu0 0.0
    %2652 = vmatprep.subr.mxu0 0.0
    %2653 = vmatpush2.msra.mxu0 0.0
    %2654 = vmatprep.subr.mxu0 0.0
    %2655 = vmatpush2.msra.mxu0 0.0
    %2656 = vmatprep.subr.mxu0 0.0
    %2657 = vmatpush2.msra.mxu0 0.0
    %2658 = vmatprep.subr.mxu0 0.0
    %2659 = vmatpush2.msra.mxu0 0.0
    %2660 = vmatprep.subr.mxu0 0.0
    %2661 = vmatpush2.msra.mxu0 0.0
    %2662 = vmatprep.subr.mxu0 0.0
    %2663 = vmatpush2.msra.mxu0 0.0
    %2664 = vmatprep.subr.mxu0 0.0
    %2665 = vmatpush2.msra.mxu0 0.0
    %2666 = vmatprep.mubr.f32.mxu0 0.0
    %2667 = vmatmul.mubr.f32.gmra.mxu0 %v2597
    %v2668 = vpop.f32.mrf.mxu0
    %v2669 = vadd.f32 0.0, %v2668
    %v2670 = vpop.f32.mrf.mxu0
    %2671 = vmatprep.mubr.f32.mxu0 0.0
    %2672 = vmatmul.mubr.f32.gmra.mxu0 %v2600
    %v2673 = vpop.f32.mrf.mxu0
    %v2674 = vadd.f32 0.0, %v2673
    %v2675 = vpop.f32.mrf.mxu0
    %2676 = vdwg.mxu0
    %v2678 = vsel %vm276, %v2669, 0
    %v2681 = vsel %vm276, %v2674, 0
    %2683 = vmatprep.subr.mxu0 0.0
    %2684 = vmatpush1.msra.mxu0 0.0
    %2685 = vmatprep.subr.mxu0 0.0
    %2686 = vmatpush1.msra.mxu0 0.0
    %2687 = vmatprep.subr.mxu0 0.0
    %2688 = vmatpush1.msra.mxu0 0.0
    %2689 = vmatprep.subr.mxu0 0.0
    %2690 = vmatpush1.msra.mxu0 0.0
    %2691 = vmatprep.subr.mxu0 0.0
    %2692 = vmatpush1.msra.mxu0 0.0
    %2693 = vmatprep.subr.mxu0 0.0
    %2694 = vmatpush1.msra.mxu0 0.0
    %2695 = vmatprep.subr.mxu0 0.0
    %2696 = vmatpush1.msra.mxu0 0.0
    %2697 = vmatprep.subr.mxu0 0.0
    %2698 = vmatpush1.msra.mxu0 0.0
    %2699 = vmatprep.subr.mxu0 0.0
    %2700 = vmatpush1.msra.mxu0 0.0
    %2701 = vmatprep.subr.mxu0 0.0
    %2702 = vmatpush1.msra.mxu0 0.0
    %2703 = vmatprep.subr.mxu0 0.0
    %2704 = vmatpush1.msra.mxu0 0.0
    %2705 = vmatprep.subr.mxu0 0.0
    %2706 = vmatpush1.msra.mxu0 0.0
    %2707 = vmatprep.subr.mxu0 0.0
    %2708 = vmatpush1.msra.mxu0 0.0
    %2709 = vmatprep.subr.mxu0 0.0
    %2710 = vmatpush1.msra.mxu0 0.0
    %2711 = vmatprep.subr.mxu0 0.0
    %2712 = vmatpush1.msra.mxu0 0.0
    %2713 = vmatprep.subr.mxu0 0.0
    %2714 = vmatpush1.msra.mxu0 %v1635
    %2715 = vmatprep.subr.mxu0 0.0
    %2716 = vmatpush2.msra.mxu0 0.0
    %2717 = vmatprep.subr.mxu0 0.0
    %2718 = vmatpush2.msra.mxu0 0.0
    %2719 = vmatprep.subr.mxu0 0.0
    %2720 = vmatpush2.msra.mxu0 0.0
    %2721 = vmatprep.subr.mxu0 0.0
    %2722 = vmatpush2.msra.mxu0 0.0
    %2723 = vmatprep.subr.mxu0 0.0
    %2724 = vmatpush2.msra.mxu0 0.0
    %2725 = vmatprep.subr.mxu0 0.0
    %2726 = vmatpush2.msra.mxu0 0.0
    %2727 = vmatprep.subr.mxu0 0.0
    %2728 = vmatpush2.msra.mxu0 0.0
    %2729 = vmatprep.subr.mxu0 0.0
    %2730 = vmatpush2.msra.mxu0 0.0
    %2731 = vmatprep.subr.mxu0 0.0
    %2732 = vmatpush2.msra.mxu0 0.0
    %2733 = vmatprep.subr.mxu0 0.0
    %2734 = vmatpush2.msra.mxu0 0.0
    %2735 = vmatprep.subr.mxu0 0.0
    %2736 = vmatpush2.msra.mxu0 0.0
    %2737 = vmatprep.subr.mxu0 0.0
    %2738 = vmatpush2.msra.mxu0 0.0
    %2739 = vmatprep.subr.mxu0 0.0
    %2740 = vmatpush2.msra.mxu0 0.0
    %2741 = vmatprep.subr.mxu0 0.0
    %2742 = vmatpush2.msra.mxu0 0.0
    %2743 = vmatprep.subr.mxu0 0.0
    %2744 = vmatpush2.msra.mxu0 0.0
    %2745 = vmatprep.subr.mxu0 0.0
    %2746 = vmatpush2.msra.mxu0 0.0
    %2747 = vmatprep.mubr.f32.mxu0 0.0
    %2748 = vmatmul.mubr.f32.gmra.mxu0 %v2678
    %v2749 = vpop.f32.mrf.mxu0
    %v2750 = vadd.f32 0.0, %v2749
    %v2751 = vpop.f32.mrf.mxu0
    %2752 = vmatprep.mubr.f32.mxu0 0.0
    %2753 = vmatmul.mubr.f32.gmra.mxu0 %v2681
    %v2754 = vpop.f32.mrf.mxu0
    %v2755 = vadd.f32 0.0, %v2754
    %v2756 = vpop.f32.mrf.mxu0
    %2757 = vdwg.mxu0
    %v2758 = vadd.f32 %v2475, %v2750
    %v2759 = vadd.f32 %v2476, %v2755
    %v2760 = vadd.f32 %v1446, %v2758
    %v2761 = vadd.f32 %v1447, %v2759
    %v2762 = vld [vmem:[%s13] sm:$0x1]
    %v2764 = vlaneseq
    %v2765 = vshrl.u32 %v2764, 7
    %v2766 = vsub.s32 0, %v2765
    %v2767 = vrot.slane %v2762, %v2766
    %v2769 = vadd.f32 %v2760, %v2767
    %v2770 = vadd.f32 %v2761, %v2767
    %v2771 = vsel %vm184, %v2769, 0.0
    %2772 = vadd.xlane.f32.xlu0 %v2771
    %v2773 = vpop.xlane.xlu0 %2772
    %v2774 = vsel %vm184, %v2770, 0.0
    %2775 = vadd.xlane.f32.xlu0 %v2774
    %v2776 = vpop.xlane.xlu0 %2775
    %v2777 = vmul.f32 %v2773, %v1415
    %v2778 = vmul.f32 %v2776, %v1415
    %v2779 = vsub.f32 %v2769, %v2777
    %v2780 = vsub.f32 %v2770, %v2778
    %v2781 = vmul.f32 %v2779, %v2779
    %v2782 = vmul.f32 %v2780, %v2780
    %v2783 = vsel %vm184, %v2781, 0.0
    %2784 = vadd.xlane.f32.xlu0 %v2783
    %v2785 = vpop.xlane.xlu0 %2784
    %v2786 = vsel %vm184, %v2782, 0.0
    %2787 = vadd.xlane.f32.xlu0 %v2786
    %v2788 = vpop.xlane.xlu0 %2787
    %v2789 = vmul.f32 %v2785, %v1415
    %v2790 = vmul.f32 %v2788, %v1415
    %v2791 = vadd.f32 %v2789, 1e-06
    %v2792 = vadd.f32 %v2790, 1e-06
    %v2793 = vrsqrt.pop %v2791
    %v2794 = vrsqrt.pop %v2792
    %v2795 = vmul.f32 %v2779, %v2793
    %v2796 = vmul.f32 %v2780, %v2794
    %v2797 = vmul.f32 %v2795, %v1439
    %v2798 = vmul.f32 %v2796, %v1439
    %v2799 = vadd.f32 %v2797, %v1445
    %v2800 = vadd.f32 %v2798, %v1445
    %v2801 = vld [vmem:[#allocation13] sm:$0xff]
    %v2802 = vld [vmem:[#allocation13 + $0x8] sm:$0xff]
    %v2803 = vld [vmem:[#allocation13 + $0x10] sm:$0xff]
    %v2804 = vld [vmem:[#allocation13 + $0x18] sm:$0xff]
    %v2805 = vld [vmem:[%s16] sm:$0x1]
    %v2807 = vlaneseq
    %v2808 = vshrl.u32 %v2807, 7
    %v2809 = vsub.s32 0, %v2808
    %v2810 = vrot.slane %v2805, %v2809
    %v2813 = vsel %vm184, %v2799, 0
    %v2816 = vsel %vm184, %v2800, 0
    %2818 = vmatprep.subr.mxu0 0.0
    %2819 = vmatpush1.msra.mxu0 0.0
    %2820 = vmatprep.subr.mxu0 0.0
    %2821 = vmatpush1.msra.mxu0 0.0
    %2822 = vmatprep.subr.mxu0 0.0
    %2823 = vmatpush1.msra.mxu0 0.0
    %2824 = vmatprep.subr.mxu0 0.0
    %2825 = vmatpush1.msra.mxu0 0.0
    %2826 = vmatprep.subr.mxu0 0.0
    %2827 = vmatpush1.msra.mxu0 0.0
    %2828 = vmatprep.subr.mxu0 0.0
    %2829 = vmatpush1.msra.mxu0 0.0
    %2830 = vmatprep.subr.mxu0 0.0
    %2831 = vmatpush1.msra.mxu0 0.0
    %2832 = vmatprep.subr.mxu0 0.0
    %2833 = vmatpush1.msra.mxu0 0.0
    %2834 = vmatprep.subr.mxu0 0.0
    %2835 = vmatpush1.msra.mxu0 0.0
    %2836 = vmatprep.subr.mxu0 0.0
    %2837 = vmatpush1.msra.mxu0 0.0
    %2838 = vmatprep.subr.mxu0 0.0
    %2839 = vmatpush1.msra.mxu0 0.0
    %2840 = vmatprep.subr.mxu0 0.0
    %2841 = vmatpush1.msra.mxu0 0.0
    %2842 = vmatprep.subr.mxu0 0.0
    %2843 = vmatpush1.msra.mxu0 %v2804
    %2844 = vmatprep.subr.mxu0 0.0
    %2845 = vmatpush1.msra.mxu0 %v2803
    %2846 = vmatprep.subr.mxu0 0.0
    %2847 = vmatpush1.msra.mxu0 %v2802
    %2848 = vmatprep.subr.mxu0 0.0
    %2849 = vmatpush1.msra.mxu0 %v2801
    %2850 = vmatprep.subr.mxu0 0.0
    %2851 = vmatpush2.msra.mxu0 0.0
    %2852 = vmatprep.subr.mxu0 0.0
    %2853 = vmatpush2.msra.mxu0 0.0
    %2854 = vmatprep.subr.mxu0 0.0
    %2855 = vmatpush2.msra.mxu0 0.0
    %2856 = vmatprep.subr.mxu0 0.0
    %2857 = vmatpush2.msra.mxu0 0.0
    %2858 = vmatprep.subr.mxu0 0.0
    %2859 = vmatpush2.msra.mxu0 0.0
    %2860 = vmatprep.subr.mxu0 0.0
    %2861 = vmatpush2.msra.mxu0 0.0
    %2862 = vmatprep.subr.mxu0 0.0
    %2863 = vmatpush2.msra.mxu0 0.0
    %2864 = vmatprep.subr.mxu0 0.0
    %2865 = vmatpush2.msra.mxu0 0.0
    %2866 = vmatprep.subr.mxu0 0.0
    %2867 = vmatpush2.msra.mxu0 0.0
    %2868 = vmatprep.subr.mxu0 0.0
    %2869 = vmatpush2.msra.mxu0 0.0
    %2870 = vmatprep.subr.mxu0 0.0
    %2871 = vmatpush2.msra.mxu0 0.0
    %2872 = vmatprep.subr.mxu0 0.0
    %2873 = vmatpush2.msra.mxu0 0.0
    %2874 = vmatprep.subr.mxu0 0.0
    %2875 = vmatpush2.msra.mxu0 0.0
    %2876 = vmatprep.subr.mxu0 0.0
    %2877 = vmatpush2.msra.mxu0 0.0
    %2878 = vmatprep.subr.mxu0 0.0
    %2879 = vmatpush2.msra.mxu0 0.0
    %2880 = vmatprep.subr.mxu0 0.0
    %2881 = vmatpush2.msra.mxu0 0.0
    %2882 = vmatprep.mubr.f32.mxu0 0.0
    %2883 = vmatmul.mubr.f32.gmra.mxu0 %v2813
    %v2884 = vpop.f32.mrf.mxu0
    %v2885 = vadd.f32 %v2810, %v2884
    %v2886 = vpop.f32.mrf.mxu0
    %2887 = vmatprep.mubr.f32.mxu0 0.0
    %2888 = vmatmul.mubr.f32.gmra.mxu0 %v2816
    %v2889 = vpop.f32.mrf.mxu0
    %v2890 = vadd.f32 %v2810, %v2889
    %v2891 = vpop.f32.mrf.mxu0
    %2892 = vdwg.mxu0
    %v2893 = vmax.f32 %v2885, 0.0
    %v2894 = vmax.f32 %v2890, 0.0
    %v2895 = vld [vmem:[%s17] sm:$0xff]
    %v2896 = vld [vmem:[%s17 + $0x8] sm:$0xff]
    %v2897 = vld [vmem:[%s17 + $0x10] sm:$0xff]
    %v2898 = vld [vmem:[%s17 + $0x18] sm:$0xff]
    %v2899 = vld [vmem:[%s17 + $0x20] sm:$0xff]
    %v2900 = vld [vmem:[%s17 + $0x28] sm:$0xff]
    %v2901 = vld [vmem:[%s17 + $0x30] sm:$0xff]
    %v2902 = vld [vmem:[%s17 + $0x38] sm:$0xff]
    %v2903 = vld [vmem:[%s18] sm:$0x1]
    %v2905 = vlaneseq
    %v2906 = vshrl.u32 %v2905, 7
    %v2907 = vsub.s32 0, %v2906
    %v2908 = vrot.slane %v2903, %v2907
    %vm2910 = vcmask 523264
    %v2912 = vsel %vm2910, %v2893, 0
    %v2915 = vsel %vm2910, %v2894, 0
    %2917 = vmatprep.subr.mxu0 0.0
    %2918 = vmatpush1.msra.mxu0 0.0
    %2919 = vmatprep.subr.mxu0 0.0
    %2920 = vmatpush1.msra.mxu0 0.0
    %2921 = vmatprep.subr.mxu0 0.0
    %2922 = vmatpush1.msra.mxu0 0.0
    %2923 = vmatprep.subr.mxu0 0.0
    %2924 = vmatpush1.msra.mxu0 0.0
    %2925 = vmatprep.subr.mxu0 0.0
    %2926 = vmatpush1.msra.mxu0 0.0
    %2927 = vmatprep.subr.mxu0 0.0
    %2928 = vmatpush1.msra.mxu0 0.0
    %2929 = vmatprep.subr.mxu0 0.0
    %2930 = vmatpush1.msra.mxu0 0.0
    %2931 = vmatprep.subr.mxu0 0.0
    %2932 = vmatpush1.msra.mxu0 0.0
    %2933 = vmatprep.subr.mxu0 0.0
    %2934 = vmatpush1.msra.mxu0 %v2902
    %2935 = vmatprep.subr.mxu0 0.0
    %2936 = vmatpush1.msra.mxu0 %v2901
    %2937 = vmatprep.subr.mxu0 0.0
    %2938 = vmatpush1.msra.mxu0 %v2900
    %2939 = vmatprep.subr.mxu0 0.0
    %2940 = vmatpush1.msra.mxu0 %v2899
    %2941 = vmatprep.subr.mxu0 0.0
    %2942 = vmatpush1.msra.mxu0 %v2898
    %2943 = vmatprep.subr.mxu0 0.0
    %2944 = vmatpush1.msra.mxu0 %v2897
    %2945 = vmatprep.subr.mxu0 0.0
    %2946 = vmatpush1.msra.mxu0 %v2896
    %2947 = vmatprep.subr.mxu0 0.0
    %2948 = vmatpush1.msra.mxu0 %v2895
    %2949 = vmatprep.subr.mxu0 0.0
    %2950 = vmatpush2.msra.mxu0 0.0
    %2951 = vmatprep.subr.mxu0 0.0
    %2952 = vmatpush2.msra.mxu0 0.0
    %2953 = vmatprep.subr.mxu0 0.0
    %2954 = vmatpush2.msra.mxu0 0.0
    %2955 = vmatprep.subr.mxu0 0.0
    %2956 = vmatpush2.msra.mxu0 0.0
    %2957 = vmatprep.subr.mxu0 0.0
    %2958 = vmatpush2.msra.mxu0 0.0
    %2959 = vmatprep.subr.mxu0 0.0
    %2960 = vmatpush2.msra.mxu0 0.0
    %2961 = vmatprep.subr.mxu0 0.0
    %2962 = vmatpush2.msra.mxu0 0.0
    %2963 = vmatprep.subr.mxu0 0.0
    %2964 = vmatpush2.msra.mxu0 0.0
    %2965 = vmatprep.subr.mxu0 0.0
    %2966 = vmatpush2.msra.mxu0 0.0
    %2967 = vmatprep.subr.mxu0 0.0
    %2968 = vmatpush2.msra.mxu0 0.0
    %2969 = vmatprep.subr.mxu0 0.0
    %2970 = vmatpush2.msra.mxu0 0.0
    %2971 = vmatprep.subr.mxu0 0.0
    %2972 = vmatpush2.msra.mxu0 0.0
    %2973 = vmatprep.subr.mxu0 0.0
    %2974 = vmatpush2.msra.mxu0 0.0
    %2975 = vmatprep.subr.mxu0 0.0
    %2976 = vmatpush2.msra.mxu0 0.0
    %2977 = vmatprep.subr.mxu0 0.0
    %2978 = vmatpush2.msra.mxu0 0.0
    %2979 = vmatprep.subr.mxu0 0.0
    %2980 = vmatpush2.msra.mxu0 0.0
    %2981 = vmatprep.mubr.f32.mxu0 0.0
    %2982 = vmatmul.mubr.f32.gmra.mxu0 %v2912
    %v2983 = vpop.f32.mrf.mxu0
    %v2984 = vadd.f32 %v2908, %v2983
    %v2985 = vpop.f32.mrf.mxu0
    %2986 = vmatprep.mubr.f32.mxu0 0.0
    %2987 = vmatmul.mubr.f32.gmra.mxu0 %v2915
    %v2988 = vpop.f32.mrf.mxu0
    %v2989 = vadd.f32 %v2908, %v2988
    %v2990 = vpop.f32.mrf.mxu0
    %2991 = vdwg.mxu0
    %v2992 = vadd.f32 %v2799, %v2984
    %v2993 = vadd.f32 %v2800, %v2989
    %v2994 = vsel %vm184, %v2992, 0.0
    %2995 = vadd.xlane.f32.xlu0 %v2994
    %v2996 = vpop.xlane.xlu0 %2995
    %v2997 = vsel %vm184, %v2993, 0.0
    %2998 = vadd.xlane.f32.xlu0 %v2997
    %v2999 = vpop.xlane.xlu0 %2998
    %v3000 = vmul.f32 %v2996, %v1415
    %v3001 = vmul.f32 %v2999, %v1415
    %v3002 = vsub.f32 %v2992, %v3000
    %v3003 = vsub.f32 %v2993, %v3001
    %v3004 = vmul.f32 %v3002, %v3002
    %v3005 = vmul.f32 %v3003, %v3003
    %v3006 = vsel %vm184, %v3004, 0.0
    %3007 = vadd.xlane.f32.xlu0 %v3006
    %v3008 = vpop.xlane.xlu0 %3007
    %v3009 = vsel %vm184, %v3005, 0.0
    %3010 = vadd.xlane.f32.xlu0 %v3009
    %v3011 = vpop.xlane.xlu0 %3010
    %v3012 = vmul.f32 %v3008, %v1415
    %v3013 = vmul.f32 %v3011, %v1415
    %v3014 = vadd.f32 %v3012, 1e-06
    %v3015 = vadd.f32 %v3013, 1e-06
    %v3016 = vrsqrt.pop %v3014
    %v3017 = vrsqrt.pop %v3015
    %v3018 = vmul.f32 %v3002, %v3016
    %v3019 = vmul.f32 %v3003, %v3017
    %v3020 = vlaneseq
    %v3021 = vshrl.u32 %v3020, 7
    %v3022 = vsub.s32 0, %v3021
    %v3023 = vrot.slane %v171, %v3022
    %v3024 = vmul.f32 %v3018, %v3023
    %v3025 = vmul.f32 %v3019, %v3023
    %v3026 = vlaneseq
    %v3027 = vshrl.u32 %v3026, 7
    %v3028 = vsub.s32 0, %v3027
    %v3029 = vrot.slane %v172, %v3028
    %v3030 = vadd.f32 %v3024, %v3029
    %v3031 = vadd.f32 %v3025, %v3029
    %3032 = vst.msk [vmem:[#allocation14] sm:$0xff] %vm184, %v3030
    %3033 = vst.msk [vmem:[#allocation14 + $0x8] sm:$0xff] %vm184, %v3031
    // Predicated region
    $region110: #{tpu_custom_call.1} parent=1 // pred_check
      _
    $region111: #{tpu_custom_call.1} parent=1 // pred_check_branch
      %3035 = sbr.rel (0) target = $region113
    $region112: #{tpu_custom_call.1} parent=1 // pred_region
      %s3037 = ssub.s32 256, 256
      %3038 = vsyncadd [#allocation4], %s3037
      %s3039 = sshll.u32 [#allocation14], 4
      %s3040 = int_to_ptr.vmem [resolvable:$true] %s3039
      %3045 = dma.vmem_to_hbm [thread:$0]  %s3040, 256, %s20, [#allocation4], 128, 128, 8
    $region113: #{tpu_custom_call.1} parent=1 // pred_fallthru
      _
    // Predicated region
    $region114: #{tpu_custom_call.1} parent=1 // pred_check
      _
    $region115: #{tpu_custom_call.1} parent=1 // pred_check_branch
      %3047 = sbr.rel (0) target = $region117
    $region116: #{tpu_custom_call.1} parent=1 // pred_region
      %3048 = dma.done [#allocation4], 256
    $region117: #{tpu_custom_call.1} parent=1 // pred_fallthru
      _
    %3049 = vsyncpa [#allocation3], 1
    %3050 = vsyncpa [#allocation6], 1
    %3051 = vsyncpa [#allocation9], 1
    %3052 = vsyncpa [#allocation12], 1
    %3053 = vsyncpa [#allocation4], 1

</llo_original>
